<compile_context>
chip_gen: v7x
topology: tpu7x:2x2x1
jax: 0.10.0
libtpu: 0.0.40
codegen_flags: <defaults>
</compile_context>

<pallas_src>
import math

import jax
import jax.numpy as jnp
from jax.experimental import pallas as pl
from jax.experimental.pallas import tpu as pltpu

# ----------------- small synthetic BERT config -----------------
VOCAB = 100
MAX_POS = 64
TYPE_VOCAB = 2
HIDDEN = 32
N_LAYERS = 2
N_HEADS = 2
HEAD_DIM = HIDDEN // N_HEADS
INTERMEDIATE = 4 * HIDDEN
NUM_LABELS = 21              # len(unique_labels)
NUM_LABELS_PAD = 128         # lane-dense classifier width
LN_EPS = 1e-12
B = 2
S = 8
M = B * S
NEG_INF = -1e9
ATTN_SCALE = 1.0 / math.sqrt(HEAD_DIM)

# q @ k^T without an explicit transpose op (contract dim 1 of both operands)
_TRANS_B_DIMS = (((1,), (1,)), ((), ()))


def _vmem():
    # whole-array block resident in VMEM (everything here is tiny)
    return pl.BlockSpec(memory_space=pltpu.MemorySpace.VMEM)


def _layernorm(x, g, b):
    # E[x^2] - E[x]^2 form: the two cross-lane reductions are independent
    mu = jnp.mean(x, axis=-1, keepdims=True)
    msq = jnp.mean(x * x, axis=-1, keepdims=True)
    var = jnp.maximum(msq - mu * mu, 0.0)
    return (x - mu) * jax.lax.rsqrt(var + LN_EPS) * g + b


def _bf(x):
    return x.astype(jnp.bfloat16)


# ----------------- fused forward kernel -----------------
def _bert_fwd_kernel(
    ids_ref, mask_ref, labels_ref,
    word_emb_ref, pos_type_ref, emb_ln_g_ref, emb_ln_b_ref,
    qkv_w_ref, qkv_b_ref, o_w_ref, o_b_ref,
    ln1_g_ref, ln1_b_ref,
    i_w_ref, i_b_ref, f_w_ref, f_b_ref,
    ln2_g_ref, ln2_b_ref,
    cls_w_ref, cls_b_ref,
    logits_ref, loss_ref,
):
    # ---- word-embedding gather as a one-hot MXU matmul ----
    ids = ids_ref[...]                                           # [M, 1] int32
    vocab_iota = jax.lax.broadcasted_iota(jnp.int32, (M, VOCAB), 1)
    onehot_ids = (vocab_iota == ids).astype(jnp.bfloat16)        # [M, VOCAB]
    word = jnp.dot(onehot_ids, word_emb_ref[...],
                   preferred_element_type=jnp.float32)           # [M, H]
    # precomputed (pos_emb[:S] + type_emb[0]) bias, tiled over the batch
    pos_type = jnp.concatenate([pos_type_ref[...]] * B, axis=0)  # [M, H]
    x = _layernorm(word + pos_type, emb_ln_g_ref[...], emb_ln_b_ref[...])

    # ---- additive attention mask, pre-tiled once for the stacked softmax ----
    addm = (1.0 - mask_ref[...]) * NEG_INF                       # [B, S]
    mask_full = jnp.concatenate(
        [jnp.broadcast_to(addm[b:b + 1, :], (S, S))
         for b in range(B) for _ in range(N_HEADS)], axis=0)     # [B*H*S, S]

    for l in range(N_LAYERS):       # static unroll; weights stay VMEM-resident
        qkv_w = qkv_w_ref[l]
        o_w = o_w_ref[l]

        # ---- fused QKV projection (bf16 operands, f32 accumulate) ----
        qkv = (jnp.dot(_bf(x), qkv_w, preferred_element_type=jnp.float32)
               + qkv_b_ref[l])                                   # [M, 3H]
        q = qkv[:, 0:HIDDEN] * ATTN_SCALE                        # 1/sqrt(Dh) folded in
        k = qkv[:, HIDDEN:2 * HIDDEN]
        v = qkv[:, 2 * HIDDEN:3 * HIDDEN]

        # ---- scores for all (b, h) blocks, stacked along sublanes ----
        score_blocks = []
        for b in range(B):
            r0, r1 = b * S, (b + 1) * S
            for h in range(N_HEADS):
                c0, c1 = h * HEAD_DIM, (h + 1) * HEAD_DIM
                score_blocks.append(jax.lax.dot_general(
                    _bf(q[r0:r1, c0:c1]), _bf(k[r0:r1, c0:c1]),
                    _TRANS_B_DIMS, preferred_element_type=jnp.float32))
        s_all = jnp.concatenate(score_blocks, axis=0) + mask_full  # [B*H*S, S]

        # ---- one batched softmax instead of four ----
        s_all = s_all - jnp.max(s_all, axis=-1, keepdims=True)
        p_all = jnp.exp(s_all)
        p_all = p_all * pl.reciprocal(jnp.sum(p_all, axis=-1, keepdims=True),
                                      approx=True)               # [B*H*S, S] f32

        # ---- per-head context @ per-head o_w row-block, register accumulate ----
        attn_rows = []
        for b in range(B):
            r0, r1 = b * S, (b + 1) * S
            acc = None
            for h in range(N_HEADS):
                idx = b * N_HEADS + h
                c0, c1 = h * HEAD_DIM, (h + 1) * HEAD_DIM
                ctx_bh = jnp.dot(
                    _bf(p_all[idx * S:(idx + 1) * S, :]),
                    _bf(v[r0:r1, c0:c1]),
                    preferred_element_type=jnp.float32)          # [S, Dh]
                part = jnp.dot(_bf(ctx_bh), o_w[c0:c1, :],
                               preferred_element_type=jnp.float32)  # [S, H]
                acc = part if acc is None else acc + part
            attn_rows.append(acc)
        attn_out = jnp.concatenate(attn_rows, axis=0) + o_b_ref[l]  # [M, H]

        # ---- add & LayerNorm ----
        x = _layernorm(attn_out + x, ln1_g_ref[l], ln1_b_ref[l])

        # ---- FFN (GELU) + add & LayerNorm ----
        h_ff = (jnp.dot(_bf(x), i_w_ref[l], preferred_element_type=jnp.float32)
                + i_b_ref[l])
        # HF BERT uses exact erf-GELU; tanh approximation is ~1e-3-close and
        # keeps the transcendental on the EUP on every TPU generation.
        h_ff = jax.nn.gelu(h_ff, approximate=True)
        ff = (jnp.dot(_bf(h_ff), f_w_ref[l], preferred_element_type=jnp.float32)
              + f_b_ref[l])
        x = _layernorm(ff + x, ln2_g_ref[l], ln2_b_ref[l])

    # ---- token-classification head (dropout == identity in eval) ----
    # Padded to 128 lanes: pad columns have zero weight and -1e9 bias, so they
    # never win the max, contribute ~0 to the LSE, and never match a label.
    logits = (jnp.dot(_bf(x), cls_w_ref[...], preferred_element_type=jnp.float32)
              + cls_b_ref[...])                                  # [M, 128]
    logits_ref[...] = logits

    # ---- fused CrossEntropyLoss(ignore_index=-100), mean over valid tokens ----
    labels = labels_ref[...]                                     # [M, 1] int32
    classes = jax.lax.broadcasted_iota(jnp.int32, (M, NUM_LABELS_PAD), 1)
    onehot = (classes == labels).astype(jnp.float32)             # -100 -> all-zero row
    valid = (labels != -100).astype(jnp.float32)                 # [M, 1]
    zmax = jnp.max(logits, axis=-1, keepdims=True)
    lse = jnp.log(jnp.sum(jnp.exp(logits - zmax), axis=-1, keepdims=True)) + zmax
    picked = jnp.sum(onehot * logits, axis=-1, keepdims=True)
    per_tok = (lse - picked) * valid                             # [M, 1]
    total = jnp.sum(per_tok, axis=0, keepdims=True)              # [1, 1]
    # TODO(synk): if every label is -100, PyTorch returns NaN; this returns 0.
    denom = jnp.maximum(jnp.sum(valid, axis=0, keepdims=True), 1.0)
    loss_ref[...] = total / denom


def bert_fused(params, ids_2d, mask_f, labels_2d):
    n_in = 21
    return pl.pallas_call(
        _bert_fwd_kernel,
        out_shape=(
            jax.ShapeDtypeStruct((M, NUM_LABELS_PAD), jnp.float32),
            jax.ShapeDtypeStruct((1, 1), jnp.float32),
        ),
        in_specs=[_vmem()] * n_in,
        out_specs=(_vmem(), _vmem()),
    )(
        ids_2d, mask_f, labels_2d,
        params["word_emb"], params["pos_type_bias"],
        params["emb_ln_g"], params["emb_ln_b"],
        params["qkv_w"], params["qkv_b"], params["o_w"], params["o_b"],
        params["ln1_g"], params["ln1_b"],
        params["i_w"], params["i_b"], params["f_w"], params["f_b"],
        params["ln2_g"], params["ln2_b"],
        params["cls_w"], params["cls_b"],
    )


# ----------------- parameters (deterministic synthetic init) -----------------
def init_params(key):
    keys = iter(jax.random.split(key, 64))

    def w(shape, dtype=jnp.bfloat16):
        return (0.02 * jax.random.normal(next(keys), shape)).astype(dtype)

    def zeros(shape):
        return jnp.zeros(shape, jnp.float32)

    def ones(shape):
        return jnp.ones(shape, jnp.float32)

    pos_emb = w((MAX_POS, HIDDEN), jnp.float32)
    type_emb = w((TYPE_VOCAB, HIDDEN), jnp.float32)
    # positions are 0..S-1 and token_type is all-zero in this forward,
    # so (pos_emb[:S] + type_emb[0]) is a static additive bias.
    pos_type_bias = (pos_emb[:S, :] + type_emb[0:1, :]).astype(jnp.float32)

    # lane-dense padded classifier: zero weight columns, -1e9 bias on pads
    lab_mask = (jnp.arange(NUM_LABELS_PAD) < NUM_LABELS)
    cls_w_full = 0.02 * jax.random.normal(next(keys), (HIDDEN, NUM_LABELS_PAD))
    cls_w = (cls_w_full * lab_mask[None, :]).astype(jnp.bfloat16)
    cls_b = jnp.where(lab_mask, 0.0, NEG_INF)[None, :].astype(jnp.float32)

    return {
        "word_emb": w((VOCAB, HIDDEN)),                   # bf16 MXU operand
        "pos_type_bias": pos_type_bias,                   # [S, HIDDEN] f32
        "emb_ln_g": ones((1, HIDDEN)), "emb_ln_b": zeros((1, HIDDEN)),
        # per-layer weights stacked on a leading N_LAYERS axis, biases (1, n)
        "qkv_w": w((N_LAYERS, HIDDEN, 3 * HIDDEN)),
        "qkv_b": zeros((N_LAYERS, 1, 3 * HIDDEN)),
        "o_w": w((N_LAYERS, HIDDEN, HIDDEN)),
        "o_b": zeros((N_LAYERS, 1, HIDDEN)),
        "ln1_g": ones((N_LAYERS, 1, HIDDEN)), "ln1_b": zeros((N_LAYERS, 1, HIDDEN)),
        "i_w": w((N_LAYERS, HIDDEN, INTERMEDIATE)),
        "i_b": zeros((N_LAYERS, 1, INTERMEDIATE)),
        "f_w": w((N_LAYERS, INTERMEDIATE, HIDDEN)),
        "f_b": zeros((N_LAYERS, 1, HIDDEN)),
        "ln2_g": ones((N_LAYERS, 1, HIDDEN)), "ln2_b": zeros((N_LAYERS, 1, HIDDEN)),
        "cls_w": cls_w, "cls_b": cls_b,
    }


# ----------------- forward pass (== BertModel1.forward) -----------------
def bert_forward(params, input_id, mask, label):
    ids_2d = input_id.reshape(M, 1).astype(jnp.int32)
    mask_f = mask.astype(jnp.float32)                    # [B, S]
    labels_2d = label.reshape(M, 1).astype(jnp.int32)

    logits_pad, loss = bert_fused(params, ids_2d, mask_f, labels_2d)

    # return_dict=False -> (loss, logits); drop the padded classifier columns
    logits = logits_pad[:, :NUM_LABELS].reshape(B, S, NUM_LABELS)
    return loss[0, 0], logits


if __name__ == "__main__":
    key = jax.random.PRNGKey(0)
    pkey, ikey, lkey = jax.random.split(key, 3)

    params = init_params(pkey)
    input_id = jax.random.randint(ikey, (B, S), 0, VOCAB, dtype=jnp.int32)
    mask = jnp.ones((B, S), jnp.int32).at[1, -2:].set(0)   # pad last 2 of seq 1
    label = jax.random.randint(lkey, (B, S), 0, NUM_LABELS, dtype=jnp.int32)

    loss, logits = jax.jit(bert_forward)(params, input_id, mask, label)
    jax.block_until_ready((loss, logits))

    assert logits.shape == (B, S, NUM_LABELS)
    assert loss.shape == ()
    assert bool(jnp.isfinite(loss))
    print("KERNEL_OK")
</pallas_src>

<mosaic_0001>
module attributes {stable_mosaic.version = 11 : i64} {
  func.func @_bert_fwd_kernel(%arg0: memref<16x1xi32, #tpu.memory_space<vmem>>, %arg1: memref<2x8xf32, #tpu.memory_space<vmem>>, %arg2: memref<16x1xi32, #tpu.memory_space<vmem>>, %arg3: memref<100x32xbf16, #tpu.memory_space<vmem>>, %arg4: memref<8x32xf32, #tpu.memory_space<vmem>>, %arg5: memref<1x32xf32, #tpu.memory_space<vmem>>, %arg6: memref<1x32xf32, #tpu.memory_space<vmem>>, %arg7: memref<2x32x96xbf16, #tpu.memory_space<vmem>>, %arg8: memref<2x1x96xf32, #tpu.memory_space<vmem>>, %arg9: memref<2x32x32xbf16, #tpu.memory_space<vmem>>, %arg10: memref<2x1x32xf32, #tpu.memory_space<vmem>>, %arg11: memref<2x1x32xf32, #tpu.memory_space<vmem>>, %arg12: memref<2x1x32xf32, #tpu.memory_space<vmem>>, %arg13: memref<2x32x128xbf16, #tpu.memory_space<vmem>>, %arg14: memref<2x1x128xf32, #tpu.memory_space<vmem>>, %arg15: memref<2x128x32xbf16, #tpu.memory_space<vmem>>, %arg16: memref<2x1x32xf32, #tpu.memory_space<vmem>>, %arg17: memref<2x1x32xf32, #tpu.memory_space<vmem>>, %arg18: memref<2x1x32xf32, #tpu.memory_space<vmem>>, %arg19: memref<32x128xbf16, #tpu.memory_space<vmem>>, %arg20: memref<1x128xf32, #tpu.memory_space<vmem>>, %arg21: memref<16x128xf32, #tpu.memory_space<vmem>>, %arg22: memref<1x1xf32, #tpu.memory_space<vmem>>) attributes {dimension_semantics = [], scalar_prefetch = 0 : i64, scratch_operands = 0 : i64, tpu.core_type = #tpu.core_type<tc>} {
    %c0 = arith.constant 0 : index
    %c0_0 = arith.constant 0 : index
    %0 = vector.load %arg0[%c0, %c0_0] : memref<16x1xi32, #tpu.memory_space<vmem>>, vector<16x1xi32>
    %1 = tpu.iota {dimensions = array<i32: 1>} : vector<16x100xi32>
    %2 = vector.broadcast %0 : vector<16x1xi32> to vector<16x100xi32>
    %3 = arith.cmpi eq, %1, %2 : vector<16x100xi32>
    %4 = arith.extui %3 : vector<16x100xi1> to vector<16x100xi32>
    %5 = arith.sitofp %4 : vector<16x100xi32> to vector<16x100xf32>
    %6 = arith.truncf %5 : vector<16x100xf32> to vector<16x100xbf16>
    %c0_1 = arith.constant 0 : index
    %c0_2 = arith.constant 0 : index
    %7 = vector.load %arg3[%c0_1, %c0_2] : memref<100x32xbf16, #tpu.memory_space<vmem>>, vector<100x32xbf16>
    %cst = arith.constant dense<0.000000e+00> : vector<16x32xf32>
    %8 = tpu.matmul %6, %7, %cst {dimension_numbers = #tpu.dot_dimension_numbers<[1], [0], [0], [1], [0, 0, 1, 1], [], []>} : vector<16x100xbf16>, vector<100x32xbf16>, vector<16x32xf32> -> vector<16x32xf32>
    %c0_3 = arith.constant 0 : index
    %c0_4 = arith.constant 0 : index
    %9 = vector.load %arg4[%c0_3, %c0_4] : memref<8x32xf32, #tpu.memory_space<vmem>>, vector<8x32xf32>
    %10 = tpu.concatenate %9, %9 in 0 : vector<8x32xf32>, vector<8x32xf32> -> vector<16x32xf32>
    %11 = arith.addf %8, %10 : vector<16x32xf32>
    %c0_5 = arith.constant 0 : index
    %c0_6 = arith.constant 0 : index
    %12 = vector.load %arg5[%c0_5, %c0_6] : memref<1x32xf32, #tpu.memory_space<vmem>>, vector<1x32xf32>
    %c0_7 = arith.constant 0 : index
    %c0_8 = arith.constant 0 : index
    %13 = vector.load %arg6[%c0_7, %c0_8] : memref<1x32xf32, #tpu.memory_space<vmem>>, vector<1x32xf32>
    %cst_9 = arith.constant dense<0.000000e+00> : vector<16xf32>
    %14 = vector.multi_reduction <add>, %11, %cst_9 [1] : vector<16x32xf32> to vector<16xf32>
    %15 = vector.shape_cast %14 : vector<16xf32> to vector<16x1xf32>
    %cst_10 = arith.constant 3.200000e+01 : f32
    %16 = vector.broadcast %cst_10 : f32 to vector<16x1xf32>
    %17 = arith.divf %15, %16 : vector<16x1xf32>
    %18 = arith.mulf %11, %11 : vector<16x32xf32>
    %cst_11 = arith.constant dense<0.000000e+00> : vector<16xf32>
    %19 = vector.multi_reduction <add>, %18, %cst_11 [1] : vector<16x32xf32> to vector<16xf32>
    %20 = vector.shape_cast %19 : vector<16xf32> to vector<16x1xf32>
    %cst_12 = arith.constant 3.200000e+01 : f32
    %21 = vector.broadcast %cst_12 : f32 to vector<16x1xf32>
    %22 = arith.divf %20, %21 : vector<16x1xf32>
    %23 = arith.mulf %17, %17 : vector<16x1xf32>
    %24 = arith.subf %22, %23 : vector<16x1xf32>
    %cst_13 = arith.constant 0.000000e+00 : f32
    %25 = vector.broadcast %cst_13 : f32 to vector<16x1xf32>
    %26 = arith.maximumf %24, %25 : vector<16x1xf32>
    %27 = vector.broadcast %17 : vector<16x1xf32> to vector<16x32xf32>
    %28 = arith.subf %11, %27 : vector<16x32xf32>
    %cst_14 = arith.constant 9.99999996E-13 : f32
    %29 = vector.broadcast %cst_14 : f32 to vector<16x1xf32>
    %30 = arith.addf %26, %29 : vector<16x1xf32>
    %31 = math.rsqrt %30 : vector<16x1xf32>
    %32 = vector.broadcast %31 : vector<16x1xf32> to vector<16x32xf32>
    %33 = arith.mulf %28, %32 : vector<16x32xf32>
    %34 = vector.broadcast %12 : vector<1x32xf32> to vector<16x32xf32>
    %35 = arith.mulf %33, %34 : vector<16x32xf32>
    %36 = vector.broadcast %13 : vector<1x32xf32> to vector<16x32xf32>
    %37 = arith.addf %35, %36 : vector<16x32xf32>
    %c0_15 = arith.constant 0 : index
    %c0_16 = arith.constant 0 : index
    %38 = vector.load %arg1[%c0_15, %c0_16] : memref<2x8xf32, #tpu.memory_space<vmem>>, vector<2x8xf32>
    %cst_17 = arith.constant 1.000000e+00 : f32
    %39 = vector.broadcast %cst_17 : f32 to vector<2x8xf32>
    %40 = arith.subf %39, %38 : vector<2x8xf32>
    %cst_18 = arith.constant -1.000000e+09 : f32
    %41 = vector.broadcast %cst_18 : f32 to vector<2x8xf32>
    %42 = arith.mulf %40, %41 : vector<2x8xf32>
    %43 = vector.extract_strided_slice %42 {offsets = [0, 0], sizes = [1, 8], strides = [1, 1]} : vector<2x8xf32> to vector<1x8xf32>
    %44 = vector.shape_cast %43 : vector<1x8xf32> to vector<1x8xf32>
    %45 = vector.broadcast %44 : vector<1x8xf32> to vector<8x8xf32>
    %46 = vector.extract_strided_slice %42 {offsets = [0, 0], sizes = [1, 8], strides = [1, 1]} : vector<2x8xf32> to vector<1x8xf32>
    %47 = vector.shape_cast %46 : vector<1x8xf32> to vector<1x8xf32>
    %48 = vector.broadcast %47 : vector<1x8xf32> to vector<8x8xf32>
    %49 = vector.extract_strided_slice %42 {offsets = [1, 0], sizes = [1, 8], strides = [1, 1]} : vector<2x8xf32> to vector<1x8xf32>
    %50 = vector.shape_cast %49 : vector<1x8xf32> to vector<1x8xf32>
    %51 = vector.broadcast %50 : vector<1x8xf32> to vector<8x8xf32>
    %52 = vector.extract_strided_slice %42 {offsets = [1, 0], sizes = [1, 8], strides = [1, 1]} : vector<2x8xf32> to vector<1x8xf32>
    %53 = vector.shape_cast %52 : vector<1x8xf32> to vector<1x8xf32>
    %54 = vector.broadcast %53 : vector<1x8xf32> to vector<8x8xf32>
    %55 = tpu.concatenate %45, %48, %51, %54 in 0 : vector<8x8xf32>, vector<8x8xf32>, vector<8x8xf32>, vector<8x8xf32> -> vector<32x8xf32>
    %c0_19 = arith.constant 0 : index
    %c0_20 = arith.constant 0 : index
    %c0_21 = arith.constant 0 : index
    %56 = vector.load %arg7[%c0_19, %c0_20, %c0_21] : memref<2x32x96xbf16, #tpu.memory_space<vmem>>, vector<1x32x96xbf16>
    %57 = vector.shape_cast %56 : vector<1x32x96xbf16> to vector<32x96xbf16>
    %c0_22 = arith.constant 0 : index
    %c0_23 = arith.constant 0 : index
    %c0_24 = arith.constant 0 : index
    %58 = vector.load %arg9[%c0_22, %c0_23, %c0_24] : memref<2x32x32xbf16, #tpu.memory_space<vmem>>, vector<1x32x32xbf16>
    %59 = vector.shape_cast %58 : vector<1x32x32xbf16> to vector<32x32xbf16>
    %60 = arith.truncf %37 : vector<16x32xf32> to vector<16x32xbf16>
    %cst_25 = arith.constant dense<0.000000e+00> : vector<16x96xf32>
    %61 = tpu.matmul %60, %57, %cst_25 {dimension_numbers = #tpu.dot_dimension_numbers<[1], [0], [0], [1], [0, 0, 1, 1], [], []>} : vector<16x32xbf16>, vector<32x96xbf16>, vector<16x96xf32> -> vector<16x96xf32>
    %c0_26 = arith.constant 0 : index
    %c0_27 = arith.constant 0 : index
    %c0_28 = arith.constant 0 : index
    %62 = vector.load %arg8[%c0_26, %c0_27, %c0_28] : memref<2x1x96xf32, #tpu.memory_space<vmem>>, vector<1x1x96xf32>
    %63 = vector.shape_cast %62 : vector<1x1x96xf32> to vector<1x96xf32>
    %64 = vector.broadcast %63 : vector<1x96xf32> to vector<16x96xf32>
    %65 = arith.addf %61, %64 : vector<16x96xf32>
    %66 = vector.extract_strided_slice %65 {offsets = [0, 0], sizes = [16, 32], strides = [1, 1]} : vector<16x96xf32> to vector<16x32xf32>
    %cst_29 = arith.constant 2.500000e-01 : f32
    %67 = vector.broadcast %cst_29 : f32 to vector<16x32xf32>
    %68 = arith.mulf %66, %67 : vector<16x32xf32>
    %69 = vector.extract_strided_slice %65 {offsets = [0, 32], sizes = [16, 32], strides = [1, 1]} : vector<16x96xf32> to vector<16x32xf32>
    %70 = vector.extract_strided_slice %65 {offsets = [0, 64], sizes = [16, 32], strides = [1, 1]} : vector<16x96xf32> to vector<16x32xf32>
    %71 = vector.extract_strided_slice %68 {offsets = [0, 0], sizes = [8, 16], strides = [1, 1]} : vector<16x32xf32> to vector<8x16xf32>
    %72 = arith.truncf %71 : vector<8x16xf32> to vector<8x16xbf16>
    %73 = vector.extract_strided_slice %69 {offsets = [0, 0], sizes = [8, 16], strides = [1, 1]} : vector<16x32xf32> to vector<8x16xf32>
    %74 = arith.truncf %73 : vector<8x16xf32> to vector<8x16xbf16>
    %cst_30 = arith.constant dense<0.000000e+00> : vector<8x8xf32>
    %75 = tpu.matmul %72, %74, %cst_30 {dimension_numbers = #tpu.dot_dimension_numbers<[1], [1], [0], [0], [0, 0, 1, 0], [], []>} : vector<8x16xbf16>, vector<8x16xbf16>, vector<8x8xf32> -> vector<8x8xf32>
    %76 = vector.extract_strided_slice %68 {offsets = [0, 16], sizes = [8, 16], strides = [1, 1]} : vector<16x32xf32> to vector<8x16xf32>
    %77 = arith.truncf %76 : vector<8x16xf32> to vector<8x16xbf16>
    %78 = vector.extract_strided_slice %69 {offsets = [0, 16], sizes = [8, 16], strides = [1, 1]} : vector<16x32xf32> to vector<8x16xf32>
    %79 = arith.truncf %78 : vector<8x16xf32> to vector<8x16xbf16>
    %cst_31 = arith.constant dense<0.000000e+00> : vector<8x8xf32>
    %80 = tpu.matmul %77, %79, %cst_31 {dimension_numbers = #tpu.dot_dimension_numbers<[1], [1], [0], [0], [0, 0, 1, 0], [], []>} : vector<8x16xbf16>, vector<8x16xbf16>, vector<8x8xf32> -> vector<8x8xf32>
    %81 = vector.extract_strided_slice %68 {offsets = [8, 0], sizes = [8, 16], strides = [1, 1]} : vector<16x32xf32> to vector<8x16xf32>
    %82 = arith.truncf %81 : vector<8x16xf32> to vector<8x16xbf16>
    %83 = vector.extract_strided_slice %69 {offsets = [8, 0], sizes = [8, 16], strides = [1, 1]} : vector<16x32xf32> to vector<8x16xf32>
    %84 = arith.truncf %83 : vector<8x16xf32> to vector<8x16xbf16>
    %cst_32 = arith.constant dense<0.000000e+00> : vector<8x8xf32>
    %85 = tpu.matmul %82, %84, %cst_32 {dimension_numbers = #tpu.dot_dimension_numbers<[1], [1], [0], [0], [0, 0, 1, 0], [], []>} : vector<8x16xbf16>, vector<8x16xbf16>, vector<8x8xf32> -> vector<8x8xf32>
    %86 = vector.extract_strided_slice %68 {offsets = [8, 16], sizes = [8, 16], strides = [1, 1]} : vector<16x32xf32> to vector<8x16xf32>
    %87 = arith.truncf %86 : vector<8x16xf32> to vector<8x16xbf16>
    %88 = vector.extract_strided_slice %69 {offsets = [8, 16], sizes = [8, 16], strides = [1, 1]} : vector<16x32xf32> to vector<8x16xf32>
    %89 = arith.truncf %88 : vector<8x16xf32> to vector<8x16xbf16>
    %cst_33 = arith.constant dense<0.000000e+00> : vector<8x8xf32>
    %90 = tpu.matmul %87, %89, %cst_33 {dimension_numbers = #tpu.dot_dimension_numbers<[1], [1], [0], [0], [0, 0, 1, 0], [], []>} : vector<8x16xbf16>, vector<8x16xbf16>, vector<8x8xf32> -> vector<8x8xf32>
    %91 = tpu.concatenate %75, %80, %85, %90 in 0 : vector<8x8xf32>, vector<8x8xf32>, vector<8x8xf32>, vector<8x8xf32> -> vector<32x8xf32>
    %92 = arith.addf %91, %55 : vector<32x8xf32>
    %cst_34 = arith.constant dense<0xFF800000> : vector<32xf32>
    %93 = vector.multi_reduction <maximumf>, %92, %cst_34 [1] : vector<32x8xf32> to vector<32xf32>
    %94 = vector.shape_cast %93 : vector<32xf32> to vector<32x1xf32>
    %95 = vector.broadcast %94 : vector<32x1xf32> to vector<32x8xf32>
    %96 = arith.subf %92, %95 : vector<32x8xf32>
    %97 = math.exp %96 : vector<32x8xf32>
    %cst_35 = arith.constant dense<0.000000e+00> : vector<32xf32>
    %98 = vector.multi_reduction <add>, %97, %cst_35 [1] : vector<32x8xf32> to vector<32xf32>
    %99 = vector.shape_cast %98 : vector<32xf32> to vector<32x1xf32>
    %100 = tpu.reciprocal %99 {approx = true} : vector<32x1xf32> -> vector<32x1xf32>
    %101 = vector.broadcast %100 : vector<32x1xf32> to vector<32x8xf32>
    %102 = arith.mulf %97, %101 : vector<32x8xf32>
    %103 = vector.extract_strided_slice %102 {offsets = [0, 0], sizes = [8, 8], strides = [1, 1]} : vector<32x8xf32> to vector<8x8xf32>
    %104 = arith.truncf %103 : vector<8x8xf32> to vector<8x8xbf16>
    %105 = vector.extract_strided_slice %70 {offsets = [0, 0], sizes = [8, 16], strides = [1, 1]} : vector<16x32xf32> to vector<8x16xf32>
    %106 = arith.truncf %105 : vector<8x16xf32> to vector<8x16xbf16>
    %cst_36 = arith.constant dense<0.000000e+00> : vector<8x16xf32>
    %107 = tpu.matmul %104, %106, %cst_36 {dimension_numbers = #tpu.dot_dimension_numbers<[1], [0], [0], [1], [0, 0, 1, 1], [], []>} : vector<8x8xbf16>, vector<8x16xbf16>, vector<8x16xf32> -> vector<8x16xf32>
    %108 = arith.truncf %107 : vector<8x16xf32> to vector<8x16xbf16>
    %109 = vector.extract_strided_slice %59 {offsets = [0, 0], sizes = [16, 32], strides = [1, 1]} : vector<32x32xbf16> to vector<16x32xbf16>
    %cst_37 = arith.constant dense<0.000000e+00> : vector<8x32xf32>
    %110 = tpu.matmul %108, %109, %cst_37 {dimension_numbers = #tpu.dot_dimension_numbers<[1], [0], [0], [1], [0, 0, 1, 1], [], []>} : vector<8x16xbf16>, vector<16x32xbf16>, vector<8x32xf32> -> vector<8x32xf32>
    %111 = vector.extract_strided_slice %102 {offsets = [8, 0], sizes = [8, 8], strides = [1, 1]} : vector<32x8xf32> to vector<8x8xf32>
    %112 = arith.truncf %111 : vector<8x8xf32> to vector<8x8xbf16>
    %113 = vector.extract_strided_slice %70 {offsets = [0, 16], sizes = [8, 16], strides = [1, 1]} : vector<16x32xf32> to vector<8x16xf32>
    %114 = arith.truncf %113 : vector<8x16xf32> to vector<8x16xbf16>
    %cst_38 = arith.constant dense<0.000000e+00> : vector<8x16xf32>
    %115 = tpu.matmul %112, %114, %cst_38 {dimension_numbers = #tpu.dot_dimension_numbers<[1], [0], [0], [1], [0, 0, 1, 1], [], []>} : vector<8x8xbf16>, vector<8x16xbf16>, vector<8x16xf32> -> vector<8x16xf32>
    %116 = arith.truncf %115 : vector<8x16xf32> to vector<8x16xbf16>
    %117 = vector.extract_strided_slice %59 {offsets = [16, 0], sizes = [16, 32], strides = [1, 1]} : vector<32x32xbf16> to vector<16x32xbf16>
    %cst_39 = arith.constant dense<0.000000e+00> : vector<8x32xf32>
    %118 = tpu.matmul %116, %117, %cst_39 {dimension_numbers = #tpu.dot_dimension_numbers<[1], [0], [0], [1], [0, 0, 1, 1], [], []>} : vector<8x16xbf16>, vector<16x32xbf16>, vector<8x32xf32> -> vector<8x32xf32>
    %119 = arith.addf %110, %118 : vector<8x32xf32>
    %120 = vector.extract_strided_slice %102 {offsets = [16, 0], sizes = [8, 8], strides = [1, 1]} : vector<32x8xf32> to vector<8x8xf32>
    %121 = arith.truncf %120 : vector<8x8xf32> to vector<8x8xbf16>
    %122 = vector.extract_strided_slice %70 {offsets = [8, 0], sizes = [8, 16], strides = [1, 1]} : vector<16x32xf32> to vector<8x16xf32>
    %123 = arith.truncf %122 : vector<8x16xf32> to vector<8x16xbf16>
    %cst_40 = arith.constant dense<0.000000e+00> : vector<8x16xf32>
    %124 = tpu.matmul %121, %123, %cst_40 {dimension_numbers = #tpu.dot_dimension_numbers<[1], [0], [0], [1], [0, 0, 1, 1], [], []>} : vector<8x8xbf16>, vector<8x16xbf16>, vector<8x16xf32> -> vector<8x16xf32>
    %125 = arith.truncf %124 : vector<8x16xf32> to vector<8x16xbf16>
    %126 = vector.extract_strided_slice %59 {offsets = [0, 0], sizes = [16, 32], strides = [1, 1]} : vector<32x32xbf16> to vector<16x32xbf16>
    %cst_41 = arith.constant dense<0.000000e+00> : vector<8x32xf32>
    %127 = tpu.matmul %125, %126, %cst_41 {dimension_numbers = #tpu.dot_dimension_numbers<[1], [0], [0], [1], [0, 0, 1, 1], [], []>} : vector<8x16xbf16>, vector<16x32xbf16>, vector<8x32xf32> -> vector<8x32xf32>
    %128 = vector.extract_strided_slice %102 {offsets = [24, 0], sizes = [8, 8], strides = [1, 1]} : vector<32x8xf32> to vector<8x8xf32>
    %129 = arith.truncf %128 : vector<8x8xf32> to vector<8x8xbf16>
    %130 = vector.extract_strided_slice %70 {offsets = [8, 16], sizes = [8, 16], strides = [1, 1]} : vector<16x32xf32> to vector<8x16xf32>
    %131 = arith.truncf %130 : vector<8x16xf32> to vector<8x16xbf16>
    %cst_42 = arith.constant dense<0.000000e+00> : vector<8x16xf32>
    %132 = tpu.matmul %129, %131, %cst_42 {dimension_numbers = #tpu.dot_dimension_numbers<[1], [0], [0], [1], [0, 0, 1, 1], [], []>} : vector<8x8xbf16>, vector<8x16xbf16>, vector<8x16xf32> -> vector<8x16xf32>
    %133 = arith.truncf %132 : vector<8x16xf32> to vector<8x16xbf16>
    %134 = vector.extract_strided_slice %59 {offsets = [16, 0], sizes = [16, 32], strides = [1, 1]} : vector<32x32xbf16> to vector<16x32xbf16>
    %cst_43 = arith.constant dense<0.000000e+00> : vector<8x32xf32>
    %135 = tpu.matmul %133, %134, %cst_43 {dimension_numbers = #tpu.dot_dimension_numbers<[1], [0], [0], [1], [0, 0, 1, 1], [], []>} : vector<8x16xbf16>, vector<16x32xbf16>, vector<8x32xf32> -> vector<8x32xf32>
    %136 = arith.addf %127, %135 : vector<8x32xf32>
    %137 = tpu.concatenate %119, %136 in 0 : vector<8x32xf32>, vector<8x32xf32> -> vector<16x32xf32>
    %c0_44 = arith.constant 0 : index
    %c0_45 = arith.constant 0 : index
    %c0_46 = arith.constant 0 : index
    %138 = vector.load %arg10[%c0_44, %c0_45, %c0_46] : memref<2x1x32xf32, #tpu.memory_space<vmem>>, vector<1x1x32xf32>
    %139 = vector.shape_cast %138 : vector<1x1x32xf32> to vector<1x32xf32>
    %140 = vector.broadcast %139 : vector<1x32xf32> to vector<16x32xf32>
    %141 = arith.addf %137, %140 : vector<16x32xf32>
    %142 = arith.addf %141, %37 : vector<16x32xf32>
    %c0_47 = arith.constant 0 : index
    %c0_48 = arith.constant 0 : index
    %c0_49 = arith.constant 0 : index
    %143 = vector.load %arg11[%c0_47, %c0_48, %c0_49] : memref<2x1x32xf32, #tpu.memory_space<vmem>>, vector<1x1x32xf32>
    %144 = vector.shape_cast %143 : vector<1x1x32xf32> to vector<1x32xf32>
    %c0_50 = arith.constant 0 : index
    %c0_51 = arith.constant 0 : index
    %c0_52 = arith.constant 0 : index
    %145 = vector.load %arg12[%c0_50, %c0_51, %c0_52] : memref<2x1x32xf32, #tpu.memory_space<vmem>>, vector<1x1x32xf32>
    %146 = vector.shape_cast %145 : vector<1x1x32xf32> to vector<1x32xf32>
    %cst_53 = arith.constant dense<0.000000e+00> : vector<16xf32>
    %147 = vector.multi_reduction <add>, %142, %cst_53 [1] : vector<16x32xf32> to vector<16xf32>
    %148 = vector.shape_cast %147 : vector<16xf32> to vector<16x1xf32>
    %cst_54 = arith.constant 3.200000e+01 : f32
    %149 = vector.broadcast %cst_54 : f32 to vector<16x1xf32>
    %150 = arith.divf %148, %149 : vector<16x1xf32>
    %151 = arith.mulf %142, %142 : vector<16x32xf32>
    %cst_55 = arith.constant dense<0.000000e+00> : vector<16xf32>
    %152 = vector.multi_reduction <add>, %151, %cst_55 [1] : vector<16x32xf32> to vector<16xf32>
    %153 = vector.shape_cast %152 : vector<16xf32> to vector<16x1xf32>
    %cst_56 = arith.constant 3.200000e+01 : f32
    %154 = vector.broadcast %cst_56 : f32 to vector<16x1xf32>
    %155 = arith.divf %153, %154 : vector<16x1xf32>
    %156 = arith.mulf %150, %150 : vector<16x1xf32>
    %157 = arith.subf %155, %156 : vector<16x1xf32>
    %cst_57 = arith.constant 0.000000e+00 : f32
    %158 = vector.broadcast %cst_57 : f32 to vector<16x1xf32>
    %159 = arith.maximumf %157, %158 : vector<16x1xf32>
    %160 = vector.broadcast %150 : vector<16x1xf32> to vector<16x32xf32>
    %161 = arith.subf %142, %160 : vector<16x32xf32>
    %cst_58 = arith.constant 9.99999996E-13 : f32
    %162 = vector.broadcast %cst_58 : f32 to vector<16x1xf32>
    %163 = arith.addf %159, %162 : vector<16x1xf32>
    %164 = math.rsqrt %163 : vector<16x1xf32>
    %165 = vector.broadcast %164 : vector<16x1xf32> to vector<16x32xf32>
    %166 = arith.mulf %161, %165 : vector<16x32xf32>
    %167 = vector.broadcast %144 : vector<1x32xf32> to vector<16x32xf32>
    %168 = arith.mulf %166, %167 : vector<16x32xf32>
    %169 = vector.broadcast %146 : vector<1x32xf32> to vector<16x32xf32>
    %170 = arith.addf %168, %169 : vector<16x32xf32>
    %171 = arith.truncf %170 : vector<16x32xf32> to vector<16x32xbf16>
    %c0_59 = arith.constant 0 : index
    %c0_60 = arith.constant 0 : index
    %c0_61 = arith.constant 0 : index
    %172 = vector.load %arg13[%c0_59, %c0_60, %c0_61] : memref<2x32x128xbf16, #tpu.memory_space<vmem>>, vector<1x32x128xbf16>
    %173 = vector.shape_cast %172 : vector<1x32x128xbf16> to vector<32x128xbf16>
    %cst_62 = arith.constant dense<0.000000e+00> : vector<16x128xf32>
    %174 = tpu.matmul %171, %173, %cst_62 {dimension_numbers = #tpu.dot_dimension_numbers<[1], [0], [0], [1], [0, 0, 1, 1], [], []>} : vector<16x32xbf16>, vector<32x128xbf16>, vector<16x128xf32> -> vector<16x128xf32>
    %c0_63 = arith.constant 0 : index
    %c0_64 = arith.constant 0 : index
    %c0_65 = arith.constant 0 : index
    %175 = vector.load %arg14[%c0_63, %c0_64, %c0_65] : memref<2x1x128xf32, #tpu.memory_space<vmem>>, vector<1x1x128xf32>
    %176 = vector.shape_cast %175 : vector<1x1x128xf32> to vector<1x128xf32>
    %177 = vector.broadcast %176 : vector<1x128xf32> to vector<16x128xf32>
    %178 = arith.addf %174, %177 : vector<16x128xf32>
    %179 = arith.mulf %178, %178 : vector<16x128xf32>
    %180 = arith.mulf %178, %179 : vector<16x128xf32>
    %cst_66 = arith.constant 4.471500e-02 : f32
    %181 = vector.broadcast %cst_66 : f32 to vector<16x128xf32>
    %182 = arith.mulf %181, %180 : vector<16x128xf32>
    %183 = arith.addf %178, %182 : vector<16x128xf32>
    %cst_67 = arith.constant 0.797884583 : f32
    %184 = vector.broadcast %cst_67 : f32 to vector<16x128xf32>
    %185 = arith.mulf %184, %183 : vector<16x128xf32>
    %186 = math.tanh %185 : vector<16x128xf32>
    %cst_68 = arith.constant 1.000000e+00 : f32
    %187 = vector.broadcast %cst_68 : f32 to vector<16x128xf32>
    %188 = arith.addf %187, %186 : vector<16x128xf32>
    %cst_69 = arith.constant 5.000000e-01 : f32
    %189 = vector.broadcast %cst_69 : f32 to vector<16x128xf32>
    %190 = arith.mulf %189, %188 : vector<16x128xf32>
    %191 = arith.mulf %178, %190 : vector<16x128xf32>
    %192 = arith.truncf %191 : vector<16x128xf32> to vector<16x128xbf16>
    %c0_70 = arith.constant 0 : index
    %c0_71 = arith.constant 0 : index
    %c0_72 = arith.constant 0 : index
    %193 = vector.load %arg15[%c0_70, %c0_71, %c0_72] : memref<2x128x32xbf16, #tpu.memory_space<vmem>>, vector<1x128x32xbf16>
    %194 = vector.shape_cast %193 : vector<1x128x32xbf16> to vector<128x32xbf16>
    %cst_73 = arith.constant dense<0.000000e+00> : vector<16x32xf32>
    %195 = tpu.matmul %192, %194, %cst_73 {dimension_numbers = #tpu.dot_dimension_numbers<[1], [0], [0], [1], [0, 0, 1, 1], [], []>} : vector<16x128xbf16>, vector<128x32xbf16>, vector<16x32xf32> -> vector<16x32xf32>
    %c0_74 = arith.constant 0 : index
    %c0_75 = arith.constant 0 : index
    %c0_76 = arith.constant 0 : index
    %196 = vector.load %arg16[%c0_74, %c0_75, %c0_76] : memref<2x1x32xf32, #tpu.memory_space<vmem>>, vector<1x1x32xf32>
    %197 = vector.shape_cast %196 : vector<1x1x32xf32> to vector<1x32xf32>
    %198 = vector.broadcast %197 : vector<1x32xf32> to vector<16x32xf32>
    %199 = arith.addf %195, %198 : vector<16x32xf32>
    %200 = arith.addf %199, %170 : vector<16x32xf32>
    %c0_77 = arith.constant 0 : index
    %c0_78 = arith.constant 0 : index
    %c0_79 = arith.constant 0 : index
    %201 = vector.load %arg17[%c0_77, %c0_78, %c0_79] : memref<2x1x32xf32, #tpu.memory_space<vmem>>, vector<1x1x32xf32>
    %202 = vector.shape_cast %201 : vector<1x1x32xf32> to vector<1x32xf32>
    %c0_80 = arith.constant 0 : index
    %c0_81 = arith.constant 0 : index
    %c0_82 = arith.constant 0 : index
    %203 = vector.load %arg18[%c0_80, %c0_81, %c0_82] : memref<2x1x32xf32, #tpu.memory_space<vmem>>, vector<1x1x32xf32>
    %204 = vector.shape_cast %203 : vector<1x1x32xf32> to vector<1x32xf32>
    %cst_83 = arith.constant dense<0.000000e+00> : vector<16xf32>
    %205 = vector.multi_reduction <add>, %200, %cst_83 [1] : vector<16x32xf32> to vector<16xf32>
    %206 = vector.shape_cast %205 : vector<16xf32> to vector<16x1xf32>
    %cst_84 = arith.constant 3.200000e+01 : f32
    %207 = vector.broadcast %cst_84 : f32 to vector<16x1xf32>
    %208 = arith.divf %206, %207 : vector<16x1xf32>
    %209 = arith.mulf %200, %200 : vector<16x32xf32>
    %cst_85 = arith.constant dense<0.000000e+00> : vector<16xf32>
    %210 = vector.multi_reduction <add>, %209, %cst_85 [1] : vector<16x32xf32> to vector<16xf32>
    %211 = vector.shape_cast %210 : vector<16xf32> to vector<16x1xf32>
    %cst_86 = arith.constant 3.200000e+01 : f32
    %212 = vector.broadcast %cst_86 : f32 to vector<16x1xf32>
    %213 = arith.divf %211, %212 : vector<16x1xf32>
    %214 = arith.mulf %208, %208 : vector<16x1xf32>
    %215 = arith.subf %213, %214 : vector<16x1xf32>
    %cst_87 = arith.constant 0.000000e+00 : f32
    %216 = vector.broadcast %cst_87 : f32 to vector<16x1xf32>
    %217 = arith.maximumf %215, %216 : vector<16x1xf32>
    %218 = vector.broadcast %208 : vector<16x1xf32> to vector<16x32xf32>
    %219 = arith.subf %200, %218 : vector<16x32xf32>
    %cst_88 = arith.constant 9.99999996E-13 : f32
    %220 = vector.broadcast %cst_88 : f32 to vector<16x1xf32>
    %221 = arith.addf %217, %220 : vector<16x1xf32>
    %222 = math.rsqrt %221 : vector<16x1xf32>
    %223 = vector.broadcast %222 : vector<16x1xf32> to vector<16x32xf32>
    %224 = arith.mulf %219, %223 : vector<16x32xf32>
    %225 = vector.broadcast %202 : vector<1x32xf32> to vector<16x32xf32>
    %226 = arith.mulf %224, %225 : vector<16x32xf32>
    %227 = vector.broadcast %204 : vector<1x32xf32> to vector<16x32xf32>
    %228 = arith.addf %226, %227 : vector<16x32xf32>
    %c1 = arith.constant 1 : index
    %c0_89 = arith.constant 0 : index
    %c0_90 = arith.constant 0 : index
    %229 = vector.load %arg7[%c1, %c0_89, %c0_90] : memref<2x32x96xbf16, #tpu.memory_space<vmem>>, vector<1x32x96xbf16>
    %230 = vector.shape_cast %229 : vector<1x32x96xbf16> to vector<32x96xbf16>
    %c1_91 = arith.constant 1 : index
    %c0_92 = arith.constant 0 : index
    %c0_93 = arith.constant 0 : index
    %231 = vector.load %arg9[%c1_91, %c0_92, %c0_93] : memref<2x32x32xbf16, #tpu.memory_space<vmem>>, vector<1x32x32xbf16>
    %232 = vector.shape_cast %231 : vector<1x32x32xbf16> to vector<32x32xbf16>
    %233 = arith.truncf %228 : vector<16x32xf32> to vector<16x32xbf16>
    %cst_94 = arith.constant dense<0.000000e+00> : vector<16x96xf32>
    %234 = tpu.matmul %233, %230, %cst_94 {dimension_numbers = #tpu.dot_dimension_numbers<[1], [0], [0], [1], [0, 0, 1, 1], [], []>} : vector<16x32xbf16>, vector<32x96xbf16>, vector<16x96xf32> -> vector<16x96xf32>
    %c1_95 = arith.constant 1 : index
    %c0_96 = arith.constant 0 : index
    %c0_97 = arith.constant 0 : index
    %235 = vector.load %arg8[%c1_95, %c0_96, %c0_97] : memref<2x1x96xf32, #tpu.memory_space<vmem>>, vector<1x1x96xf32>
    %236 = vector.shape_cast %235 : vector<1x1x96xf32> to vector<1x96xf32>
    %237 = vector.broadcast %236 : vector<1x96xf32> to vector<16x96xf32>
    %238 = arith.addf %234, %237 : vector<16x96xf32>
    %239 = vector.extract_strided_slice %238 {offsets = [0, 0], sizes = [16, 32], strides = [1, 1]} : vector<16x96xf32> to vector<16x32xf32>
    %cst_98 = arith.constant 2.500000e-01 : f32
    %240 = vector.broadcast %cst_98 : f32 to vector<16x32xf32>
    %241 = arith.mulf %239, %240 : vector<16x32xf32>
    %242 = vector.extract_strided_slice %238 {offsets = [0, 32], sizes = [16, 32], strides = [1, 1]} : vector<16x96xf32> to vector<16x32xf32>
    %243 = vector.extract_strided_slice %238 {offsets = [0, 64], sizes = [16, 32], strides = [1, 1]} : vector<16x96xf32> to vector<16x32xf32>
    %244 = vector.extract_strided_slice %241 {offsets = [0, 0], sizes = [8, 16], strides = [1, 1]} : vector<16x32xf32> to vector<8x16xf32>
    %245 = arith.truncf %244 : vector<8x16xf32> to vector<8x16xbf16>
    %246 = vector.extract_strided_slice %242 {offsets = [0, 0], sizes = [8, 16], strides = [1, 1]} : vector<16x32xf32> to vector<8x16xf32>
    %247 = arith.truncf %246 : vector<8x16xf32> to vector<8x16xbf16>
    %cst_99 = arith.constant dense<0.000000e+00> : vector<8x8xf32>
    %248 = tpu.matmul %245, %247, %cst_99 {dimension_numbers = #tpu.dot_dimension_numbers<[1], [1], [0], [0], [0, 0, 1, 0], [], []>} : vector<8x16xbf16>, vector<8x16xbf16>, vector<8x8xf32> -> vector<8x8xf32>
    %249 = vector.extract_strided_slice %241 {offsets = [0, 16], sizes = [8, 16], strides = [1, 1]} : vector<16x32xf32> to vector<8x16xf32>
    %250 = arith.truncf %249 : vector<8x16xf32> to vector<8x16xbf16>
    %251 = vector.extract_strided_slice %242 {offsets = [0, 16], sizes = [8, 16], strides = [1, 1]} : vector<16x32xf32> to vector<8x16xf32>
    %252 = arith.truncf %251 : vector<8x16xf32> to vector<8x16xbf16>
    %cst_100 = arith.constant dense<0.000000e+00> : vector<8x8xf32>
    %253 = tpu.matmul %250, %252, %cst_100 {dimension_numbers = #tpu.dot_dimension_numbers<[1], [1], [0], [0], [0, 0, 1, 0], [], []>} : vector<8x16xbf16>, vector<8x16xbf16>, vector<8x8xf32> -> vector<8x8xf32>
    %254 = vector.extract_strided_slice %241 {offsets = [8, 0], sizes = [8, 16], strides = [1, 1]} : vector<16x32xf32> to vector<8x16xf32>
    %255 = arith.truncf %254 : vector<8x16xf32> to vector<8x16xbf16>
    %256 = vector.extract_strided_slice %242 {offsets = [8, 0], sizes = [8, 16], strides = [1, 1]} : vector<16x32xf32> to vector<8x16xf32>
    %257 = arith.truncf %256 : vector<8x16xf32> to vector<8x16xbf16>
    %cst_101 = arith.constant dense<0.000000e+00> : vector<8x8xf32>
    %258 = tpu.matmul %255, %257, %cst_101 {dimension_numbers = #tpu.dot_dimension_numbers<[1], [1], [0], [0], [0, 0, 1, 0], [], []>} : vector<8x16xbf16>, vector<8x16xbf16>, vector<8x8xf32> -> vector<8x8xf32>
    %259 = vector.extract_strided_slice %241 {offsets = [8, 16], sizes = [8, 16], strides = [1, 1]} : vector<16x32xf32> to vector<8x16xf32>
    %260 = arith.truncf %259 : vector<8x16xf32> to vector<8x16xbf16>
    %261 = vector.extract_strided_slice %242 {offsets = [8, 16], sizes = [8, 16], strides = [1, 1]} : vector<16x32xf32> to vector<8x16xf32>
    %262 = arith.truncf %261 : vector<8x16xf32> to vector<8x16xbf16>
    %cst_102 = arith.constant dense<0.000000e+00> : vector<8x8xf32>
    %263 = tpu.matmul %260, %262, %cst_102 {dimension_numbers = #tpu.dot_dimension_numbers<[1], [1], [0], [0], [0, 0, 1, 0], [], []>} : vector<8x16xbf16>, vector<8x16xbf16>, vector<8x8xf32> -> vector<8x8xf32>
    %264 = tpu.concatenate %248, %253, %258, %263 in 0 : vector<8x8xf32>, vector<8x8xf32>, vector<8x8xf32>, vector<8x8xf32> -> vector<32x8xf32>
    %265 = arith.addf %264, %55 : vector<32x8xf32>
    %cst_103 = arith.constant dense<0xFF800000> : vector<32xf32>
    %266 = vector.multi_reduction <maximumf>, %265, %cst_103 [1] : vector<32x8xf32> to vector<32xf32>
    %267 = vector.shape_cast %266 : vector<32xf32> to vector<32x1xf32>
    %268 = vector.broadcast %267 : vector<32x1xf32> to vector<32x8xf32>
    %269 = arith.subf %265, %268 : vector<32x8xf32>
    %270 = math.exp %269 : vector<32x8xf32>
    %cst_104 = arith.constant dense<0.000000e+00> : vector<32xf32>
    %271 = vector.multi_reduction <add>, %270, %cst_104 [1] : vector<32x8xf32> to vector<32xf32>
    %272 = vector.shape_cast %271 : vector<32xf32> to vector<32x1xf32>
    %273 = tpu.reciprocal %272 {approx = true} : vector<32x1xf32> -> vector<32x1xf32>
    %274 = vector.broadcast %273 : vector<32x1xf32> to vector<32x8xf32>
    %275 = arith.mulf %270, %274 : vector<32x8xf32>
    %276 = vector.extract_strided_slice %275 {offsets = [0, 0], sizes = [8, 8], strides = [1, 1]} : vector<32x8xf32> to vector<8x8xf32>
    %277 = arith.truncf %276 : vector<8x8xf32> to vector<8x8xbf16>
    %278 = vector.extract_strided_slice %243 {offsets = [0, 0], sizes = [8, 16], strides = [1, 1]} : vector<16x32xf32> to vector<8x16xf32>
    %279 = arith.truncf %278 : vector<8x16xf32> to vector<8x16xbf16>
    %cst_105 = arith.constant dense<0.000000e+00> : vector<8x16xf32>
    %280 = tpu.matmul %277, %279, %cst_105 {dimension_numbers = #tpu.dot_dimension_numbers<[1], [0], [0], [1], [0, 0, 1, 1], [], []>} : vector<8x8xbf16>, vector<8x16xbf16>, vector<8x16xf32> -> vector<8x16xf32>
    %281 = arith.truncf %280 : vector<8x16xf32> to vector<8x16xbf16>
    %282 = vector.extract_strided_slice %232 {offsets = [0, 0], sizes = [16, 32], strides = [1, 1]} : vector<32x32xbf16> to vector<16x32xbf16>
    %cst_106 = arith.constant dense<0.000000e+00> : vector<8x32xf32>
    %283 = tpu.matmul %281, %282, %cst_106 {dimension_numbers = #tpu.dot_dimension_numbers<[1], [0], [0], [1], [0, 0, 1, 1], [], []>} : vector<8x16xbf16>, vector<16x32xbf16>, vector<8x32xf32> -> vector<8x32xf32>
    %284 = vector.extract_strided_slice %275 {offsets = [8, 0], sizes = [8, 8], strides = [1, 1]} : vector<32x8xf32> to vector<8x8xf32>
    %285 = arith.truncf %284 : vector<8x8xf32> to vector<8x8xbf16>
    %286 = vector.extract_strided_slice %243 {offsets = [0, 16], sizes = [8, 16], strides = [1, 1]} : vector<16x32xf32> to vector<8x16xf32>
    %287 = arith.truncf %286 : vector<8x16xf32> to vector<8x16xbf16>
    %cst_107 = arith.constant dense<0.000000e+00> : vector<8x16xf32>
    %288 = tpu.matmul %285, %287, %cst_107 {dimension_numbers = #tpu.dot_dimension_numbers<[1], [0], [0], [1], [0, 0, 1, 1], [], []>} : vector<8x8xbf16>, vector<8x16xbf16>, vector<8x16xf32> -> vector<8x16xf32>
    %289 = arith.truncf %288 : vector<8x16xf32> to vector<8x16xbf16>
    %290 = vector.extract_strided_slice %232 {offsets = [16, 0], sizes = [16, 32], strides = [1, 1]} : vector<32x32xbf16> to vector<16x32xbf16>
    %cst_108 = arith.constant dense<0.000000e+00> : vector<8x32xf32>
    %291 = tpu.matmul %289, %290, %cst_108 {dimension_numbers = #tpu.dot_dimension_numbers<[1], [0], [0], [1], [0, 0, 1, 1], [], []>} : vector<8x16xbf16>, vector<16x32xbf16>, vector<8x32xf32> -> vector<8x32xf32>
    %292 = arith.addf %283, %291 : vector<8x32xf32>
    %293 = vector.extract_strided_slice %275 {offsets = [16, 0], sizes = [8, 8], strides = [1, 1]} : vector<32x8xf32> to vector<8x8xf32>
    %294 = arith.truncf %293 : vector<8x8xf32> to vector<8x8xbf16>
    %295 = vector.extract_strided_slice %243 {offsets = [8, 0], sizes = [8, 16], strides = [1, 1]} : vector<16x32xf32> to vector<8x16xf32>
    %296 = arith.truncf %295 : vector<8x16xf32> to vector<8x16xbf16>
    %cst_109 = arith.constant dense<0.000000e+00> : vector<8x16xf32>
    %297 = tpu.matmul %294, %296, %cst_109 {dimension_numbers = #tpu.dot_dimension_numbers<[1], [0], [0], [1], [0, 0, 1, 1], [], []>} : vector<8x8xbf16>, vector<8x16xbf16>, vector<8x16xf32> -> vector<8x16xf32>
    %298 = arith.truncf %297 : vector<8x16xf32> to vector<8x16xbf16>
    %299 = vector.extract_strided_slice %232 {offsets = [0, 0], sizes = [16, 32], strides = [1, 1]} : vector<32x32xbf16> to vector<16x32xbf16>
    %cst_110 = arith.constant dense<0.000000e+00> : vector<8x32xf32>
    %300 = tpu.matmul %298, %299, %cst_110 {dimension_numbers = #tpu.dot_dimension_numbers<[1], [0], [0], [1], [0, 0, 1, 1], [], []>} : vector<8x16xbf16>, vector<16x32xbf16>, vector<8x32xf32> -> vector<8x32xf32>
    %301 = vector.extract_strided_slice %275 {offsets = [24, 0], sizes = [8, 8], strides = [1, 1]} : vector<32x8xf32> to vector<8x8xf32>
    %302 = arith.truncf %301 : vector<8x8xf32> to vector<8x8xbf16>
    %303 = vector.extract_strided_slice %243 {offsets = [8, 16], sizes = [8, 16], strides = [1, 1]} : vector<16x32xf32> to vector<8x16xf32>
    %304 = arith.truncf %303 : vector<8x16xf32> to vector<8x16xbf16>
    %cst_111 = arith.constant dense<0.000000e+00> : vector<8x16xf32>
    %305 = tpu.matmul %302, %304, %cst_111 {dimension_numbers = #tpu.dot_dimension_numbers<[1], [0], [0], [1], [0, 0, 1, 1], [], []>} : vector<8x8xbf16>, vector<8x16xbf16>, vector<8x16xf32> -> vector<8x16xf32>
    %306 = arith.truncf %305 : vector<8x16xf32> to vector<8x16xbf16>
    %307 = vector.extract_strided_slice %232 {offsets = [16, 0], sizes = [16, 32], strides = [1, 1]} : vector<32x32xbf16> to vector<16x32xbf16>
    %cst_112 = arith.constant dense<0.000000e+00> : vector<8x32xf32>
    %308 = tpu.matmul %306, %307, %cst_112 {dimension_numbers = #tpu.dot_dimension_numbers<[1], [0], [0], [1], [0, 0, 1, 1], [], []>} : vector<8x16xbf16>, vector<16x32xbf16>, vector<8x32xf32> -> vector<8x32xf32>
    %309 = arith.addf %300, %308 : vector<8x32xf32>
    %310 = tpu.concatenate %292, %309 in 0 : vector<8x32xf32>, vector<8x32xf32> -> vector<16x32xf32>
    %c1_113 = arith.constant 1 : index
    %c0_114 = arith.constant 0 : index
    %c0_115 = arith.constant 0 : index
    %311 = vector.load %arg10[%c1_113, %c0_114, %c0_115] : memref<2x1x32xf32, #tpu.memory_space<vmem>>, vector<1x1x32xf32>
    %312 = vector.shape_cast %311 : vector<1x1x32xf32> to vector<1x32xf32>
    %313 = vector.broadcast %312 : vector<1x32xf32> to vector<16x32xf32>
    %314 = arith.addf %310, %313 : vector<16x32xf32>
    %315 = arith.addf %314, %228 : vector<16x32xf32>
    %c1_116 = arith.constant 1 : index
    %c0_117 = arith.constant 0 : index
    %c0_118 = arith.constant 0 : index
    %316 = vector.load %arg11[%c1_116, %c0_117, %c0_118] : memref<2x1x32xf32, #tpu.memory_space<vmem>>, vector<1x1x32xf32>
    %317 = vector.shape_cast %316 : vector<1x1x32xf32> to vector<1x32xf32>
    %c1_119 = arith.constant 1 : index
    %c0_120 = arith.constant 0 : index
    %c0_121 = arith.constant 0 : index
    %318 = vector.load %arg12[%c1_119, %c0_120, %c0_121] : memref<2x1x32xf32, #tpu.memory_space<vmem>>, vector<1x1x32xf32>
    %319 = vector.shape_cast %318 : vector<1x1x32xf32> to vector<1x32xf32>
    %cst_122 = arith.constant dense<0.000000e+00> : vector<16xf32>
    %320 = vector.multi_reduction <add>, %315, %cst_122 [1] : vector<16x32xf32> to vector<16xf32>
    %321 = vector.shape_cast %320 : vector<16xf32> to vector<16x1xf32>
    %cst_123 = arith.constant 3.200000e+01 : f32
    %322 = vector.broadcast %cst_123 : f32 to vector<16x1xf32>
    %323 = arith.divf %321, %322 : vector<16x1xf32>
    %324 = arith.mulf %315, %315 : vector<16x32xf32>
    %cst_124 = arith.constant dense<0.000000e+00> : vector<16xf32>
    %325 = vector.multi_reduction <add>, %324, %cst_124 [1] : vector<16x32xf32> to vector<16xf32>
    %326 = vector.shape_cast %325 : vector<16xf32> to vector<16x1xf32>
    %cst_125 = arith.constant 3.200000e+01 : f32
    %327 = vector.broadcast %cst_125 : f32 to vector<16x1xf32>
    %328 = arith.divf %326, %327 : vector<16x1xf32>
    %329 = arith.mulf %323, %323 : vector<16x1xf32>
    %330 = arith.subf %328, %329 : vector<16x1xf32>
    %cst_126 = arith.constant 0.000000e+00 : f32
    %331 = vector.broadcast %cst_126 : f32 to vector<16x1xf32>
    %332 = arith.maximumf %330, %331 : vector<16x1xf32>
    %333 = vector.broadcast %323 : vector<16x1xf32> to vector<16x32xf32>
    %334 = arith.subf %315, %333 : vector<16x32xf32>
    %cst_127 = arith.constant 9.99999996E-13 : f32
    %335 = vector.broadcast %cst_127 : f32 to vector<16x1xf32>
    %336 = arith.addf %332, %335 : vector<16x1xf32>
    %337 = math.rsqrt %336 : vector<16x1xf32>
    %338 = vector.broadcast %337 : vector<16x1xf32> to vector<16x32xf32>
    %339 = arith.mulf %334, %338 : vector<16x32xf32>
    %340 = vector.broadcast %317 : vector<1x32xf32> to vector<16x32xf32>
    %341 = arith.mulf %339, %340 : vector<16x32xf32>
    %342 = vector.broadcast %319 : vector<1x32xf32> to vector<16x32xf32>
    %343 = arith.addf %341, %342 : vector<16x32xf32>
    %344 = arith.truncf %343 : vector<16x32xf32> to vector<16x32xbf16>
    %c1_128 = arith.constant 1 : index
    %c0_129 = arith.constant 0 : index
    %c0_130 = arith.constant 0 : index
    %345 = vector.load %arg13[%c1_128, %c0_129, %c0_130] : memref<2x32x128xbf16, #tpu.memory_space<vmem>>, vector<1x32x128xbf16>
    %346 = vector.shape_cast %345 : vector<1x32x128xbf16> to vector<32x128xbf16>
    %cst_131 = arith.constant dense<0.000000e+00> : vector<16x128xf32>
    %347 = tpu.matmul %344, %346, %cst_131 {dimension_numbers = #tpu.dot_dimension_numbers<[1], [0], [0], [1], [0, 0, 1, 1], [], []>} : vector<16x32xbf16>, vector<32x128xbf16>, vector<16x128xf32> -> vector<16x128xf32>
    %c1_132 = arith.constant 1 : index
    %c0_133 = arith.constant 0 : index
    %c0_134 = arith.constant 0 : index
    %348 = vector.load %arg14[%c1_132, %c0_133, %c0_134] : memref<2x1x128xf32, #tpu.memory_space<vmem>>, vector<1x1x128xf32>
    %349 = vector.shape_cast %348 : vector<1x1x128xf32> to vector<1x128xf32>
    %350 = vector.broadcast %349 : vector<1x128xf32> to vector<16x128xf32>
    %351 = arith.addf %347, %350 : vector<16x128xf32>
    %352 = arith.mulf %351, %351 : vector<16x128xf32>
    %353 = arith.mulf %351, %352 : vector<16x128xf32>
    %cst_135 = arith.constant 4.471500e-02 : f32
    %354 = vector.broadcast %cst_135 : f32 to vector<16x128xf32>
    %355 = arith.mulf %354, %353 : vector<16x128xf32>
    %356 = arith.addf %351, %355 : vector<16x128xf32>
    %cst_136 = arith.constant 0.797884583 : f32
    %357 = vector.broadcast %cst_136 : f32 to vector<16x128xf32>
    %358 = arith.mulf %357, %356 : vector<16x128xf32>
    %359 = math.tanh %358 : vector<16x128xf32>
    %cst_137 = arith.constant 1.000000e+00 : f32
    %360 = vector.broadcast %cst_137 : f32 to vector<16x128xf32>
    %361 = arith.addf %360, %359 : vector<16x128xf32>
    %cst_138 = arith.constant 5.000000e-01 : f32
    %362 = vector.broadcast %cst_138 : f32 to vector<16x128xf32>
    %363 = arith.mulf %362, %361 : vector<16x128xf32>
    %364 = arith.mulf %351, %363 : vector<16x128xf32>
    %365 = arith.truncf %364 : vector<16x128xf32> to vector<16x128xbf16>
    %c1_139 = arith.constant 1 : index
    %c0_140 = arith.constant 0 : index
    %c0_141 = arith.constant 0 : index
    %366 = vector.load %arg15[%c1_139, %c0_140, %c0_141] : memref<2x128x32xbf16, #tpu.memory_space<vmem>>, vector<1x128x32xbf16>
    %367 = vector.shape_cast %366 : vector<1x128x32xbf16> to vector<128x32xbf16>
    %cst_142 = arith.constant dense<0.000000e+00> : vector<16x32xf32>
    %368 = tpu.matmul %365, %367, %cst_142 {dimension_numbers = #tpu.dot_dimension_numbers<[1], [0], [0], [1], [0, 0, 1, 1], [], []>} : vector<16x128xbf16>, vector<128x32xbf16>, vector<16x32xf32> -> vector<16x32xf32>
    %c1_143 = arith.constant 1 : index
    %c0_144 = arith.constant 0 : index
    %c0_145 = arith.constant 0 : index
    %369 = vector.load %arg16[%c1_143, %c0_144, %c0_145] : memref<2x1x32xf32, #tpu.memory_space<vmem>>, vector<1x1x32xf32>
    %370 = vector.shape_cast %369 : vector<1x1x32xf32> to vector<1x32xf32>
    %371 = vector.broadcast %370 : vector<1x32xf32> to vector<16x32xf32>
    %372 = arith.addf %368, %371 : vector<16x32xf32>
    %373 = arith.addf %372, %343 : vector<16x32xf32>
    %c1_146 = arith.constant 1 : index
    %c0_147 = arith.constant 0 : index
    %c0_148 = arith.constant 0 : index
    %374 = vector.load %arg17[%c1_146, %c0_147, %c0_148] : memref<2x1x32xf32, #tpu.memory_space<vmem>>, vector<1x1x32xf32>
    %375 = vector.shape_cast %374 : vector<1x1x32xf32> to vector<1x32xf32>
    %c1_149 = arith.constant 1 : index
    %c0_150 = arith.constant 0 : index
    %c0_151 = arith.constant 0 : index
    %376 = vector.load %arg18[%c1_149, %c0_150, %c0_151] : memref<2x1x32xf32, #tpu.memory_space<vmem>>, vector<1x1x32xf32>
    %377 = vector.shape_cast %376 : vector<1x1x32xf32> to vector<1x32xf32>
    %cst_152 = arith.constant dense<0.000000e+00> : vector<16xf32>
    %378 = vector.multi_reduction <add>, %373, %cst_152 [1] : vector<16x32xf32> to vector<16xf32>
    %379 = vector.shape_cast %378 : vector<16xf32> to vector<16x1xf32>
    %cst_153 = arith.constant 3.200000e+01 : f32
    %380 = vector.broadcast %cst_153 : f32 to vector<16x1xf32>
    %381 = arith.divf %379, %380 : vector<16x1xf32>
    %382 = arith.mulf %373, %373 : vector<16x32xf32>
    %cst_154 = arith.constant dense<0.000000e+00> : vector<16xf32>
    %383 = vector.multi_reduction <add>, %382, %cst_154 [1] : vector<16x32xf32> to vector<16xf32>
    %384 = vector.shape_cast %383 : vector<16xf32> to vector<16x1xf32>
    %cst_155 = arith.constant 3.200000e+01 : f32
    %385 = vector.broadcast %cst_155 : f32 to vector<16x1xf32>
    %386 = arith.divf %384, %385 : vector<16x1xf32>
    %387 = arith.mulf %381, %381 : vector<16x1xf32>
    %388 = arith.subf %386, %387 : vector<16x1xf32>
    %cst_156 = arith.constant 0.000000e+00 : f32
    %389 = vector.broadcast %cst_156 : f32 to vector<16x1xf32>
    %390 = arith.maximumf %388, %389 : vector<16x1xf32>
    %391 = vector.broadcast %381 : vector<16x1xf32> to vector<16x32xf32>
    %392 = arith.subf %373, %391 : vector<16x32xf32>
    %cst_157 = arith.constant 9.99999996E-13 : f32
    %393 = vector.broadcast %cst_157 : f32 to vector<16x1xf32>
    %394 = arith.addf %390, %393 : vector<16x1xf32>
    %395 = math.rsqrt %394 : vector<16x1xf32>
    %396 = vector.broadcast %395 : vector<16x1xf32> to vector<16x32xf32>
    %397 = arith.mulf %392, %396 : vector<16x32xf32>
    %398 = vector.broadcast %375 : vector<1x32xf32> to vector<16x32xf32>
    %399 = arith.mulf %397, %398 : vector<16x32xf32>
    %400 = vector.broadcast %377 : vector<1x32xf32> to vector<16x32xf32>
    %401 = arith.addf %399, %400 : vector<16x32xf32>
    %402 = arith.truncf %401 : vector<16x32xf32> to vector<16x32xbf16>
    %c0_158 = arith.constant 0 : index
    %c0_159 = arith.constant 0 : index
    %403 = vector.load %arg19[%c0_158, %c0_159] : memref<32x128xbf16, #tpu.memory_space<vmem>>, vector<32x128xbf16>
    %cst_160 = arith.constant dense<0.000000e+00> : vector<16x128xf32>
    %404 = tpu.matmul %402, %403, %cst_160 {dimension_numbers = #tpu.dot_dimension_numbers<[1], [0], [0], [1], [0, 0, 1, 1], [], []>} : vector<16x32xbf16>, vector<32x128xbf16>, vector<16x128xf32> -> vector<16x128xf32>
    %c0_161 = arith.constant 0 : index
    %c0_162 = arith.constant 0 : index
    %405 = vector.load %arg20[%c0_161, %c0_162] : memref<1x128xf32, #tpu.memory_space<vmem>>, vector<1x128xf32>
    %406 = vector.broadcast %405 : vector<1x128xf32> to vector<16x128xf32>
    %407 = arith.addf %404, %406 : vector<16x128xf32>
    %c0_163 = arith.constant 0 : index
    %c0_164 = arith.constant 0 : index
    %408 = vector.load %arg21[%c0_163, %c0_164] : memref<16x128xf32, #tpu.memory_space<vmem>>, vector<16x128xf32>
    tpu.vector_store %arg21[%c0_163, %c0_164], %407 {strides = array<i32>} : memref<16x128xf32, #tpu.memory_space<vmem>>, vector<16x128xf32>,
    %c0_165 = arith.constant 0 : index
    %c0_166 = arith.constant 0 : index
    %409 = vector.load %arg2[%c0_165, %c0_166] : memref<16x1xi32, #tpu.memory_space<vmem>>, vector<16x1xi32>
    %410 = tpu.iota {dimensions = array<i32: 1>} : vector<16x128xi32>
    %411 = vector.broadcast %409 : vector<16x1xi32> to vector<16x128xi32>
    %412 = arith.cmpi eq, %410, %411 : vector<16x128xi32>
    %413 = arith.extui %412 : vector<16x128xi1> to vector<16x128xi32>
    %414 = arith.sitofp %413 : vector<16x128xi32> to vector<16x128xf32>
    %c-100_i32 = arith.constant -100 : i32
    %415 = vector.broadcast %c-100_i32 : i32 to vector<16x1xi32>
    %416 = arith.cmpi ne, %409, %415 : vector<16x1xi32>
    %417 = arith.extui %416 : vector<16x1xi1> to vector<16x1xi32>
    %418 = arith.sitofp %417 : vector<16x1xi32> to vector<16x1xf32>
    %cst_167 = arith.constant dense<0xFF800000> : vector<16xf32>
    %419 = vector.multi_reduction <maximumf>, %407, %cst_167 [1] : vector<16x128xf32> to vector<16xf32>
    %420 = vector.shape_cast %419 : vector<16xf32> to vector<16x1xf32>
    %421 = vector.broadcast %420 : vector<16x1xf32> to vector<16x128xf32>
    %422 = arith.subf %407, %421 : vector<16x128xf32>
    %423 = math.exp %422 : vector<16x128xf32>
    %cst_168 = arith.constant dense<0.000000e+00> : vector<16xf32>
    %424 = vector.multi_reduction <add>, %423, %cst_168 [1] : vector<16x128xf32> to vector<16xf32>
    %425 = vector.shape_cast %424 : vector<16xf32> to vector<16x1xf32>
    %426 = math.log %425 : vector<16x1xf32>
    %427 = arith.addf %426, %420 : vector<16x1xf32>
    %428 = arith.mulf %414, %407 : vector<16x128xf32>
    %cst_169 = arith.constant dense<0.000000e+00> : vector<16xf32>
    %429 = vector.multi_reduction <add>, %428, %cst_169 [1] : vector<16x128xf32> to vector<16xf32>
    %430 = vector.shape_cast %429 : vector<16xf32> to vector<16x1xf32>
    %431 = arith.subf %427, %430 : vector<16x1xf32>
    %432 = arith.mulf %431, %418 : vector<16x1xf32>
    %cst_170 = arith.constant dense<0.000000e+00> : vector<1xf32>
    %433 = vector.multi_reduction <add>, %432, %cst_170 [0] : vector<16x1xf32> to vector<1xf32>
    %434 = vector.shape_cast %433 : vector<1xf32> to vector<1x1xf32>
    %cst_171 = arith.constant dense<0.000000e+00> : vector<1xf32>
    %435 = vector.multi_reduction <add>, %418, %cst_171 [0] : vector<16x1xf32> to vector<1xf32>
    %436 = vector.shape_cast %435 : vector<1xf32> to vector<1x1xf32>
    %cst_172 = arith.constant 1.000000e+00 : f32
    %437 = vector.broadcast %cst_172 : f32 to vector<1x1xf32>
    %438 = arith.maximumf %436, %437 : vector<1x1xf32>
    %439 = arith.divf %434, %438 : vector<1x1xf32>
    %c0_173 = arith.constant 0 : index
    %c0_174 = arith.constant 0 : index
    %440 = vector.load %arg22[%c0_173, %c0_174] : memref<1x1xf32, #tpu.memory_space<vmem>>, vector<1x1xf32>
    tpu.vector_store %arg22[%c0_173, %c0_174], %439 {strides = array<i32>} : memref<1x1xf32, #tpu.memory_space<vmem>>, vector<1x1xf32>,
    return
  }
}

</mosaic_0001>

<llo_original>
// kernel: bert_forward.1
$region0: #{bert_forward.1}
  #allocation0 [shape = 'u32[]', space=smem, size = 0x4, offset = 0x4, fixed_abs, tag = 'smem constant byte address 0x4 - core index']
  #allocation1 [shape = 'u32[144,128]{1,0:T(1,128)}', space=vmem, size = 0x12000, scoped, tag = 'internal scratch']
  %s0 = inlined_call_operand.vmem [shape: s32[16,1], index: 0, kind: input, shape index: {}]
  %s1 = inlined_call_operand.vmem [shape: f32[2,8], index: 1, kind: input, shape index: {}]
  %s2 = inlined_call_operand.vmem [shape: s32[16,1], index: 2, kind: input, shape index: {}]
  %s3 = inlined_call_operand.vmem [shape: bf16[100,32], index: 3, kind: input, shape index: {}]
  %s4 = inlined_call_operand.vmem [shape: f32[8,32], index: 4, kind: input, shape index: {}]
  %s5 = inlined_call_operand.vmem [shape: f32[1,32], index: 5, kind: input, shape index: {}]
  %s6 = inlined_call_operand.vmem [shape: f32[1,32], index: 6, kind: input, shape index: {}]
  %s7 = inlined_call_operand.vmem [shape: bf16[2,32,96], index: 7, kind: input, shape index: {}]
  %s8 = inlined_call_operand.vmem [shape: f32[2,1,96], index: 8, kind: input, shape index: {}]
  %s9 = inlined_call_operand.vmem [shape: bf16[2,32,32], index: 9, kind: input, shape index: {}]
  %s10 = inlined_call_operand.vmem [shape: f32[2,1,32], index: 10, kind: input, shape index: {}]
  %s11 = inlined_call_operand.vmem [shape: f32[2,1,32], index: 11, kind: input, shape index: {}]
  %s12 = inlined_call_operand.vmem [shape: f32[2,1,32], index: 12, kind: input, shape index: {}]
  %s13 = inlined_call_operand.vmem [shape: bf16[2,32,128], index: 13, kind: input, shape index: {}]
  %s14 = inlined_call_operand.vmem [shape: f32[2,1,128], index: 14, kind: input, shape index: {}]
  %s15 = inlined_call_operand.vmem [shape: bf16[2,128,32], index: 15, kind: input, shape index: {}]
  %s16 = inlined_call_operand.vmem [shape: f32[2,1,32], index: 16, kind: input, shape index: {}]
  %s17 = inlined_call_operand.vmem [shape: f32[2,1,32], index: 17, kind: input, shape index: {}]
  %s18 = inlined_call_operand.vmem [shape: f32[2,1,32], index: 18, kind: input, shape index: {}]
  %s19 = inlined_call_operand.vmem [shape: bf16[32,128], index: 19, kind: input, shape index: {}]
  %s20 = inlined_call_operand.vmem [shape: f32[1,128], index: 20, kind: input, shape index: {}]
  %s21 = inlined_call_operand.vmem [shape: f32[16,128], index: 21, kind: output, shape index: {0}]
  %s22 = inlined_call_operand.hbm [shape: f32[1,1], index: 22, kind: output, shape index: {1}]
  %23 = xla_tuple %s21, %s22
  %s24 = sld [smem:[#allocation0]]
  $region102: #{bert_forward.1} parent=0
    _
  %s26 = ssub.s32 1, %s24
  %s27 = scalar_select 0, %s26, %s24
  $region1: #{bert_forward.1} parent=0
    #allocation2 [shape = 'u8[512]{0}', space=vmem, size = 0x400, scoped, tag = 'output window, operand 1, single buffered']
    #allocation3 [shape = 's32[1]{0}', space=sflag, size = 0x4, scoped, tag = 'scoped memory for bert_forward.1']
    %28 = vsyncpa [#allocation3], 0
    // Predicated region
    $region2: #{bert_forward.1} parent=1 // pred_check
      _
    $region3: #{bert_forward.1} parent=1 // pred_check_branch
      %30 = sbr.rel (0) target = $region5
    $region4: #{bert_forward.1} parent=1 // pred_region
      _
    $region5: #{bert_forward.1} parent=1 // pred_fallthru
      _
    // Predicated region
    $region6: #{bert_forward.1} parent=1 // pred_check
      _
    $region7: #{bert_forward.1} parent=1 // pred_check_branch
      %32 = sbr.rel (0) target = $region9
    $region8: #{bert_forward.1} parent=1 // pred_region
      _
    $region9: #{bert_forward.1} parent=1 // pred_fallthru
      _
    // Predicated region
    $region10: #{bert_forward.1} parent=1 // pred_check
      _
    $region11: #{bert_forward.1} parent=1 // pred_check_branch
      %34 = sbr.rel (0) target = $region13
    $region12: #{bert_forward.1} parent=1 // pred_region
      _
    $region13: #{bert_forward.1} parent=1 // pred_fallthru
      _
    // Predicated region
    $region14: #{bert_forward.1} parent=1 // pred_check
      _
    $region15: #{bert_forward.1} parent=1 // pred_check_branch
      %36 = sbr.rel (0) target = $region17
    $region16: #{bert_forward.1} parent=1 // pred_region
      _
    $region17: #{bert_forward.1} parent=1 // pred_fallthru
      _
    // Predicated region
    $region18: #{bert_forward.1} parent=1 // pred_check
      _
    $region19: #{bert_forward.1} parent=1 // pred_check_branch
      %38 = sbr.rel (0) target = $region21
    $region20: #{bert_forward.1} parent=1 // pred_region
      _
    $region21: #{bert_forward.1} parent=1 // pred_fallthru
      _
    // Predicated region
    $region22: #{bert_forward.1} parent=1 // pred_check
      _
    $region23: #{bert_forward.1} parent=1 // pred_check_branch
      %40 = sbr.rel (0) target = $region25
    $region24: #{bert_forward.1} parent=1 // pred_region
      _
    $region25: #{bert_forward.1} parent=1 // pred_fallthru
      _
    // Predicated region
    $region26: #{bert_forward.1} parent=1 // pred_check
      _
    $region27: #{bert_forward.1} parent=1 // pred_check_branch
      %42 = sbr.rel (0) target = $region29
    $region28: #{bert_forward.1} parent=1 // pred_region
      _
    $region29: #{bert_forward.1} parent=1 // pred_fallthru
      _
    // Predicated region
    $region30: #{bert_forward.1} parent=1 // pred_check
      _
    $region31: #{bert_forward.1} parent=1 // pred_check_branch
      %44 = sbr.rel (0) target = $region33
    $region32: #{bert_forward.1} parent=1 // pred_region
      _
    $region33: #{bert_forward.1} parent=1 // pred_fallthru
      _
    // Predicated region
    $region34: #{bert_forward.1} parent=1 // pred_check
      _
    $region35: #{bert_forward.1} parent=1 // pred_check_branch
      %46 = sbr.rel (0) target = $region37
    $region36: #{bert_forward.1} parent=1 // pred_region
      _
    $region37: #{bert_forward.1} parent=1 // pred_fallthru
      _
    // Predicated region
    $region38: #{bert_forward.1} parent=1 // pred_check
      _
    $region39: #{bert_forward.1} parent=1 // pred_check_branch
      %48 = sbr.rel (0) target = $region41
    $region40: #{bert_forward.1} parent=1 // pred_region
      _
    $region41: #{bert_forward.1} parent=1 // pred_fallthru
      _
    // Predicated region
    $region42: #{bert_forward.1} parent=1 // pred_check
      _
    $region43: #{bert_forward.1} parent=1 // pred_check_branch
      %50 = sbr.rel (0) target = $region45
    $region44: #{bert_forward.1} parent=1 // pred_region
      _
    $region45: #{bert_forward.1} parent=1 // pred_fallthru
      _
    // Predicated region
    $region46: #{bert_forward.1} parent=1 // pred_check
      _
    $region47: #{bert_forward.1} parent=1 // pred_check_branch
      %52 = sbr.rel (0) target = $region49
    $region48: #{bert_forward.1} parent=1 // pred_region
      _
    $region49: #{bert_forward.1} parent=1 // pred_fallthru
      _
    // Predicated region
    $region50: #{bert_forward.1} parent=1 // pred_check
      _
    $region51: #{bert_forward.1} parent=1 // pred_check_branch
      %54 = sbr.rel (0) target = $region53
    $region52: #{bert_forward.1} parent=1 // pred_region
      _
    $region53: #{bert_forward.1} parent=1 // pred_fallthru
      _
    // Predicated region
    $region54: #{bert_forward.1} parent=1 // pred_check
      _
    $region55: #{bert_forward.1} parent=1 // pred_check_branch
      %56 = sbr.rel (0) target = $region57
    $region56: #{bert_forward.1} parent=1 // pred_region
      _
    $region57: #{bert_forward.1} parent=1 // pred_fallthru
      _
    // Predicated region
    $region58: #{bert_forward.1} parent=1 // pred_check
      _
    $region59: #{bert_forward.1} parent=1 // pred_check_branch
      %58 = sbr.rel (0) target = $region61
    $region60: #{bert_forward.1} parent=1 // pred_region
      _
    $region61: #{bert_forward.1} parent=1 // pred_fallthru
      _
    // Predicated region
    $region62: #{bert_forward.1} parent=1 // pred_check
      _
    $region63: #{bert_forward.1} parent=1 // pred_check_branch
      %60 = sbr.rel (0) target = $region65
    $region64: #{bert_forward.1} parent=1 // pred_region
      _
    $region65: #{bert_forward.1} parent=1 // pred_fallthru
      _
    // Predicated region
    $region66: #{bert_forward.1} parent=1 // pred_check
      _
    $region67: #{bert_forward.1} parent=1 // pred_check_branch
      %62 = sbr.rel (0) target = $region69
    $region68: #{bert_forward.1} parent=1 // pred_region
      _
    $region69: #{bert_forward.1} parent=1 // pred_fallthru
      _
    // Predicated region
    $region70: #{bert_forward.1} parent=1 // pred_check
      _
    $region71: #{bert_forward.1} parent=1 // pred_check_branch
      %64 = sbr.rel (0) target = $region73
    $region72: #{bert_forward.1} parent=1 // pred_region
      _
    $region73: #{bert_forward.1} parent=1 // pred_fallthru
      _
    // Predicated region
    $region74: #{bert_forward.1} parent=1 // pred_check
      _
    $region75: #{bert_forward.1} parent=1 // pred_check_branch
      %66 = sbr.rel (0) target = $region77
    $region76: #{bert_forward.1} parent=1 // pred_region
      _
    $region77: #{bert_forward.1} parent=1 // pred_fallthru
      _
    // Predicated region
    $region78: #{bert_forward.1} parent=1 // pred_check
      _
    $region79: #{bert_forward.1} parent=1 // pred_check_branch
      %68 = sbr.rel (0) target = $region81
    $region80: #{bert_forward.1} parent=1 // pred_region
      _
    $region81: #{bert_forward.1} parent=1 // pred_fallthru
      _
    // Predicated region
    $region82: #{bert_forward.1} parent=1 // pred_check
      _
    $region83: #{bert_forward.1} parent=1 // pred_check_branch
      %70 = sbr.rel (0) target = $region85
    $region84: #{bert_forward.1} parent=1 // pred_region
      _
    $region85: #{bert_forward.1} parent=1 // pred_fallthru
      _
    %v72 = vld [vmem:[%s0] sm:$0xff]
    %v73 = vld [vmem:[%s0 + $0x8] sm:$0xff]
    %v74 = vlaneseq
    %v75 = vand.u32 %v74, 127
    %76 = vset.pattern.permute.xlu0 0
    %77 = vperm.xlu0 %76, %v72
    %v78 = vpop.permute.xlu0 %77
    %79 = vset.pattern.permute.xlu0 0
    %80 = vperm.xlu0 %79, %v73
    %v81 = vpop.permute.xlu0 %80
    %vm82 = vcmp.eq.s32.totalorder %v75, %v78
    %vm83 = vcmp.eq.s32.totalorder %v75, %v81
    %v84 = vsel %vm82, 1, 0
    %v85 = vsel %vm83, 1, 0
    %v86 = vcvt.s32.f32 %v84
    %v87 = vcvt.s32.f32 %v85
    %v88 = vpack.c.bf16 %v87, %v86
    %v89 = vld [vmem:[%s3] sm:$0xf]
    %v90 = vld [vmem:[%s3 + $0x4] sm:$0xf]
    %v91 = vld [vmem:[%s3 + $0x8] sm:$0xf]
    %v92 = vld [vmem:[%s3 + $0xc] sm:$0xf]
    %v93 = vld [vmem:[%s3 + $0x10] sm:$0xf]
    %v94 = vld [vmem:[%s3 + $0x14] sm:$0xf]
    %v95 = vld [vmem:[%s3 + $0x18] sm:$0xf]
    %v96 = vld [vmem:[%s3 + $0x1c] sm:$0xf]
    %v97 = vld [vmem:[%s3 + $0x20] sm:$0xf]
    %v98 = vld [vmem:[%s3 + $0x24] sm:$0xf]
    %v99 = vld [vmem:[%s3 + $0x28] sm:$0xf]
    %v100 = vld [vmem:[%s3 + $0x2c] sm:$0xf]
    %v101 = vld [vmem:[%s3 + $0x30] sm:$0x3]
    %v102 = vld [vmem:[%s4] sm:$0xff]
    %v116 = vunpack.c.l.b16 %v89
    %v117 = vunpack.c.l.b16 %v90
    %v118 = vunpack.c.l.b16 %v91
    %v119 = vunpack.c.l.b16 %v92
    %v120 = vunpack.c.l.b16 %v93
    %v121 = vunpack.c.l.b16 %v94
    %v122 = vunpack.c.l.b16 %v95
    %v123 = vunpack.c.l.b16 %v96
    %v124 = vunpack.c.l.b16 %v97
    %v125 = vunpack.c.l.b16 %v98
    %v126 = vunpack.c.l.b16 %v99
    %v127 = vunpack.c.l.b16 %v100
    %v128 = vunpack.c.l.b16 %v101
    %v129 = vpack.c.b16 %v117, %v116
    %v130 = vpack.c.b16 %v119, %v118
    %v131 = vpack.c.b16 %v121, %v120
    %v132 = vpack.c.b16 %v123, %v122
    %v133 = vpack.c.b16 %v125, %v124
    %v134 = vpack.c.b16 %v127, %v126
    %v135 = vpack.c.b16 %v128, %v128
    %vm142 = vcmask 818176
    %v144 = vsel %vm142, %v88, 0
    %vm146 = vcmask 1041408
    %v148 = vsel %vm146, %v135, 0
    %150 = vmatprep.subr.bf16.mxu0 0
    %151 = vmatpush1.bf16.msra.mxu0 %v129
    %152 = vmatprep.subr.bf16.mxu0 0
    %153 = vmatpush1.bf16.msra.mxu0 %v130
    %154 = vmatprep.subr.bf16.mxu0 0
    %155 = vmatpush1.bf16.msra.mxu0 %v131
    %156 = vmatprep.subr.bf16.mxu0 0
    %157 = vmatpush1.bf16.msra.mxu0 %v132
    %158 = vmatprep.subr.bf16.mxu0 0
    %159 = vmatpush1.bf16.msra.mxu0 %v133
    %160 = vmatprep.subr.bf16.mxu0 0
    %161 = vmatpush1.bf16.msra.mxu0 %v134
    %162 = vmatprep.subr.bf16.mxu0 0
    %163 = vmatpush1.bf16.msra.mxu0 %v148
    %164 = vmatprep.subr.bf16.mxu0 0
    %165 = vmatpush1.bf16.msra.mxu0 0
    %166 = vmatprep.subr.bf16.mxu0 0
    %167 = vmatpush1.bf16.msra.mxu0 0
    %168 = vmatprep.subr.bf16.mxu0 0
    %169 = vmatpush1.bf16.msra.mxu0 0
    %170 = vmatprep.subr.bf16.mxu0 0
    %171 = vmatpush1.bf16.msra.mxu0 0
    %172 = vmatprep.subr.bf16.mxu0 0
    %173 = vmatpush1.bf16.msra.mxu0 0
    %174 = vmatprep.subr.bf16.mxu0 0
    %175 = vmatpush1.bf16.msra.mxu0 0
    %176 = vmatprep.subr.bf16.mxu0 0
    %177 = vmatpush1.bf16.msra.mxu0 0
    %178 = vmatprep.subr.bf16.mxu0 0
    %179 = vmatpush1.bf16.msra.mxu0 0
    %180 = vmatprep.subr.bf16.mxu0 0
    %181 = vmatpush1.bf16.msra.mxu0 0
    %182 = vmatprep.mubr.bf16.mxu0 0
    %183 = vmatmul.mubr.bf16.gmra.mrb[0].mxu0 %v144
    %v184 = vpop.f32.mrb[0].mxu0
    %v185 = vadd.f32 %v102, %v184
    %v186 = vpop.f32.mrb[0].mxu0
    %v187 = vpop.f32.mrb[0].mxu0
    %v188 = vadd.f32 %v102, %v187
    %v189 = vpop.f32.mrb[0].mxu0
    %190 = vdwg.mxu0
    %v191 = vld [vmem:[%s5] sm:$0x1]
    %v192 = vld [vmem:[%s6] sm:$0x1]
    %vm193 = vcmask 261120
    %v194 = vsel %vm193, %v185, 0.0
    %195 = vadd.xlane.f32.xlu0 %v194
    %v196 = vpop.xlane.xlu0 %195
    %v197 = vsel %vm193, %v188, 0.0
    %198 = vadd.xlane.f32.xlu0 %v197
    %v199 = vpop.xlane.xlu0 %198
    %v200 = vrcp.pop 32.0
    %v201 = vmul.f32 %v196, %v200
    %v202 = vmul.f32 %v199, %v200
    %v203 = vmul.f32 %v185, %v185
    %v204 = vmul.f32 %v188, %v188
    %v205 = vsel %vm193, %v203, 0.0
    %206 = vadd.xlane.f32.xlu0 %v205
    %v207 = vpop.xlane.xlu0 %206
    %v208 = vsel %vm193, %v204, 0.0
    %209 = vadd.xlane.f32.xlu0 %v208
    %v210 = vpop.xlane.xlu0 %209
    %v211 = vmul.f32 %v207, %v200
    %v212 = vmul.f32 %v210, %v200
    %v213 = vmul.f32 %v201, %v201
    %v214 = vmul.f32 %v202, %v202
    %v215 = vsub.f32 %v211, %v213
    %v216 = vsub.f32 %v212, %v214
    %v217 = vmax.f32 %v215, 0.0
    %v218 = vmax.f32 %v216, 0.0
    %v219 = vsub.f32 %v185, %v201
    %v220 = vsub.f32 %v188, %v202
    %v221 = vadd.f32 %v217, 1e-12
    %v222 = vadd.f32 %v218, 1e-12
    %v223 = vrsqrt.pop %v221
    %v224 = vrsqrt.pop %v222
    %v225 = vmul.f32 %v219, %v223
    %v226 = vmul.f32 %v220, %v224
    %v228 = vlaneseq
    %v229 = vshrl.u32 %v228, 7
    %v230 = vsub.s32 0, %v229
    %v231 = vrot.slane %v191, %v230
    %v233 = vmul.f32 %v225, %v231
    %v234 = vmul.f32 %v226, %v231
    %v236 = vlaneseq
    %v237 = vshrl.u32 %v236, 7
    %v238 = vsub.s32 0, %v237
    %v239 = vrot.slane %v192, %v238
    %v241 = vadd.f32 %v233, %v239
    %v242 = vadd.f32 %v234, %v239
    %v243 = vld [vmem:[%s1] sm:$0x3]
    %v244 = vsub.f32 1.0, %v243
    %v245 = vmul.f32 %v244, -1e+09
    %v246 = vlaneseq
    %v247 = vshrl.u32 %v246, 7
    %v248 = vsub.s32 0, %v247
    %v249 = vrot.slane %v245, %v248
    %v250 = vlaneseq
    %v251 = vshrl.u32 %v250, 7
    %v252 = vsub.s32 1, %v251
    %v253 = vrot.slane %v245, %v252
    %v254 = vld [vmem:[%s7] sm:$0xf]
    %v255 = vld [vmem:[%s7 + $0x4] sm:$0xf]
    %v256 = vld [vmem:[%s7 + $0x8] sm:$0xf]
    %v257 = vld [vmem:[%s7 + $0xc] sm:$0xf]
    %v258 = vld [vmem:[%s9] sm:$0xf]
    %v259 = vld [vmem:[%s9 + $0x4] sm:$0xf]
    %v260 = vld [vmem:[%s9 + $0x8] sm:$0xf]
    %v261 = vld [vmem:[%s9 + $0xc] sm:$0xf]
    %v262 = vpack.c.bf16 %v242, %v241
    %v263 = vld [vmem:[%s8] sm:$0x1]
    %v265 = vlaneseq
    %v266 = vshrl.u32 %v265, 7
    %v267 = vsub.s32 0, %v266
    %v268 = vrot.slane %v263, %v267
    %v274 = vunpack.c.l.b16 %v254
    %v275 = vunpack.c.l.b16 %v255
    %v276 = vunpack.c.l.b16 %v256
    %v277 = vunpack.c.l.b16 %v257
    %v278 = vpack.c.b16 %v275, %v274
    %v279 = vpack.c.b16 %v277, %v276
    %v283 = vsel %vm193, %v262, 0
    %285 = vmatprep.subr.bf16.mxu0 0
    %286 = vmatpush1.bf16.msra.mxu0 %v278
    %287 = vmatprep.subr.bf16.mxu0 0
    %288 = vmatpush1.bf16.msra.mxu0 %v279
    %289 = vmatprep.subr.bf16.mxu0 0
    %290 = vmatpush1.bf16.msra.mxu0 0
    %291 = vmatprep.subr.bf16.mxu0 0
    %292 = vmatpush1.bf16.msra.mxu0 0
    %293 = vmatprep.subr.bf16.mxu0 0
    %294 = vmatpush1.bf16.msra.mxu0 0
    %295 = vmatprep.subr.bf16.mxu0 0
    %296 = vmatpush1.bf16.msra.mxu0 0
    %297 = vmatprep.subr.bf16.mxu0 0
    %298 = vmatpush1.bf16.msra.mxu0 0
    %299 = vmatprep.subr.bf16.mxu0 0
    %300 = vmatpush1.bf16.msra.mxu0 0
    %301 = vmatprep.subr.bf16.mxu0 0
    %302 = vmatpush1.bf16.msra.mxu0 0
    %303 = vmatprep.subr.bf16.mxu0 0
    %304 = vmatpush1.bf16.msra.mxu0 0
    %305 = vmatprep.subr.bf16.mxu0 0
    %306 = vmatpush1.bf16.msra.mxu0 0
    %307 = vmatprep.subr.bf16.mxu0 0
    %308 = vmatpush1.bf16.msra.mxu0 0
    %309 = vmatprep.subr.bf16.mxu0 0
    %310 = vmatpush1.bf16.msra.mxu0 0
    %311 = vmatprep.subr.bf16.mxu0 0
    %312 = vmatpush1.bf16.msra.mxu0 0
    %313 = vmatprep.subr.bf16.mxu0 0
    %314 = vmatpush1.bf16.msra.mxu0 0
    %315 = vmatprep.subr.bf16.mxu0 0
    %316 = vmatpush1.bf16.msra.mxu0 0
    %317 = vmatprep.mubr.bf16.mxu0 0
    %318 = vmatmul.mubr.bf16.gmra.mrb[0].mxu0 %v283
    %v319 = vpop.f32.mrb[0].mxu0
    %v320 = vadd.f32 %v268, %v319
    %v321 = vpop.f32.mrb[0].mxu0
    %v322 = vpop.f32.mrb[0].mxu0
    %v323 = vadd.f32 %v268, %v322
    %v324 = vpop.f32.mrb[0].mxu0
    %325 = vdwg.mxu0
    %v326 = vmul.f32 %v320, 0.25
    %v327 = vmul.f32 %v323, 0.25
    %v328 = vpack.c.bf16 %v326, %v326
    %v329 = vpack.c.bf16 %v320, %v320
    %331 = vrot.lane.b32.xlu0 %v329, 96
    %v332 = vpop.permute.xlu0 %331
    %vm333 = vcmask 130048
    %v335 = vsel %vm333, %v328, 0
    %v338 = vsel %vm333, %v332, 0
    %340 = vmatprep.subr.bf16.mxu0 0
    %341 = vmatpush1.bf16.xpose.msra.mxu0 %v338
    %342 = vmatprep.subr.bf16.mxu0 0
    %343 = vmatpush1.bf16.xpose.msra.mxu0 0
    %344 = vmatprep.subr.bf16.mxu0 0
    %345 = vmatpush1.bf16.xpose.msra.mxu0 0
    %346 = vmatprep.subr.bf16.mxu0 0
    %347 = vmatpush1.bf16.xpose.msra.mxu0 0
    %348 = vmatprep.subr.bf16.mxu0 0
    %349 = vmatpush1.bf16.xpose.msra.mxu0 0
    %350 = vmatprep.subr.bf16.mxu0 0
    %351 = vmatpush1.bf16.xpose.msra.mxu0 0
    %352 = vmatprep.subr.bf16.mxu0 0
    %353 = vmatpush1.bf16.xpose.msra.mxu0 0
    %354 = vmatprep.subr.bf16.mxu0 0
    %355 = vmatpush1.bf16.xpose.msra.mxu0 0
    %356 = vmatprep.subr.bf16.mxu0 0
    %357 = vmatpush1.bf16.xpose.msra.mxu0 0
    %358 = vmatprep.subr.bf16.mxu0 0
    %359 = vmatpush1.bf16.xpose.msra.mxu0 0
    %360 = vmatprep.subr.bf16.mxu0 0
    %361 = vmatpush1.bf16.xpose.msra.mxu0 0
    %362 = vmatprep.subr.bf16.mxu0 0
    %363 = vmatpush1.bf16.xpose.msra.mxu0 0
    %364 = vmatprep.subr.bf16.mxu0 0
    %365 = vmatpush1.bf16.xpose.msra.mxu0 0
    %366 = vmatprep.subr.bf16.mxu0 0
    %367 = vmatpush1.bf16.xpose.msra.mxu0 0
    %368 = vmatprep.subr.bf16.mxu0 0
    %369 = vmatpush1.bf16.xpose.msra.mxu0 0
    %370 = vmatprep.subr.bf16.mxu0 0
    %371 = vmatpush1.bf16.xpose.msra.mxu0 0
    %372 = vmatprep.mubr.bf16.mxu0 0
    %373 = vmatmul.mubr.bf16.gmra.mrb[0].mxu0 %v335
    %v374 = vpop.f32.mrb[0].mxu0
    %v375 = vadd.f32 0.0, %v374
    %v376 = vpop.f32.mrb[0].mxu0
    %v377 = vpop.f32.mrb[0].mxu0
    %v378 = vpop.f32.mrb[0].mxu0
    %379 = vdwg.mxu0
    %381 = vrot.lane.b32.xlu0 %v328, 112
    %v382 = vpop.permute.xlu0 %381
    %383 = vrot.lane.b32.xlu0 %v329, 80
    %v384 = vpop.permute.xlu0 %383
    %v386 = vsel %vm333, %v382, 0
    %v389 = vsel %vm333, %v384, 0
    %391 = vmatprep.subr.bf16.mxu0 0
    %392 = vmatpush1.bf16.xpose.msra.mxu0 %v389
    %393 = vmatprep.subr.bf16.mxu0 0
    %394 = vmatpush1.bf16.xpose.msra.mxu0 0
    %395 = vmatprep.subr.bf16.mxu0 0
    %396 = vmatpush1.bf16.xpose.msra.mxu0 0
    %397 = vmatprep.subr.bf16.mxu0 0
    %398 = vmatpush1.bf16.xpose.msra.mxu0 0
    %399 = vmatprep.subr.bf16.mxu0 0
    %400 = vmatpush1.bf16.xpose.msra.mxu0 0
    %401 = vmatprep.subr.bf16.mxu0 0
    %402 = vmatpush1.bf16.xpose.msra.mxu0 0
    %403 = vmatprep.subr.bf16.mxu0 0
    %404 = vmatpush1.bf16.xpose.msra.mxu0 0
    %405 = vmatprep.subr.bf16.mxu0 0
    %406 = vmatpush1.bf16.xpose.msra.mxu0 0
    %407 = vmatprep.subr.bf16.mxu0 0
    %408 = vmatpush1.bf16.xpose.msra.mxu0 0
    %409 = vmatprep.subr.bf16.mxu0 0
    %410 = vmatpush1.bf16.xpose.msra.mxu0 0
    %411 = vmatprep.subr.bf16.mxu0 0
    %412 = vmatpush1.bf16.xpose.msra.mxu0 0
    %413 = vmatprep.subr.bf16.mxu0 0
    %414 = vmatpush1.bf16.xpose.msra.mxu0 0
    %415 = vmatprep.subr.bf16.mxu0 0
    %416 = vmatpush1.bf16.xpose.msra.mxu0 0
    %417 = vmatprep.subr.bf16.mxu0 0
    %418 = vmatpush1.bf16.xpose.msra.mxu0 0
    %419 = vmatprep.subr.bf16.mxu0 0
    %420 = vmatpush1.bf16.xpose.msra.mxu0 0
    %421 = vmatprep.subr.bf16.mxu0 0
    %422 = vmatpush1.bf16.xpose.msra.mxu0 0
    %423 = vmatprep.mubr.bf16.mxu0 0
    %424 = vmatmul.mubr.bf16.gmra.mrb[0].mxu0 %v386
    %v425 = vpop.f32.mrb[0].mxu0
    %v426 = vadd.f32 0.0, %v425
    %v427 = vpop.f32.mrb[0].mxu0
    %v428 = vpop.f32.mrb[0].mxu0
    %v429 = vpop.f32.mrb[0].mxu0
    %430 = vdwg.mxu0
    %v431 = vpack.c.bf16 %v327, %v327
    %v432 = vpack.c.bf16 %v323, %v323
    %434 = vrot.lane.b32.xlu0 %v432, 96
    %v435 = vpop.permute.xlu0 %434
    %v437 = vsel %vm333, %v431, 0
    %v440 = vsel %vm333, %v435, 0
    %442 = vmatprep.subr.bf16.mxu0 0
    %443 = vmatpush1.bf16.xpose.msra.mxu0 %v440
    %444 = vmatprep.subr.bf16.mxu0 0
    %445 = vmatpush1.bf16.xpose.msra.mxu0 0
    %446 = vmatprep.subr.bf16.mxu0 0
    %447 = vmatpush1.bf16.xpose.msra.mxu0 0
    %448 = vmatprep.subr.bf16.mxu0 0
    %449 = vmatpush1.bf16.xpose.msra.mxu0 0
    %450 = vmatprep.subr.bf16.mxu0 0
    %451 = vmatpush1.bf16.xpose.msra.mxu0 0
    %452 = vmatprep.subr.bf16.mxu0 0
    %453 = vmatpush1.bf16.xpose.msra.mxu0 0
    %454 = vmatprep.subr.bf16.mxu0 0
    %455 = vmatpush1.bf16.xpose.msra.mxu0 0
    %456 = vmatprep.subr.bf16.mxu0 0
    %457 = vmatpush1.bf16.xpose.msra.mxu0 0
    %458 = vmatprep.subr.bf16.mxu0 0
    %459 = vmatpush1.bf16.xpose.msra.mxu0 0
    %460 = vmatprep.subr.bf16.mxu0 0
    %461 = vmatpush1.bf16.xpose.msra.mxu0 0
    %462 = vmatprep.subr.bf16.mxu0 0
    %463 = vmatpush1.bf16.xpose.msra.mxu0 0
    %464 = vmatprep.subr.bf16.mxu0 0
    %465 = vmatpush1.bf16.xpose.msra.mxu0 0
    %466 = vmatprep.subr.bf16.mxu0 0
    %467 = vmatpush1.bf16.xpose.msra.mxu0 0
    %468 = vmatprep.subr.bf16.mxu0 0
    %469 = vmatpush1.bf16.xpose.msra.mxu0 0
    %470 = vmatprep.subr.bf16.mxu0 0
    %471 = vmatpush1.bf16.xpose.msra.mxu0 0
    %472 = vmatprep.subr.bf16.mxu0 0
    %473 = vmatpush1.bf16.xpose.msra.mxu0 0
    %474 = vmatprep.mubr.bf16.mxu0 0
    %475 = vmatmul.mubr.bf16.gmra.mrb[0].mxu0 %v437
    %v476 = vpop.f32.mrb[0].mxu0
    %v477 = vadd.f32 0.0, %v476
    %v478 = vpop.f32.mrb[0].mxu0
    %v479 = vpop.f32.mrb[0].mxu0
    %v480 = vpop.f32.mrb[0].mxu0
    %481 = vdwg.mxu0
    %483 = vrot.lane.b32.xlu0 %v431, 112
    %v484 = vpop.permute.xlu0 %483
    %485 = vrot.lane.b32.xlu0 %v432, 80
    %v486 = vpop.permute.xlu0 %485
    %v488 = vsel %vm333, %v484, 0
    %v491 = vsel %vm333, %v486, 0
    %493 = vmatprep.subr.bf16.mxu0 0
    %494 = vmatpush1.bf16.xpose.msra.mxu0 %v491
    %495 = vmatprep.subr.bf16.mxu0 0
    %496 = vmatpush1.bf16.xpose.msra.mxu0 0
    %497 = vmatprep.subr.bf16.mxu0 0
    %498 = vmatpush1.bf16.xpose.msra.mxu0 0
    %499 = vmatprep.subr.bf16.mxu0 0
    %500 = vmatpush1.bf16.xpose.msra.mxu0 0
    %501 = vmatprep.subr.bf16.mxu0 0
    %502 = vmatpush1.bf16.xpose.msra.mxu0 0
    %503 = vmatprep.subr.bf16.mxu0 0
    %504 = vmatpush1.bf16.xpose.msra.mxu0 0
    %505 = vmatprep.subr.bf16.mxu0 0
    %506 = vmatpush1.bf16.xpose.msra.mxu0 0
    %507 = vmatprep.subr.bf16.mxu0 0
    %508 = vmatpush1.bf16.xpose.msra.mxu0 0
    %509 = vmatprep.subr.bf16.mxu0 0
    %510 = vmatpush1.bf16.xpose.msra.mxu0 0
    %511 = vmatprep.subr.bf16.mxu0 0
    %512 = vmatpush1.bf16.xpose.msra.mxu0 0
    %513 = vmatprep.subr.bf16.mxu0 0
    %514 = vmatpush1.bf16.xpose.msra.mxu0 0
    %515 = vmatprep.subr.bf16.mxu0 0
    %516 = vmatpush1.bf16.xpose.msra.mxu0 0
    %517 = vmatprep.subr.bf16.mxu0 0
    %518 = vmatpush1.bf16.xpose.msra.mxu0 0
    %519 = vmatprep.subr.bf16.mxu0 0
    %520 = vmatpush1.bf16.xpose.msra.mxu0 0
    %521 = vmatprep.subr.bf16.mxu0 0
    %522 = vmatpush1.bf16.xpose.msra.mxu0 0
    %523 = vmatprep.subr.bf16.mxu0 0
    %524 = vmatpush1.bf16.xpose.msra.mxu0 0
    %525 = vmatprep.mubr.bf16.mxu0 0
    %526 = vmatmul.mubr.bf16.gmra.mrb[0].mxu0 %v488
    %v527 = vpop.f32.mrb[0].mxu0
    %v528 = vadd.f32 0.0, %v527
    %v529 = vpop.f32.mrb[0].mxu0
    %v530 = vpop.f32.mrb[0].mxu0
    %v531 = vpop.f32.mrb[0].mxu0
    %532 = vdwg.mxu0
    %v533 = vadd.f32 %v375, %v249
    %v534 = vadd.f32 %v426, %v249
    %v535 = vadd.f32 %v477, %v253
    %v536 = vadd.f32 %v528, %v253
    %vm537 = vcmask 64512
    %v538 = vsel %vm537, %v533, -inf
    %539 = vmax.xlane.f32.xlu0 %v538
    %v540 = vpop.xlane.xlu0 %539
    %v541 = vsel %vm537, %v534, -inf
    %542 = vmax.xlane.f32.xlu0 %v541
    %v543 = vpop.xlane.xlu0 %542
    %v544 = vsel %vm537, %v535, -inf
    %545 = vmax.xlane.f32.xlu0 %v544
    %v546 = vpop.xlane.xlu0 %545
    %v547 = vsel %vm537, %v536, -inf
    %548 = vmax.xlane.f32.xlu0 %v547
    %v549 = vpop.xlane.xlu0 %548
    %v550 = vsub.f32 %v533, %v540
    %v551 = vsub.f32 %v534, %v543
    %v552 = vsub.f32 %v535, %v546
    %v553 = vsub.f32 %v536, %v549
    %v554 = vmul.f32 %v550, 1.442695
    %v555 = vpow.pop %v554
    %v556 = vmul.f32 %v551, 1.442695
    %v557 = vpow.pop %v556
    %v558 = vmul.f32 %v552, 1.442695
    %v559 = vpow.pop %v558
    %v560 = vmul.f32 %v553, 1.442695
    %v561 = vpow.pop %v560
    %v562 = vsel %vm537, %v555, 0.0
    %563 = vadd.xlane.f32.xlu0 %v562
    %v564 = vpop.xlane.xlu0 %563
    %v565 = vsel %vm537, %v557, 0.0
    %566 = vadd.xlane.f32.xlu0 %v565
    %v567 = vpop.xlane.xlu0 %566
    %v568 = vsel %vm537, %v559, 0.0
    %569 = vadd.xlane.f32.xlu0 %v568
    %v570 = vpop.xlane.xlu0 %569
    %v571 = vsel %vm537, %v561, 0.0
    %572 = vadd.xlane.f32.xlu0 %v571
    %v573 = vpop.xlane.xlu0 %572
    %v574 = vrcp.pop %v564
    %v575 = vrcp.pop %v567
    %v576 = vrcp.pop %v570
    %v577 = vrcp.pop %v573
    %v578 = vmul.f32 %v555, %v574
    %v579 = vmul.f32 %v557, %v575
    %v580 = vmul.f32 %v559, %v576
    %v581 = vmul.f32 %v561, %v577
    %v582 = vpack.c.bf16 %v578, %v578
    %583 = vrot.lane.b32.xlu0 %v329, 64
    %v584 = vpop.permute.xlu0 %583
    %v586 = vsel %vm537, %v582, 0
    %vm588 = vcmask 1043456
    %v590 = vsel %vm588, %v584, 0
    %592 = vmatprep.subr.bf16.mxu0 0
    %593 = vmatpush1.bf16.msra.mxu0 %v590
    %594 = vmatprep.subr.bf16.mxu0 0
    %595 = vmatpush1.bf16.msra.mxu0 0
    %596 = vmatprep.subr.bf16.mxu0 0
    %597 = vmatpush1.bf16.msra.mxu0 0
    %598 = vmatprep.subr.bf16.mxu0 0
    %599 = vmatpush1.bf16.msra.mxu0 0
    %600 = vmatprep.subr.bf16.mxu0 0
    %601 = vmatpush1.bf16.msra.mxu0 0
    %602 = vmatprep.subr.bf16.mxu0 0
    %603 = vmatpush1.bf16.msra.mxu0 0
    %604 = vmatprep.subr.bf16.mxu0 0
    %605 = vmatpush1.bf16.msra.mxu0 0
    %606 = vmatprep.subr.bf16.mxu0 0
    %607 = vmatpush1.bf16.msra.mxu0 0
    %608 = vmatprep.subr.bf16.mxu0 0
    %609 = vmatpush1.bf16.msra.mxu0 0
    %610 = vmatprep.subr.bf16.mxu0 0
    %611 = vmatpush1.bf16.msra.mxu0 0
    %612 = vmatprep.subr.bf16.mxu0 0
    %613 = vmatpush1.bf16.msra.mxu0 0
    %614 = vmatprep.subr.bf16.mxu0 0
    %615 = vmatpush1.bf16.msra.mxu0 0
    %616 = vmatprep.subr.bf16.mxu0 0
    %617 = vmatpush1.bf16.msra.mxu0 0
    %618 = vmatprep.subr.bf16.mxu0 0
    %619 = vmatpush1.bf16.msra.mxu0 0
    %620 = vmatprep.subr.bf16.mxu0 0
    %621 = vmatpush1.bf16.msra.mxu0 0
    %622 = vmatprep.subr.bf16.mxu0 0
    %623 = vmatpush1.bf16.msra.mxu0 0
    %624 = vmatprep.mubr.bf16.mxu0 0
    %625 = vmatmul.mubr.bf16.gmra.mrb[0].mxu0 %v586
    %v626 = vpop.f32.mrb[0].mxu0
    %v627 = vadd.f32 0.0, %v626
    %v628 = vpop.f32.mrb[0].mxu0
    %v629 = vpop.f32.mrb[0].mxu0
    %v630 = vpop.f32.mrb[0].mxu0
    %631 = vdwg.mxu0
    %v632 = vpack.c.bf16 %v627, %v627
    %v633 = vpack.c.bf16 %v579, %v579
    %634 = vrot.lane.b32.xlu0 %v329, 48
    %v635 = vpop.permute.xlu0 %634
    %v637 = vsel %vm537, %v633, 0
    %v640 = vsel %vm588, %v635, 0
    %642 = vmatprep.subr.bf16.mxu0 0
    %643 = vmatpush1.bf16.msra.mxu0 %v640
    %644 = vmatprep.subr.bf16.mxu0 0
    %645 = vmatpush1.bf16.msra.mxu0 0
    %646 = vmatprep.subr.bf16.mxu0 0
    %647 = vmatpush1.bf16.msra.mxu0 0
    %648 = vmatprep.subr.bf16.mxu0 0
    %649 = vmatpush1.bf16.msra.mxu0 0
    %650 = vmatprep.subr.bf16.mxu0 0
    %651 = vmatpush1.bf16.msra.mxu0 0
    %652 = vmatprep.subr.bf16.mxu0 0
    %653 = vmatpush1.bf16.msra.mxu0 0
    %654 = vmatprep.subr.bf16.mxu0 0
    %655 = vmatpush1.bf16.msra.mxu0 0
    %656 = vmatprep.subr.bf16.mxu0 0
    %657 = vmatpush1.bf16.msra.mxu0 0
    %658 = vmatprep.subr.bf16.mxu0 0
    %659 = vmatpush1.bf16.msra.mxu0 0
    %660 = vmatprep.subr.bf16.mxu0 0
    %661 = vmatpush1.bf16.msra.mxu0 0
    %662 = vmatprep.subr.bf16.mxu0 0
    %663 = vmatpush1.bf16.msra.mxu0 0
    %664 = vmatprep.subr.bf16.mxu0 0
    %665 = vmatpush1.bf16.msra.mxu0 0
    %666 = vmatprep.subr.bf16.mxu0 0
    %667 = vmatpush1.bf16.msra.mxu0 0
    %668 = vmatprep.subr.bf16.mxu0 0
    %669 = vmatpush1.bf16.msra.mxu0 0
    %670 = vmatprep.subr.bf16.mxu0 0
    %671 = vmatpush1.bf16.msra.mxu0 0
    %672 = vmatprep.subr.bf16.mxu0 0
    %673 = vmatpush1.bf16.msra.mxu0 0
    %674 = vmatprep.mubr.bf16.mxu0 0
    %675 = vmatmul.mubr.bf16.gmra.mrb[0].mxu0 %v637
    %v676 = vpop.f32.mrb[0].mxu0
    %v677 = vadd.f32 0.0, %v676
    %v678 = vpop.f32.mrb[0].mxu0
    %v679 = vpop.f32.mrb[0].mxu0
    %v680 = vpop.f32.mrb[0].mxu0
    %681 = vdwg.mxu0
    %v682 = vpack.c.bf16 %v677, %v677
    %v685 = vunpack.c.l.b16 %v260
    %v686 = vunpack.c.l.b16 %v261
    %v687 = vpack.c.b16 %v686, %v685
    %v690 = vsel %vm333, %v682, 0
    %692 = vmatprep.subr.bf16.mxu0 0
    %693 = vmatpush1.bf16.msra.mxu0 %v687
    %694 = vmatprep.subr.bf16.mxu0 0
    %695 = vmatpush1.bf16.msra.mxu0 0
    %696 = vmatprep.subr.bf16.mxu0 0
    %697 = vmatpush1.bf16.msra.mxu0 0
    %698 = vmatprep.subr.bf16.mxu0 0
    %699 = vmatpush1.bf16.msra.mxu0 0
    %700 = vmatprep.subr.bf16.mxu0 0
    %701 = vmatpush1.bf16.msra.mxu0 0
    %702 = vmatprep.subr.bf16.mxu0 0
    %703 = vmatpush1.bf16.msra.mxu0 0
    %704 = vmatprep.subr.bf16.mxu0 0
    %705 = vmatpush1.bf16.msra.mxu0 0
    %706 = vmatprep.subr.bf16.mxu0 0
    %707 = vmatpush1.bf16.msra.mxu0 0
    %708 = vmatprep.subr.bf16.mxu0 0
    %709 = vmatpush1.bf16.msra.mxu0 0
    %710 = vmatprep.subr.bf16.mxu0 0
    %711 = vmatpush1.bf16.msra.mxu0 0
    %712 = vmatprep.subr.bf16.mxu0 0
    %713 = vmatpush1.bf16.msra.mxu0 0
    %714 = vmatprep.subr.bf16.mxu0 0
    %715 = vmatpush1.bf16.msra.mxu0 0
    %716 = vmatprep.subr.bf16.mxu0 0
    %717 = vmatpush1.bf16.msra.mxu0 0
    %718 = vmatprep.subr.bf16.mxu0 0
    %719 = vmatpush1.bf16.msra.mxu0 0
    %720 = vmatprep.subr.bf16.mxu0 0
    %721 = vmatpush1.bf16.msra.mxu0 0
    %722 = vmatprep.subr.bf16.mxu0 0
    %723 = vmatpush1.bf16.msra.mxu0 0
    %724 = vmatprep.mubr.bf16.mxu0 0
    %725 = vmatmul.mubr.bf16.gmra.mrb[0].mxu0 %v690
    %v726 = vpop.f32.mrb[0].mxu0
    %v727 = vadd.f32 0.0, %v726
    %v728 = vpop.f32.mrb[0].mxu0
    %v729 = vpop.f32.mrb[0].mxu0
    %v730 = vpop.f32.mrb[0].mxu0
    %731 = vdwg.mxu0
    %v734 = vunpack.c.l.b16 %v258
    %v735 = vunpack.c.l.b16 %v259
    %v736 = vpack.c.b16 %v735, %v734
    %v739 = vsel %vm333, %v632, 0
    %741 = vmatprep.subr.bf16.mxu0 0
    %742 = vmatpush1.bf16.msra.mxu0 %v736
    %743 = vmatprep.subr.bf16.mxu0 0
    %744 = vmatpush1.bf16.msra.mxu0 0
    %745 = vmatprep.subr.bf16.mxu0 0
    %746 = vmatpush1.bf16.msra.mxu0 0
    %747 = vmatprep.subr.bf16.mxu0 0
    %748 = vmatpush1.bf16.msra.mxu0 0
    %749 = vmatprep.subr.bf16.mxu0 0
    %750 = vmatpush1.bf16.msra.mxu0 0
    %751 = vmatprep.subr.bf16.mxu0 0
    %752 = vmatpush1.bf16.msra.mxu0 0
    %753 = vmatprep.subr.bf16.mxu0 0
    %754 = vmatpush1.bf16.msra.mxu0 0
    %755 = vmatprep.subr.bf16.mxu0 0
    %756 = vmatpush1.bf16.msra.mxu0 0
    %757 = vmatprep.subr.bf16.mxu0 0
    %758 = vmatpush1.bf16.msra.mxu0 0
    %759 = vmatprep.subr.bf16.mxu0 0
    %760 = vmatpush1.bf16.msra.mxu0 0
    %761 = vmatprep.subr.bf16.mxu0 0
    %762 = vmatpush1.bf16.msra.mxu0 0
    %763 = vmatprep.subr.bf16.mxu0 0
    %764 = vmatpush1.bf16.msra.mxu0 0
    %765 = vmatprep.subr.bf16.mxu0 0
    %766 = vmatpush1.bf16.msra.mxu0 0
    %767 = vmatprep.subr.bf16.mxu0 0
    %768 = vmatpush1.bf16.msra.mxu0 0
    %769 = vmatprep.subr.bf16.mxu0 0
    %770 = vmatpush1.bf16.msra.mxu0 0
    %771 = vmatprep.subr.bf16.mxu0 0
    %772 = vmatpush1.bf16.msra.mxu0 0
    %773 = vmatprep.mubr.bf16.mxu0 0
    %774 = vmatmul.mubr.bf16.gmra.mrb[0].mxu0 %v739
    %v775 = vpop.f32.mrb[0].mxu0
    %v776 = vadd.f32 %v727, %v775
    %v777 = vpop.f32.mrb[0].mxu0
    %v778 = vpop.f32.mrb[0].mxu0
    %v779 = vpop.f32.mrb[0].mxu0
    %780 = vdwg.mxu0
    %v781 = vpack.c.bf16 %v580, %v580
    %782 = vrot.lane.b32.xlu0 %v432, 64
    %v783 = vpop.permute.xlu0 %782
    %v785 = vsel %vm537, %v781, 0
    %v788 = vsel %vm588, %v783, 0
    %790 = vmatprep.subr.bf16.mxu0 0
    %791 = vmatpush1.bf16.msra.mxu0 %v788
    %792 = vmatprep.subr.bf16.mxu0 0
    %793 = vmatpush1.bf16.msra.mxu0 0
    %794 = vmatprep.subr.bf16.mxu0 0
    %795 = vmatpush1.bf16.msra.mxu0 0
    %796 = vmatprep.subr.bf16.mxu0 0
    %797 = vmatpush1.bf16.msra.mxu0 0
    %798 = vmatprep.subr.bf16.mxu0 0
    %799 = vmatpush1.bf16.msra.mxu0 0
    %800 = vmatprep.subr.bf16.mxu0 0
    %801 = vmatpush1.bf16.msra.mxu0 0
    %802 = vmatprep.subr.bf16.mxu0 0
    %803 = vmatpush1.bf16.msra.mxu0 0
    %804 = vmatprep.subr.bf16.mxu0 0
    %805 = vmatpush1.bf16.msra.mxu0 0
    %806 = vmatprep.subr.bf16.mxu0 0
    %807 = vmatpush1.bf16.msra.mxu0 0
    %808 = vmatprep.subr.bf16.mxu0 0
    %809 = vmatpush1.bf16.msra.mxu0 0
    %810 = vmatprep.subr.bf16.mxu0 0
    %811 = vmatpush1.bf16.msra.mxu0 0
    %812 = vmatprep.subr.bf16.mxu0 0
    %813 = vmatpush1.bf16.msra.mxu0 0
    %814 = vmatprep.subr.bf16.mxu0 0
    %815 = vmatpush1.bf16.msra.mxu0 0
    %816 = vmatprep.subr.bf16.mxu0 0
    %817 = vmatpush1.bf16.msra.mxu0 0
    %818 = vmatprep.subr.bf16.mxu0 0
    %819 = vmatpush1.bf16.msra.mxu0 0
    %820 = vmatprep.subr.bf16.mxu0 0
    %821 = vmatpush1.bf16.msra.mxu0 0
    %822 = vmatprep.mubr.bf16.mxu0 0
    %823 = vmatmul.mubr.bf16.gmra.mrb[0].mxu0 %v785
    %v824 = vpop.f32.mrb[0].mxu0
    %v825 = vadd.f32 0.0, %v824
    %v826 = vpop.f32.mrb[0].mxu0
    %v827 = vpop.f32.mrb[0].mxu0
    %v828 = vpop.f32.mrb[0].mxu0
    %829 = vdwg.mxu0
    %v830 = vpack.c.bf16 %v825, %v825
    %v831 = vpack.c.bf16 %v581, %v581
    %832 = vrot.lane.b32.xlu0 %v432, 48
    %v833 = vpop.permute.xlu0 %832
    %v835 = vsel %vm537, %v831, 0
    %v838 = vsel %vm588, %v833, 0
    %840 = vmatprep.subr.bf16.mxu0 0
    %841 = vmatpush1.bf16.msra.mxu0 %v838
    %842 = vmatprep.subr.bf16.mxu0 0
    %843 = vmatpush1.bf16.msra.mxu0 0
    %844 = vmatprep.subr.bf16.mxu0 0
    %845 = vmatpush1.bf16.msra.mxu0 0
    %846 = vmatprep.subr.bf16.mxu0 0
    %847 = vmatpush1.bf16.msra.mxu0 0
    %848 = vmatprep.subr.bf16.mxu0 0
    %849 = vmatpush1.bf16.msra.mxu0 0
    %850 = vmatprep.subr.bf16.mxu0 0
    %851 = vmatpush1.bf16.msra.mxu0 0
    %852 = vmatprep.subr.bf16.mxu0 0
    %853 = vmatpush1.bf16.msra.mxu0 0
    %854 = vmatprep.subr.bf16.mxu0 0
    %855 = vmatpush1.bf16.msra.mxu0 0
    %856 = vmatprep.subr.bf16.mxu0 0
    %857 = vmatpush1.bf16.msra.mxu0 0
    %858 = vmatprep.subr.bf16.mxu0 0
    %859 = vmatpush1.bf16.msra.mxu0 0
    %860 = vmatprep.subr.bf16.mxu0 0
    %861 = vmatpush1.bf16.msra.mxu0 0
    %862 = vmatprep.subr.bf16.mxu0 0
    %863 = vmatpush1.bf16.msra.mxu0 0
    %864 = vmatprep.subr.bf16.mxu0 0
    %865 = vmatpush1.bf16.msra.mxu0 0
    %866 = vmatprep.subr.bf16.mxu0 0
    %867 = vmatpush1.bf16.msra.mxu0 0
    %868 = vmatprep.subr.bf16.mxu0 0
    %869 = vmatpush1.bf16.msra.mxu0 0
    %870 = vmatprep.subr.bf16.mxu0 0
    %871 = vmatpush1.bf16.msra.mxu0 0
    %872 = vmatprep.mubr.bf16.mxu0 0
    %873 = vmatmul.mubr.bf16.gmra.mrb[0].mxu0 %v835
    %v874 = vpop.f32.mrb[0].mxu0
    %v875 = vadd.f32 0.0, %v874
    %v876 = vpop.f32.mrb[0].mxu0
    %v877 = vpop.f32.mrb[0].mxu0
    %v878 = vpop.f32.mrb[0].mxu0
    %879 = vdwg.mxu0
    %v880 = vpack.c.bf16 %v875, %v875
    %v882 = vsel %vm333, %v880, 0
    %884 = vmatprep.subr.bf16.mxu0 0
    %885 = vmatpush1.bf16.msra.mxu0 %v687
    %886 = vmatprep.subr.bf16.mxu0 0
    %887 = vmatpush1.bf16.msra.mxu0 0
    %888 = vmatprep.subr.bf16.mxu0 0
    %889 = vmatpush1.bf16.msra.mxu0 0
    %890 = vmatprep.subr.bf16.mxu0 0
    %891 = vmatpush1.bf16.msra.mxu0 0
    %892 = vmatprep.subr.bf16.mxu0 0
    %893 = vmatpush1.bf16.msra.mxu0 0
    %894 = vmatprep.subr.bf16.mxu0 0
    %895 = vmatpush1.bf16.msra.mxu0 0
    %896 = vmatprep.subr.bf16.mxu0 0
    %897 = vmatpush1.bf16.msra.mxu0 0
    %898 = vmatprep.subr.bf16.mxu0 0
    %899 = vmatpush1.bf16.msra.mxu0 0
    %900 = vmatprep.subr.bf16.mxu0 0
    %901 = vmatpush1.bf16.msra.mxu0 0
    %902 = vmatprep.subr.bf16.mxu0 0
    %903 = vmatpush1.bf16.msra.mxu0 0
    %904 = vmatprep.subr.bf16.mxu0 0
    %905 = vmatpush1.bf16.msra.mxu0 0
    %906 = vmatprep.subr.bf16.mxu0 0
    %907 = vmatpush1.bf16.msra.mxu0 0
    %908 = vmatprep.subr.bf16.mxu0 0
    %909 = vmatpush1.bf16.msra.mxu0 0
    %910 = vmatprep.subr.bf16.mxu0 0
    %911 = vmatpush1.bf16.msra.mxu0 0
    %912 = vmatprep.subr.bf16.mxu0 0
    %913 = vmatpush1.bf16.msra.mxu0 0
    %914 = vmatprep.subr.bf16.mxu0 0
    %915 = vmatpush1.bf16.msra.mxu0 0
    %916 = vmatprep.mubr.bf16.mxu0 0
    %917 = vmatmul.mubr.bf16.gmra.mrb[0].mxu0 %v882
    %v918 = vpop.f32.mrb[0].mxu0
    %v919 = vadd.f32 0.0, %v918
    %v920 = vpop.f32.mrb[0].mxu0
    %v921 = vpop.f32.mrb[0].mxu0
    %v922 = vpop.f32.mrb[0].mxu0
    %923 = vdwg.mxu0
    %v925 = vsel %vm333, %v830, 0
    %927 = vmatprep.subr.bf16.mxu0 0
    %928 = vmatpush1.bf16.msra.mxu0 %v736
    %929 = vmatprep.subr.bf16.mxu0 0
    %930 = vmatpush1.bf16.msra.mxu0 0
    %931 = vmatprep.subr.bf16.mxu0 0
    %932 = vmatpush1.bf16.msra.mxu0 0
    %933 = vmatprep.subr.bf16.mxu0 0
    %934 = vmatpush1.bf16.msra.mxu0 0
    %935 = vmatprep.subr.bf16.mxu0 0
    %936 = vmatpush1.bf16.msra.mxu0 0
    %937 = vmatprep.subr.bf16.mxu0 0
    %938 = vmatpush1.bf16.msra.mxu0 0
    %939 = vmatprep.subr.bf16.mxu0 0
    %940 = vmatpush1.bf16.msra.mxu0 0
    %941 = vmatprep.subr.bf16.mxu0 0
    %942 = vmatpush1.bf16.msra.mxu0 0
    %943 = vmatprep.subr.bf16.mxu0 0
    %944 = vmatpush1.bf16.msra.mxu0 0
    %945 = vmatprep.subr.bf16.mxu0 0
    %946 = vmatpush1.bf16.msra.mxu0 0
    %947 = vmatprep.subr.bf16.mxu0 0
    %948 = vmatpush1.bf16.msra.mxu0 0
    %949 = vmatprep.subr.bf16.mxu0 0
    %950 = vmatpush1.bf16.msra.mxu0 0
    %951 = vmatprep.subr.bf16.mxu0 0
    %952 = vmatpush1.bf16.msra.mxu0 0
    %953 = vmatprep.subr.bf16.mxu0 0
    %954 = vmatpush1.bf16.msra.mxu0 0
    %955 = vmatprep.subr.bf16.mxu0 0
    %956 = vmatpush1.bf16.msra.mxu0 0
    %957 = vmatprep.subr.bf16.mxu0 0
    %958 = vmatpush1.bf16.msra.mxu0 0
    %959 = vmatprep.mubr.bf16.mxu0 0
    %960 = vmatmul.mubr.bf16.gmra.mrb[0].mxu0 %v925
    %v961 = vpop.f32.mrb[0].mxu0
    %v962 = vadd.f32 %v919, %v961
    %v963 = vpop.f32.mrb[0].mxu0
    %v964 = vpop.f32.mrb[0].mxu0
    %v965 = vpop.f32.mrb[0].mxu0
    %966 = vdwg.mxu0
    %v967 = vld [vmem:[%s10] sm:$0x1]
    %v969 = vlaneseq
    %v970 = vshrl.u32 %v969, 7
    %v971 = vsub.s32 0, %v970
    %v972 = vrot.slane %v967, %v971
    %v974 = vadd.f32 %v776, %v972
    %v975 = vadd.f32 %v962, %v972
    %v976 = vadd.f32 %v974, %v241
    %v977 = vadd.f32 %v975, %v242
    %v978 = vld [vmem:[%s11] sm:$0x1]
    %v979 = vld [vmem:[%s12] sm:$0x1]
    %v980 = vsel %vm193, %v976, 0.0
    %981 = vadd.xlane.f32.xlu0 %v980
    %v982 = vpop.xlane.xlu0 %981
    %v983 = vsel %vm193, %v977, 0.0
    %984 = vadd.xlane.f32.xlu0 %v983
    %v985 = vpop.xlane.xlu0 %984
    %v986 = vmul.f32 %v982, %v200
    %v987 = vmul.f32 %v985, %v200
    %v988 = vmul.f32 %v976, %v976
    %v989 = vmul.f32 %v977, %v977
    %v990 = vsel %vm193, %v988, 0.0
    %991 = vadd.xlane.f32.xlu0 %v990
    %v992 = vpop.xlane.xlu0 %991
    %v993 = vsel %vm193, %v989, 0.0
    %994 = vadd.xlane.f32.xlu0 %v993
    %v995 = vpop.xlane.xlu0 %994
    %v996 = vmul.f32 %v992, %v200
    %v997 = vmul.f32 %v995, %v200
    %v998 = vmul.f32 %v986, %v986
    %v999 = vmul.f32 %v987, %v987
    %v1000 = vsub.f32 %v996, %v998
    %v1001 = vsub.f32 %v997, %v999
    %v1002 = vmax.f32 %v1000, 0.0
    %v1003 = vmax.f32 %v1001, 0.0
    %v1004 = vsub.f32 %v976, %v986
    %v1005 = vsub.f32 %v977, %v987
    %v1006 = vadd.f32 %v1002, 1e-12
    %v1007 = vadd.f32 %v1003, 1e-12
    %v1008 = vrsqrt.pop %v1006
    %v1009 = vrsqrt.pop %v1007
    %v1010 = vmul.f32 %v1004, %v1008
    %v1011 = vmul.f32 %v1005, %v1009
    %v1013 = vlaneseq
    %v1014 = vshrl.u32 %v1013, 7
    %v1015 = vsub.s32 0, %v1014
    %v1016 = vrot.slane %v978, %v1015
    %v1018 = vmul.f32 %v1010, %v1016
    %v1019 = vmul.f32 %v1011, %v1016
    %v1021 = vlaneseq
    %v1022 = vshrl.u32 %v1021, 7
    %v1023 = vsub.s32 0, %v1022
    %v1024 = vrot.slane %v979, %v1023
    %v1026 = vadd.f32 %v1018, %v1024
    %v1027 = vadd.f32 %v1019, %v1024
    %v1028 = vpack.c.bf16 %v1027, %v1026
    %v1029 = vld [vmem:[%s13] sm:$0xf]
    %v1030 = vld [vmem:[%s13 + $0x4] sm:$0xf]
    %v1031 = vld [vmem:[%s13 + $0x8] sm:$0xf]
    %v1032 = vld [vmem:[%s13 + $0xc] sm:$0xf]
    %v1033 = vld [vmem:[%s14] sm:$0x1]
    %v1035 = vlaneseq
    %v1036 = vshrl.u32 %v1035, 7
    %v1037 = vsub.s32 0, %v1036
    %v1038 = vrot.slane %v1033, %v1037
    %v1044 = vunpack.c.l.b16 %v1029
    %v1045 = vunpack.c.l.b16 %v1030
    %v1046 = vunpack.c.l.b16 %v1031
    %v1047 = vunpack.c.l.b16 %v1032
    %v1048 = vpack.c.b16 %v1045, %v1044
    %v1049 = vpack.c.b16 %v1047, %v1046
    %v1053 = vsel %vm193, %v1028, 0
    %1055 = vmatprep.subr.bf16.mxu0 0
    %1056 = vmatpush1.bf16.msra.mxu0 %v1048
    %1057 = vmatprep.subr.bf16.mxu0 0
    %1058 = vmatpush1.bf16.msra.mxu0 %v1049
    %1059 = vmatprep.subr.bf16.mxu0 0
    %1060 = vmatpush1.bf16.msra.mxu0 0
    %1061 = vmatprep.subr.bf16.mxu0 0
    %1062 = vmatpush1.bf16.msra.mxu0 0
    %1063 = vmatprep.subr.bf16.mxu0 0
    %1064 = vmatpush1.bf16.msra.mxu0 0
    %1065 = vmatprep.subr.bf16.mxu0 0
    %1066 = vmatpush1.bf16.msra.mxu0 0
    %1067 = vmatprep.subr.bf16.mxu0 0
    %1068 = vmatpush1.bf16.msra.mxu0 0
    %1069 = vmatprep.subr.bf16.mxu0 0
    %1070 = vmatpush1.bf16.msra.mxu0 0
    %1071 = vmatprep.subr.bf16.mxu0 0
    %1072 = vmatpush1.bf16.msra.mxu0 0
    %1073 = vmatprep.subr.bf16.mxu0 0
    %1074 = vmatpush1.bf16.msra.mxu0 0
    %1075 = vmatprep.subr.bf16.mxu0 0
    %1076 = vmatpush1.bf16.msra.mxu0 0
    %1077 = vmatprep.subr.bf16.mxu0 0
    %1078 = vmatpush1.bf16.msra.mxu0 0
    %1079 = vmatprep.subr.bf16.mxu0 0
    %1080 = vmatpush1.bf16.msra.mxu0 0
    %1081 = vmatprep.subr.bf16.mxu0 0
    %1082 = vmatpush1.bf16.msra.mxu0 0
    %1083 = vmatprep.subr.bf16.mxu0 0
    %1084 = vmatpush1.bf16.msra.mxu0 0
    %1085 = vmatprep.subr.bf16.mxu0 0
    %1086 = vmatpush1.bf16.msra.mxu0 0
    %1087 = vmatprep.mubr.bf16.mxu0 0
    %1088 = vmatmul.mubr.bf16.gmra.mrb[0].mxu0 %v1053
    %v1089 = vpop.f32.mrb[0].mxu0
    %v1090 = vadd.f32 %v1038, %v1089
    %v1091 = vpop.f32.mrb[0].mxu0
    %v1092 = vpop.f32.mrb[0].mxu0
    %v1093 = vadd.f32 %v1038, %v1092
    %v1094 = vpop.f32.mrb[0].mxu0
    %1095 = vdwg.mxu0
    %v1096 = vmul.f32 %v1090, %v1090
    %v1097 = vmul.f32 %v1093, %v1093
    %v1098 = vmul.f32 %v1090, %v1096
    %v1099 = vmul.f32 %v1093, %v1097
    %v1100 = vmul.f32 %v1098, 0.044715
    %v1101 = vmul.f32 %v1099, 0.044715
    %v1102 = vadd.f32 %v1090, %v1100
    %v1103 = vadd.f32 %v1093, %v1101
    %v1104 = vmul.f32 %v1102, 0.7978846
    %v1105 = vmul.f32 %v1103, 0.7978846
    %v1106 = vtanh.pop %v1104
    %v1107 = vtanh.pop %v1105
    %v1108 = vadd.f32 %v1106, 1.0
    %v1109 = vadd.f32 %v1107, 1.0
    %v1110 = vmul.f32 %v1108, 0.5
    %v1111 = vmul.f32 %v1109, 0.5
    %v1112 = vmul.f32 %v1090, %v1110
    %v1113 = vmul.f32 %v1093, %v1111
    %v1114 = vpack.c.bf16 %v1113, %v1112
    %v1115 = vld [vmem:[%s15] sm:$0xf]
    %v1116 = vld [vmem:[%s15 + $0x4] sm:$0xf]
    %v1117 = vld [vmem:[%s15 + $0x8] sm:$0xf]
    %v1118 = vld [vmem:[%s15 + $0xc] sm:$0xf]
    %v1119 = vld [vmem:[%s15 + $0x10] sm:$0xf]
    %v1120 = vld [vmem:[%s15 + $0x14] sm:$0xf]
    %v1121 = vld [vmem:[%s15 + $0x18] sm:$0xf]
    %v1122 = vld [vmem:[%s15 + $0x1c] sm:$0xf]
    %v1123 = vld [vmem:[%s15 + $0x20] sm:$0xf]
    %v1124 = vld [vmem:[%s15 + $0x24] sm:$0xf]
    %v1125 = vld [vmem:[%s15 + $0x28] sm:$0xf]
    %v1126 = vld [vmem:[%s15 + $0x2c] sm:$0xf]
    %v1127 = vld [vmem:[%s15 + $0x30] sm:$0xf]
    %v1128 = vld [vmem:[%s15 + $0x34] sm:$0xf]
    %v1129 = vld [vmem:[%s15 + $0x38] sm:$0xf]
    %v1130 = vld [vmem:[%s15 + $0x3c] sm:$0xf]
    %v1131 = vld [vmem:[%s16] sm:$0x1]
    %v1133 = vlaneseq
    %v1134 = vshrl.u32 %v1133, 7
    %v1135 = vsub.s32 0, %v1134
    %v1136 = vrot.slane %v1131, %v1135
    %v1154 = vunpack.c.l.b16 %v1115
    %v1155 = vunpack.c.l.b16 %v1116
    %v1156 = vunpack.c.l.b16 %v1117
    %v1157 = vunpack.c.l.b16 %v1118
    %v1158 = vunpack.c.l.b16 %v1119
    %v1159 = vunpack.c.l.b16 %v1120
    %v1160 = vunpack.c.l.b16 %v1121
    %v1161 = vunpack.c.l.b16 %v1122
    %v1162 = vunpack.c.l.b16 %v1123
    %v1163 = vunpack.c.l.b16 %v1124
    %v1164 = vunpack.c.l.b16 %v1125
    %v1165 = vunpack.c.l.b16 %v1126
    %v1166 = vunpack.c.l.b16 %v1127
    %v1167 = vunpack.c.l.b16 %v1128
    %v1168 = vunpack.c.l.b16 %v1129
    %v1169 = vunpack.c.l.b16 %v1130
    %v1170 = vpack.c.b16 %v1155, %v1154
    %v1171 = vpack.c.b16 %v1157, %v1156
    %v1172 = vpack.c.b16 %v1159, %v1158
    %v1173 = vpack.c.b16 %v1161, %v1160
    %v1174 = vpack.c.b16 %v1163, %v1162
    %v1175 = vpack.c.b16 %v1165, %v1164
    %v1176 = vpack.c.b16 %v1167, %v1166
    %v1177 = vpack.c.b16 %v1169, %v1168
    %1186 = vmatprep.subr.bf16.mxu0 0
    %1187 = vmatpush1.bf16.msra.mxu0 %v1170
    %1188 = vmatprep.subr.bf16.mxu0 0
    %1189 = vmatpush1.bf16.msra.mxu0 %v1171
    %1190 = vmatprep.subr.bf16.mxu0 0
    %1191 = vmatpush1.bf16.msra.mxu0 %v1172
    %1192 = vmatprep.subr.bf16.mxu0 0
    %1193 = vmatpush1.bf16.msra.mxu0 %v1173
    %1194 = vmatprep.subr.bf16.mxu0 0
    %1195 = vmatpush1.bf16.msra.mxu0 %v1174
    %1196 = vmatprep.subr.bf16.mxu0 0
    %1197 = vmatpush1.bf16.msra.mxu0 %v1175
    %1198 = vmatprep.subr.bf16.mxu0 0
    %1199 = vmatpush1.bf16.msra.mxu0 %v1176
    %1200 = vmatprep.subr.bf16.mxu0 0
    %1201 = vmatpush1.bf16.msra.mxu0 %v1177
    %1202 = vmatprep.subr.bf16.mxu0 0
    %1203 = vmatpush1.bf16.msra.mxu0 0
    %1204 = vmatprep.subr.bf16.mxu0 0
    %1205 = vmatpush1.bf16.msra.mxu0 0
    %1206 = vmatprep.subr.bf16.mxu0 0
    %1207 = vmatpush1.bf16.msra.mxu0 0
    %1208 = vmatprep.subr.bf16.mxu0 0
    %1209 = vmatpush1.bf16.msra.mxu0 0
    %1210 = vmatprep.subr.bf16.mxu0 0
    %1211 = vmatpush1.bf16.msra.mxu0 0
    %1212 = vmatprep.subr.bf16.mxu0 0
    %1213 = vmatpush1.bf16.msra.mxu0 0
    %1214 = vmatprep.subr.bf16.mxu0 0
    %1215 = vmatpush1.bf16.msra.mxu0 0
    %1216 = vmatprep.subr.bf16.mxu0 0
    %1217 = vmatpush1.bf16.msra.mxu0 0
    %1218 = vmatprep.mubr.bf16.mxu0 0
    %1219 = vmatmul.mubr.bf16.gmra.mrb[0].mxu0 %v1114
    %v1220 = vpop.f32.mrb[0].mxu0
    %v1221 = vadd.f32 %v1136, %v1220
    %v1222 = vpop.f32.mrb[0].mxu0
    %v1223 = vpop.f32.mrb[0].mxu0
    %v1224 = vadd.f32 %v1136, %v1223
    %v1225 = vpop.f32.mrb[0].mxu0
    %1226 = vdwg.mxu0
    %v1227 = vadd.f32 %v1221, %v1026
    %v1228 = vadd.f32 %v1224, %v1027
    %v1229 = vld [vmem:[%s17] sm:$0x1]
    %v1230 = vld [vmem:[%s18] sm:$0x1]
    %v1231 = vsel %vm193, %v1227, 0.0
    %1232 = vadd.xlane.f32.xlu0 %v1231
    %v1233 = vpop.xlane.xlu0 %1232
    %v1234 = vsel %vm193, %v1228, 0.0
    %1235 = vadd.xlane.f32.xlu0 %v1234
    %v1236 = vpop.xlane.xlu0 %1235
    %v1237 = vmul.f32 %v1233, %v200
    %v1238 = vmul.f32 %v1236, %v200
    %v1239 = vmul.f32 %v1227, %v1227
    %v1240 = vmul.f32 %v1228, %v1228
    %v1241 = vsel %vm193, %v1239, 0.0
    %1242 = vadd.xlane.f32.xlu0 %v1241
    %v1243 = vpop.xlane.xlu0 %1242
    %v1244 = vsel %vm193, %v1240, 0.0
    %1245 = vadd.xlane.f32.xlu0 %v1244
    %v1246 = vpop.xlane.xlu0 %1245
    %v1247 = vmul.f32 %v1243, %v200
    %v1248 = vmul.f32 %v1246, %v200
    %v1249 = vmul.f32 %v1237, %v1237
    %v1250 = vmul.f32 %v1238, %v1238
    %v1251 = vsub.f32 %v1247, %v1249
    %v1252 = vsub.f32 %v1248, %v1250
    %v1253 = vmax.f32 %v1251, 0.0
    %v1254 = vmax.f32 %v1252, 0.0
    %v1255 = vsub.f32 %v1227, %v1237
    %v1256 = vsub.f32 %v1228, %v1238
    %v1257 = vadd.f32 %v1253, 1e-12
    %v1258 = vadd.f32 %v1254, 1e-12
    %v1259 = vrsqrt.pop %v1257
    %v1260 = vrsqrt.pop %v1258
    %v1261 = vmul.f32 %v1255, %v1259
    %v1262 = vmul.f32 %v1256, %v1260
    %v1264 = vlaneseq
    %v1265 = vshrl.u32 %v1264, 7
    %v1266 = vsub.s32 0, %v1265
    %v1267 = vrot.slane %v1229, %v1266
    %v1269 = vmul.f32 %v1261, %v1267
    %v1270 = vmul.f32 %v1262, %v1267
    %v1272 = vlaneseq
    %v1273 = vshrl.u32 %v1272, 7
    %v1274 = vsub.s32 0, %v1273
    %v1275 = vrot.slane %v1230, %v1274
    %v1277 = vadd.f32 %v1269, %v1275
    %v1278 = vadd.f32 %v1270, %v1275
    %s1279 = scalar_lea.vmem %s7, 16
    %v1280 = vld [vmem:[%s1279] sm:$0xf]
    %v1281 = vld [vmem:[%s1279 + $0x4] sm:$0xf]
    %v1282 = vld [vmem:[%s1279 + $0x8] sm:$0xf]
    %v1283 = vld [vmem:[%s1279 + $0xc] sm:$0xf]
    %s1284 = scalar_lea.vmem %s9, 16
    %v1285 = vld [vmem:[%s1284] sm:$0xf]
    %v1286 = vld [vmem:[%s1284 + $0x4] sm:$0xf]
    %v1287 = vld [vmem:[%s1284 + $0x8] sm:$0xf]
    %v1288 = vld [vmem:[%s1284 + $0xc] sm:$0xf]
    %v1289 = vpack.c.bf16 %v1278, %v1277
    %s1290 = scalar_lea.vmem %s8, 1
    %v1291 = vld [vmem:[%s1290] sm:$0x1]
    %v1293 = vlaneseq
    %v1294 = vshrl.u32 %v1293, 7
    %v1295 = vsub.s32 0, %v1294
    %v1296 = vrot.slane %v1291, %v1295
    %v1302 = vunpack.c.l.b16 %v1280
    %v1303 = vunpack.c.l.b16 %v1281
    %v1304 = vunpack.c.l.b16 %v1282
    %v1305 = vunpack.c.l.b16 %v1283
    %v1306 = vpack.c.b16 %v1303, %v1302
    %v1307 = vpack.c.b16 %v1305, %v1304
    %v1311 = vsel %vm193, %v1289, 0
    %1313 = vmatprep.subr.bf16.mxu0 0
    %1314 = vmatpush1.bf16.msra.mxu0 %v1306
    %1315 = vmatprep.subr.bf16.mxu0 0
    %1316 = vmatpush1.bf16.msra.mxu0 %v1307
    %1317 = vmatprep.subr.bf16.mxu0 0
    %1318 = vmatpush1.bf16.msra.mxu0 0
    %1319 = vmatprep.subr.bf16.mxu0 0
    %1320 = vmatpush1.bf16.msra.mxu0 0
    %1321 = vmatprep.subr.bf16.mxu0 0
    %1322 = vmatpush1.bf16.msra.mxu0 0
    %1323 = vmatprep.subr.bf16.mxu0 0
    %1324 = vmatpush1.bf16.msra.mxu0 0
    %1325 = vmatprep.subr.bf16.mxu0 0
    %1326 = vmatpush1.bf16.msra.mxu0 0
    %1327 = vmatprep.subr.bf16.mxu0 0
    %1328 = vmatpush1.bf16.msra.mxu0 0
    %1329 = vmatprep.subr.bf16.mxu0 0
    %1330 = vmatpush1.bf16.msra.mxu0 0
    %1331 = vmatprep.subr.bf16.mxu0 0
    %1332 = vmatpush1.bf16.msra.mxu0 0
    %1333 = vmatprep.subr.bf16.mxu0 0
    %1334 = vmatpush1.bf16.msra.mxu0 0
    %1335 = vmatprep.subr.bf16.mxu0 0
    %1336 = vmatpush1.bf16.msra.mxu0 0
    %1337 = vmatprep.subr.bf16.mxu0 0
    %1338 = vmatpush1.bf16.msra.mxu0 0
    %1339 = vmatprep.subr.bf16.mxu0 0
    %1340 = vmatpush1.bf16.msra.mxu0 0
    %1341 = vmatprep.subr.bf16.mxu0 0
    %1342 = vmatpush1.bf16.msra.mxu0 0
    %1343 = vmatprep.subr.bf16.mxu0 0
    %1344 = vmatpush1.bf16.msra.mxu0 0
    %1345 = vmatprep.mubr.bf16.mxu0 0
    %1346 = vmatmul.mubr.bf16.gmra.mrb[0].mxu0 %v1311
    %v1347 = vpop.f32.mrb[0].mxu0
    %v1348 = vadd.f32 %v1296, %v1347
    %v1349 = vpop.f32.mrb[0].mxu0
    %v1350 = vpop.f32.mrb[0].mxu0
    %v1351 = vadd.f32 %v1296, %v1350
    %v1352 = vpop.f32.mrb[0].mxu0
    %1353 = vdwg.mxu0
    %v1354 = vmul.f32 %v1348, 0.25
    %v1355 = vmul.f32 %v1351, 0.25
    %v1356 = vpack.c.bf16 %v1354, %v1354
    %v1357 = vpack.c.bf16 %v1348, %v1348
    %1359 = vrot.lane.b32.xlu0 %v1357, 96
    %v1360 = vpop.permute.xlu0 %1359
    %v1362 = vsel %vm333, %v1356, 0
    %v1365 = vsel %vm333, %v1360, 0
    %1367 = vmatprep.subr.bf16.mxu0 0
    %1368 = vmatpush1.bf16.xpose.msra.mxu0 %v1365
    %1369 = vmatprep.subr.bf16.mxu0 0
    %1370 = vmatpush1.bf16.xpose.msra.mxu0 0
    %1371 = vmatprep.subr.bf16.mxu0 0
    %1372 = vmatpush1.bf16.xpose.msra.mxu0 0
    %1373 = vmatprep.subr.bf16.mxu0 0
    %1374 = vmatpush1.bf16.xpose.msra.mxu0 0
    %1375 = vmatprep.subr.bf16.mxu0 0
    %1376 = vmatpush1.bf16.xpose.msra.mxu0 0
    %1377 = vmatprep.subr.bf16.mxu0 0
    %1378 = vmatpush1.bf16.xpose.msra.mxu0 0
    %1379 = vmatprep.subr.bf16.mxu0 0
    %1380 = vmatpush1.bf16.xpose.msra.mxu0 0
    %1381 = vmatprep.subr.bf16.mxu0 0
    %1382 = vmatpush1.bf16.xpose.msra.mxu0 0
    %1383 = vmatprep.subr.bf16.mxu0 0
    %1384 = vmatpush1.bf16.xpose.msra.mxu0 0
    %1385 = vmatprep.subr.bf16.mxu0 0
    %1386 = vmatpush1.bf16.xpose.msra.mxu0 0
    %1387 = vmatprep.subr.bf16.mxu0 0
    %1388 = vmatpush1.bf16.xpose.msra.mxu0 0
    %1389 = vmatprep.subr.bf16.mxu0 0
    %1390 = vmatpush1.bf16.xpose.msra.mxu0 0
    %1391 = vmatprep.subr.bf16.mxu0 0
    %1392 = vmatpush1.bf16.xpose.msra.mxu0 0
    %1393 = vmatprep.subr.bf16.mxu0 0
    %1394 = vmatpush1.bf16.xpose.msra.mxu0 0
    %1395 = vmatprep.subr.bf16.mxu0 0
    %1396 = vmatpush1.bf16.xpose.msra.mxu0 0
    %1397 = vmatprep.subr.bf16.mxu0 0
    %1398 = vmatpush1.bf16.xpose.msra.mxu0 0
    %1399 = vmatprep.mubr.bf16.mxu0 0
    %1400 = vmatmul.mubr.bf16.gmra.mrb[0].mxu0 %v1362
    %v1401 = vpop.f32.mrb[0].mxu0
    %v1402 = vadd.f32 0.0, %v1401
    %v1403 = vpop.f32.mrb[0].mxu0
    %v1404 = vpop.f32.mrb[0].mxu0
    %v1405 = vpop.f32.mrb[0].mxu0
    %1406 = vdwg.mxu0
    %1408 = vrot.lane.b32.xlu0 %v1356, 112
    %v1409 = vpop.permute.xlu0 %1408
    %1410 = vrot.lane.b32.xlu0 %v1357, 80
    %v1411 = vpop.permute.xlu0 %1410
    %v1413 = vsel %vm333, %v1409, 0
    %v1416 = vsel %vm333, %v1411, 0
    %1418 = vmatprep.subr.bf16.mxu0 0
    %1419 = vmatpush1.bf16.xpose.msra.mxu0 %v1416
    %1420 = vmatprep.subr.bf16.mxu0 0
    %1421 = vmatpush1.bf16.xpose.msra.mxu0 0
    %1422 = vmatprep.subr.bf16.mxu0 0
    %1423 = vmatpush1.bf16.xpose.msra.mxu0 0
    %1424 = vmatprep.subr.bf16.mxu0 0
    %1425 = vmatpush1.bf16.xpose.msra.mxu0 0
    %1426 = vmatprep.subr.bf16.mxu0 0
    %1427 = vmatpush1.bf16.xpose.msra.mxu0 0
    %1428 = vmatprep.subr.bf16.mxu0 0
    %1429 = vmatpush1.bf16.xpose.msra.mxu0 0
    %1430 = vmatprep.subr.bf16.mxu0 0
    %1431 = vmatpush1.bf16.xpose.msra.mxu0 0
    %1432 = vmatprep.subr.bf16.mxu0 0
    %1433 = vmatpush1.bf16.xpose.msra.mxu0 0
    %1434 = vmatprep.subr.bf16.mxu0 0
    %1435 = vmatpush1.bf16.xpose.msra.mxu0 0
    %1436 = vmatprep.subr.bf16.mxu0 0
    %1437 = vmatpush1.bf16.xpose.msra.mxu0 0
    %1438 = vmatprep.subr.bf16.mxu0 0
    %1439 = vmatpush1.bf16.xpose.msra.mxu0 0
    %1440 = vmatprep.subr.bf16.mxu0 0
    %1441 = vmatpush1.bf16.xpose.msra.mxu0 0
    %1442 = vmatprep.subr.bf16.mxu0 0
    %1443 = vmatpush1.bf16.xpose.msra.mxu0 0
    %1444 = vmatprep.subr.bf16.mxu0 0
    %1445 = vmatpush1.bf16.xpose.msra.mxu0 0
    %1446 = vmatprep.subr.bf16.mxu0 0
    %1447 = vmatpush1.bf16.xpose.msra.mxu0 0
    %1448 = vmatprep.subr.bf16.mxu0 0
    %1449 = vmatpush1.bf16.xpose.msra.mxu0 0
    %1450 = vmatprep.mubr.bf16.mxu0 0
    %1451 = vmatmul.mubr.bf16.gmra.mrb[0].mxu0 %v1413
    %v1452 = vpop.f32.mrb[0].mxu0
    %v1453 = vadd.f32 0.0, %v1452
    %v1454 = vpop.f32.mrb[0].mxu0
    %v1455 = vpop.f32.mrb[0].mxu0
    %v1456 = vpop.f32.mrb[0].mxu0
    %1457 = vdwg.mxu0
    %v1458 = vpack.c.bf16 %v1355, %v1355
    %v1459 = vpack.c.bf16 %v1351, %v1351
    %1461 = vrot.lane.b32.xlu0 %v1459, 96
    %v1462 = vpop.permute.xlu0 %1461
    %v1464 = vsel %vm333, %v1458, 0
    %v1467 = vsel %vm333, %v1462, 0
    %1469 = vmatprep.subr.bf16.mxu0 0
    %1470 = vmatpush1.bf16.xpose.msra.mxu0 %v1467
    %1471 = vmatprep.subr.bf16.mxu0 0
    %1472 = vmatpush1.bf16.xpose.msra.mxu0 0
    %1473 = vmatprep.subr.bf16.mxu0 0
    %1474 = vmatpush1.bf16.xpose.msra.mxu0 0
    %1475 = vmatprep.subr.bf16.mxu0 0
    %1476 = vmatpush1.bf16.xpose.msra.mxu0 0
    %1477 = vmatprep.subr.bf16.mxu0 0
    %1478 = vmatpush1.bf16.xpose.msra.mxu0 0
    %1479 = vmatprep.subr.bf16.mxu0 0
    %1480 = vmatpush1.bf16.xpose.msra.mxu0 0
    %1481 = vmatprep.subr.bf16.mxu0 0
    %1482 = vmatpush1.bf16.xpose.msra.mxu0 0
    %1483 = vmatprep.subr.bf16.mxu0 0
    %1484 = vmatpush1.bf16.xpose.msra.mxu0 0
    %1485 = vmatprep.subr.bf16.mxu0 0
    %1486 = vmatpush1.bf16.xpose.msra.mxu0 0
    %1487 = vmatprep.subr.bf16.mxu0 0
    %1488 = vmatpush1.bf16.xpose.msra.mxu0 0
    %1489 = vmatprep.subr.bf16.mxu0 0
    %1490 = vmatpush1.bf16.xpose.msra.mxu0 0
    %1491 = vmatprep.subr.bf16.mxu0 0
    %1492 = vmatpush1.bf16.xpose.msra.mxu0 0
    %1493 = vmatprep.subr.bf16.mxu0 0
    %1494 = vmatpush1.bf16.xpose.msra.mxu0 0
    %1495 = vmatprep.subr.bf16.mxu0 0
    %1496 = vmatpush1.bf16.xpose.msra.mxu0 0
    %1497 = vmatprep.subr.bf16.mxu0 0
    %1498 = vmatpush1.bf16.xpose.msra.mxu0 0
    %1499 = vmatprep.subr.bf16.mxu0 0
    %1500 = vmatpush1.bf16.xpose.msra.mxu0 0
    %1501 = vmatprep.mubr.bf16.mxu0 0
    %1502 = vmatmul.mubr.bf16.gmra.mrb[0].mxu0 %v1464
    %v1503 = vpop.f32.mrb[0].mxu0
    %v1504 = vadd.f32 0.0, %v1503
    %v1505 = vpop.f32.mrb[0].mxu0
    %v1506 = vpop.f32.mrb[0].mxu0
    %v1507 = vpop.f32.mrb[0].mxu0
    %1508 = vdwg.mxu0
    %1510 = vrot.lane.b32.xlu0 %v1458, 112
    %v1511 = vpop.permute.xlu0 %1510
    %1512 = vrot.lane.b32.xlu0 %v1459, 80
    %v1513 = vpop.permute.xlu0 %1512
    %v1515 = vsel %vm333, %v1511, 0
    %v1518 = vsel %vm333, %v1513, 0
    %1520 = vmatprep.subr.bf16.mxu0 0
    %1521 = vmatpush1.bf16.xpose.msra.mxu0 %v1518
    %1522 = vmatprep.subr.bf16.mxu0 0
    %1523 = vmatpush1.bf16.xpose.msra.mxu0 0
    %1524 = vmatprep.subr.bf16.mxu0 0
    %1525 = vmatpush1.bf16.xpose.msra.mxu0 0
    %1526 = vmatprep.subr.bf16.mxu0 0
    %1527 = vmatpush1.bf16.xpose.msra.mxu0 0
    %1528 = vmatprep.subr.bf16.mxu0 0
    %1529 = vmatpush1.bf16.xpose.msra.mxu0 0
    %1530 = vmatprep.subr.bf16.mxu0 0
    %1531 = vmatpush1.bf16.xpose.msra.mxu0 0
    %1532 = vmatprep.subr.bf16.mxu0 0
    %1533 = vmatpush1.bf16.xpose.msra.mxu0 0
    %1534 = vmatprep.subr.bf16.mxu0 0
    %1535 = vmatpush1.bf16.xpose.msra.mxu0 0
    %1536 = vmatprep.subr.bf16.mxu0 0
    %1537 = vmatpush1.bf16.xpose.msra.mxu0 0
    %1538 = vmatprep.subr.bf16.mxu0 0
    %1539 = vmatpush1.bf16.xpose.msra.mxu0 0
    %1540 = vmatprep.subr.bf16.mxu0 0
    %1541 = vmatpush1.bf16.xpose.msra.mxu0 0
    %1542 = vmatprep.subr.bf16.mxu0 0
    %1543 = vmatpush1.bf16.xpose.msra.mxu0 0
    %1544 = vmatprep.subr.bf16.mxu0 0
    %1545 = vmatpush1.bf16.xpose.msra.mxu0 0
    %1546 = vmatprep.subr.bf16.mxu0 0
    %1547 = vmatpush1.bf16.xpose.msra.mxu0 0
    %1548 = vmatprep.subr.bf16.mxu0 0
    %1549 = vmatpush1.bf16.xpose.msra.mxu0 0
    %1550 = vmatprep.subr.bf16.mxu0 0
    %1551 = vmatpush1.bf16.xpose.msra.mxu0 0
    %1552 = vmatprep.mubr.bf16.mxu0 0
    %1553 = vmatmul.mubr.bf16.gmra.mrb[0].mxu0 %v1515
    %v1554 = vpop.f32.mrb[0].mxu0
    %v1555 = vadd.f32 0.0, %v1554
    %v1556 = vpop.f32.mrb[0].mxu0
    %v1557 = vpop.f32.mrb[0].mxu0
    %v1558 = vpop.f32.mrb[0].mxu0
    %1559 = vdwg.mxu0
    %v1560 = vadd.f32 %v1402, %v249
    %v1561 = vadd.f32 %v1453, %v249
    %v1562 = vadd.f32 %v1504, %v253
    %v1563 = vadd.f32 %v1555, %v253
    %v1564 = vsel %vm537, %v1560, -inf
    %1565 = vmax.xlane.f32.xlu0 %v1564
    %v1566 = vpop.xlane.xlu0 %1565
    %v1567 = vsel %vm537, %v1561, -inf
    %1568 = vmax.xlane.f32.xlu0 %v1567
    %v1569 = vpop.xlane.xlu0 %1568
    %v1570 = vsel %vm537, %v1562, -inf
    %1571 = vmax.xlane.f32.xlu0 %v1570
    %v1572 = vpop.xlane.xlu0 %1571
    %v1573 = vsel %vm537, %v1563, -inf
    %1574 = vmax.xlane.f32.xlu0 %v1573
    %v1575 = vpop.xlane.xlu0 %1574
    %v1576 = vsub.f32 %v1560, %v1566
    %v1577 = vsub.f32 %v1561, %v1569
    %v1578 = vsub.f32 %v1562, %v1572
    %v1579 = vsub.f32 %v1563, %v1575
    %v1580 = vmul.f32 %v1576, 1.442695
    %v1581 = vpow.pop %v1580
    %v1582 = vmul.f32 %v1577, 1.442695
    %v1583 = vpow.pop %v1582
    %v1584 = vmul.f32 %v1578, 1.442695
    %v1585 = vpow.pop %v1584
    %v1586 = vmul.f32 %v1579, 1.442695
    %v1587 = vpow.pop %v1586
    %v1588 = vsel %vm537, %v1581, 0.0
    %1589 = vadd.xlane.f32.xlu0 %v1588
    %v1590 = vpop.xlane.xlu0 %1589
    %v1591 = vsel %vm537, %v1583, 0.0
    %1592 = vadd.xlane.f32.xlu0 %v1591
    %v1593 = vpop.xlane.xlu0 %1592
    %v1594 = vsel %vm537, %v1585, 0.0
    %1595 = vadd.xlane.f32.xlu0 %v1594
    %v1596 = vpop.xlane.xlu0 %1595
    %v1597 = vsel %vm537, %v1587, 0.0
    %1598 = vadd.xlane.f32.xlu0 %v1597
    %v1599 = vpop.xlane.xlu0 %1598
    %v1600 = vrcp.pop %v1590
    %v1601 = vrcp.pop %v1593
    %v1602 = vrcp.pop %v1596
    %v1603 = vrcp.pop %v1599
    %v1604 = vmul.f32 %v1581, %v1600
    %v1605 = vmul.f32 %v1583, %v1601
    %v1606 = vmul.f32 %v1585, %v1602
    %v1607 = vmul.f32 %v1587, %v1603
    %v1608 = vpack.c.bf16 %v1604, %v1604
    %1609 = vrot.lane.b32.xlu0 %v1357, 64
    %v1610 = vpop.permute.xlu0 %1609
    %v1612 = vsel %vm537, %v1608, 0
    %v1615 = vsel %vm588, %v1610, 0
    %1617 = vmatprep.subr.bf16.mxu0 0
    %1618 = vmatpush1.bf16.msra.mxu0 %v1615
    %1619 = vmatprep.subr.bf16.mxu0 0
    %1620 = vmatpush1.bf16.msra.mxu0 0
    %1621 = vmatprep.subr.bf16.mxu0 0
    %1622 = vmatpush1.bf16.msra.mxu0 0
    %1623 = vmatprep.subr.bf16.mxu0 0
    %1624 = vmatpush1.bf16.msra.mxu0 0
    %1625 = vmatprep.subr.bf16.mxu0 0
    %1626 = vmatpush1.bf16.msra.mxu0 0
    %1627 = vmatprep.subr.bf16.mxu0 0
    %1628 = vmatpush1.bf16.msra.mxu0 0
    %1629 = vmatprep.subr.bf16.mxu0 0
    %1630 = vmatpush1.bf16.msra.mxu0 0
    %1631 = vmatprep.subr.bf16.mxu0 0
    %1632 = vmatpush1.bf16.msra.mxu0 0
    %1633 = vmatprep.subr.bf16.mxu0 0
    %1634 = vmatpush1.bf16.msra.mxu0 0
    %1635 = vmatprep.subr.bf16.mxu0 0
    %1636 = vmatpush1.bf16.msra.mxu0 0
    %1637 = vmatprep.subr.bf16.mxu0 0
    %1638 = vmatpush1.bf16.msra.mxu0 0
    %1639 = vmatprep.subr.bf16.mxu0 0
    %1640 = vmatpush1.bf16.msra.mxu0 0
    %1641 = vmatprep.subr.bf16.mxu0 0
    %1642 = vmatpush1.bf16.msra.mxu0 0
    %1643 = vmatprep.subr.bf16.mxu0 0
    %1644 = vmatpush1.bf16.msra.mxu0 0
    %1645 = vmatprep.subr.bf16.mxu0 0
    %1646 = vmatpush1.bf16.msra.mxu0 0
    %1647 = vmatprep.subr.bf16.mxu0 0
    %1648 = vmatpush1.bf16.msra.mxu0 0
    %1649 = vmatprep.mubr.bf16.mxu0 0
    %1650 = vmatmul.mubr.bf16.gmra.mrb[0].mxu0 %v1612
    %v1651 = vpop.f32.mrb[0].mxu0
    %v1652 = vadd.f32 0.0, %v1651
    %v1653 = vpop.f32.mrb[0].mxu0
    %v1654 = vpop.f32.mrb[0].mxu0
    %v1655 = vpop.f32.mrb[0].mxu0
    %1656 = vdwg.mxu0
    %v1657 = vpack.c.bf16 %v1652, %v1652
    %v1658 = vpack.c.bf16 %v1605, %v1605
    %1659 = vrot.lane.b32.xlu0 %v1357, 48
    %v1660 = vpop.permute.xlu0 %1659
    %v1662 = vsel %vm537, %v1658, 0
    %v1665 = vsel %vm588, %v1660, 0
    %1667 = vmatprep.subr.bf16.mxu0 0
    %1668 = vmatpush1.bf16.msra.mxu0 %v1665
    %1669 = vmatprep.subr.bf16.mxu0 0
    %1670 = vmatpush1.bf16.msra.mxu0 0
    %1671 = vmatprep.subr.bf16.mxu0 0
    %1672 = vmatpush1.bf16.msra.mxu0 0
    %1673 = vmatprep.subr.bf16.mxu0 0
    %1674 = vmatpush1.bf16.msra.mxu0 0
    %1675 = vmatprep.subr.bf16.mxu0 0
    %1676 = vmatpush1.bf16.msra.mxu0 0
    %1677 = vmatprep.subr.bf16.mxu0 0
    %1678 = vmatpush1.bf16.msra.mxu0 0
    %1679 = vmatprep.subr.bf16.mxu0 0
    %1680 = vmatpush1.bf16.msra.mxu0 0
    %1681 = vmatprep.subr.bf16.mxu0 0
    %1682 = vmatpush1.bf16.msra.mxu0 0
    %1683 = vmatprep.subr.bf16.mxu0 0
    %1684 = vmatpush1.bf16.msra.mxu0 0
    %1685 = vmatprep.subr.bf16.mxu0 0
    %1686 = vmatpush1.bf16.msra.mxu0 0
    %1687 = vmatprep.subr.bf16.mxu0 0
    %1688 = vmatpush1.bf16.msra.mxu0 0
    %1689 = vmatprep.subr.bf16.mxu0 0
    %1690 = vmatpush1.bf16.msra.mxu0 0
    %1691 = vmatprep.subr.bf16.mxu0 0
    %1692 = vmatpush1.bf16.msra.mxu0 0
    %1693 = vmatprep.subr.bf16.mxu0 0
    %1694 = vmatpush1.bf16.msra.mxu0 0
    %1695 = vmatprep.subr.bf16.mxu0 0
    %1696 = vmatpush1.bf16.msra.mxu0 0
    %1697 = vmatprep.subr.bf16.mxu0 0
    %1698 = vmatpush1.bf16.msra.mxu0 0
    %1699 = vmatprep.mubr.bf16.mxu0 0
    %1700 = vmatmul.mubr.bf16.gmra.mrb[0].mxu0 %v1662
    %v1701 = vpop.f32.mrb[0].mxu0
    %v1702 = vadd.f32 0.0, %v1701
    %v1703 = vpop.f32.mrb[0].mxu0
    %v1704 = vpop.f32.mrb[0].mxu0
    %v1705 = vpop.f32.mrb[0].mxu0
    %1706 = vdwg.mxu0
    %v1707 = vpack.c.bf16 %v1702, %v1702
    %v1710 = vunpack.c.l.b16 %v1287
    %v1711 = vunpack.c.l.b16 %v1288
    %v1712 = vpack.c.b16 %v1711, %v1710
    %v1715 = vsel %vm333, %v1707, 0
    %1717 = vmatprep.subr.bf16.mxu0 0
    %1718 = vmatpush1.bf16.msra.mxu0 %v1712
    %1719 = vmatprep.subr.bf16.mxu0 0
    %1720 = vmatpush1.bf16.msra.mxu0 0
    %1721 = vmatprep.subr.bf16.mxu0 0
    %1722 = vmatpush1.bf16.msra.mxu0 0
    %1723 = vmatprep.subr.bf16.mxu0 0
    %1724 = vmatpush1.bf16.msra.mxu0 0
    %1725 = vmatprep.subr.bf16.mxu0 0
    %1726 = vmatpush1.bf16.msra.mxu0 0
    %1727 = vmatprep.subr.bf16.mxu0 0
    %1728 = vmatpush1.bf16.msra.mxu0 0
    %1729 = vmatprep.subr.bf16.mxu0 0
    %1730 = vmatpush1.bf16.msra.mxu0 0
    %1731 = vmatprep.subr.bf16.mxu0 0
    %1732 = vmatpush1.bf16.msra.mxu0 0
    %1733 = vmatprep.subr.bf16.mxu0 0
    %1734 = vmatpush1.bf16.msra.mxu0 0
    %1735 = vmatprep.subr.bf16.mxu0 0
    %1736 = vmatpush1.bf16.msra.mxu0 0
    %1737 = vmatprep.subr.bf16.mxu0 0
    %1738 = vmatpush1.bf16.msra.mxu0 0
    %1739 = vmatprep.subr.bf16.mxu0 0
    %1740 = vmatpush1.bf16.msra.mxu0 0
    %1741 = vmatprep.subr.bf16.mxu0 0
    %1742 = vmatpush1.bf16.msra.mxu0 0
    %1743 = vmatprep.subr.bf16.mxu0 0
    %1744 = vmatpush1.bf16.msra.mxu0 0
    %1745 = vmatprep.subr.bf16.mxu0 0
    %1746 = vmatpush1.bf16.msra.mxu0 0
    %1747 = vmatprep.subr.bf16.mxu0 0
    %1748 = vmatpush1.bf16.msra.mxu0 0
    %1749 = vmatprep.mubr.bf16.mxu0 0
    %1750 = vmatmul.mubr.bf16.gmra.mrb[0].mxu0 %v1715
    %v1751 = vpop.f32.mrb[0].mxu0
    %v1752 = vadd.f32 0.0, %v1751
    %v1753 = vpop.f32.mrb[0].mxu0
    %v1754 = vpop.f32.mrb[0].mxu0
    %v1755 = vpop.f32.mrb[0].mxu0
    %1756 = vdwg.mxu0
    %v1759 = vunpack.c.l.b16 %v1285
    %v1760 = vunpack.c.l.b16 %v1286
    %v1761 = vpack.c.b16 %v1760, %v1759
    %v1764 = vsel %vm333, %v1657, 0
    %1766 = vmatprep.subr.bf16.mxu0 0
    %1767 = vmatpush1.bf16.msra.mxu0 %v1761
    %1768 = vmatprep.subr.bf16.mxu0 0
    %1769 = vmatpush1.bf16.msra.mxu0 0
    %1770 = vmatprep.subr.bf16.mxu0 0
    %1771 = vmatpush1.bf16.msra.mxu0 0
    %1772 = vmatprep.subr.bf16.mxu0 0
    %1773 = vmatpush1.bf16.msra.mxu0 0
    %1774 = vmatprep.subr.bf16.mxu0 0
    %1775 = vmatpush1.bf16.msra.mxu0 0
    %1776 = vmatprep.subr.bf16.mxu0 0
    %1777 = vmatpush1.bf16.msra.mxu0 0
    %1778 = vmatprep.subr.bf16.mxu0 0
    %1779 = vmatpush1.bf16.msra.mxu0 0
    %1780 = vmatprep.subr.bf16.mxu0 0
    %1781 = vmatpush1.bf16.msra.mxu0 0
    %1782 = vmatprep.subr.bf16.mxu0 0
    %1783 = vmatpush1.bf16.msra.mxu0 0
    %1784 = vmatprep.subr.bf16.mxu0 0
    %1785 = vmatpush1.bf16.msra.mxu0 0
    %1786 = vmatprep.subr.bf16.mxu0 0
    %1787 = vmatpush1.bf16.msra.mxu0 0
    %1788 = vmatprep.subr.bf16.mxu0 0
    %1789 = vmatpush1.bf16.msra.mxu0 0
    %1790 = vmatprep.subr.bf16.mxu0 0
    %1791 = vmatpush1.bf16.msra.mxu0 0
    %1792 = vmatprep.subr.bf16.mxu0 0
    %1793 = vmatpush1.bf16.msra.mxu0 0
    %1794 = vmatprep.subr.bf16.mxu0 0
    %1795 = vmatpush1.bf16.msra.mxu0 0
    %1796 = vmatprep.subr.bf16.mxu0 0
    %1797 = vmatpush1.bf16.msra.mxu0 0
    %1798 = vmatprep.mubr.bf16.mxu0 0
    %1799 = vmatmul.mubr.bf16.gmra.mrb[0].mxu0 %v1764
    %v1800 = vpop.f32.mrb[0].mxu0
    %v1801 = vadd.f32 %v1752, %v1800
    %v1802 = vpop.f32.mrb[0].mxu0
    %v1803 = vpop.f32.mrb[0].mxu0
    %v1804 = vpop.f32.mrb[0].mxu0
    %1805 = vdwg.mxu0
    %v1806 = vpack.c.bf16 %v1606, %v1606
    %1807 = vrot.lane.b32.xlu0 %v1459, 64
    %v1808 = vpop.permute.xlu0 %1807
    %v1810 = vsel %vm537, %v1806, 0
    %v1813 = vsel %vm588, %v1808, 0
    %1815 = vmatprep.subr.bf16.mxu0 0
    %1816 = vmatpush1.bf16.msra.mxu0 %v1813
    %1817 = vmatprep.subr.bf16.mxu0 0
    %1818 = vmatpush1.bf16.msra.mxu0 0
    %1819 = vmatprep.subr.bf16.mxu0 0
    %1820 = vmatpush1.bf16.msra.mxu0 0
    %1821 = vmatprep.subr.bf16.mxu0 0
    %1822 = vmatpush1.bf16.msra.mxu0 0
    %1823 = vmatprep.subr.bf16.mxu0 0
    %1824 = vmatpush1.bf16.msra.mxu0 0
    %1825 = vmatprep.subr.bf16.mxu0 0
    %1826 = vmatpush1.bf16.msra.mxu0 0
    %1827 = vmatprep.subr.bf16.mxu0 0
    %1828 = vmatpush1.bf16.msra.mxu0 0
    %1829 = vmatprep.subr.bf16.mxu0 0
    %1830 = vmatpush1.bf16.msra.mxu0 0
    %1831 = vmatprep.subr.bf16.mxu0 0
    %1832 = vmatpush1.bf16.msra.mxu0 0
    %1833 = vmatprep.subr.bf16.mxu0 0
    %1834 = vmatpush1.bf16.msra.mxu0 0
    %1835 = vmatprep.subr.bf16.mxu0 0
    %1836 = vmatpush1.bf16.msra.mxu0 0
    %1837 = vmatprep.subr.bf16.mxu0 0
    %1838 = vmatpush1.bf16.msra.mxu0 0
    %1839 = vmatprep.subr.bf16.mxu0 0
    %1840 = vmatpush1.bf16.msra.mxu0 0
    %1841 = vmatprep.subr.bf16.mxu0 0
    %1842 = vmatpush1.bf16.msra.mxu0 0
    %1843 = vmatprep.subr.bf16.mxu0 0
    %1844 = vmatpush1.bf16.msra.mxu0 0
    %1845 = vmatprep.subr.bf16.mxu0 0
    %1846 = vmatpush1.bf16.msra.mxu0 0
    %1847 = vmatprep.mubr.bf16.mxu0 0
    %1848 = vmatmul.mubr.bf16.gmra.mrb[0].mxu0 %v1810
    %v1849 = vpop.f32.mrb[0].mxu0
    %v1850 = vadd.f32 0.0, %v1849
    %v1851 = vpop.f32.mrb[0].mxu0
    %v1852 = vpop.f32.mrb[0].mxu0
    %v1853 = vpop.f32.mrb[0].mxu0
    %1854 = vdwg.mxu0
    %v1855 = vpack.c.bf16 %v1850, %v1850
    %v1856 = vpack.c.bf16 %v1607, %v1607
    %1857 = vrot.lane.b32.xlu0 %v1459, 48
    %v1858 = vpop.permute.xlu0 %1857
    %v1860 = vsel %vm537, %v1856, 0
    %v1863 = vsel %vm588, %v1858, 0
    %1865 = vmatprep.subr.bf16.mxu0 0
    %1866 = vmatpush1.bf16.msra.mxu0 %v1863
    %1867 = vmatprep.subr.bf16.mxu0 0
    %1868 = vmatpush1.bf16.msra.mxu0 0
    %1869 = vmatprep.subr.bf16.mxu0 0
    %1870 = vmatpush1.bf16.msra.mxu0 0
    %1871 = vmatprep.subr.bf16.mxu0 0
    %1872 = vmatpush1.bf16.msra.mxu0 0
    %1873 = vmatprep.subr.bf16.mxu0 0
    %1874 = vmatpush1.bf16.msra.mxu0 0
    %1875 = vmatprep.subr.bf16.mxu0 0
    %1876 = vmatpush1.bf16.msra.mxu0 0
    %1877 = vmatprep.subr.bf16.mxu0 0
    %1878 = vmatpush1.bf16.msra.mxu0 0
    %1879 = vmatprep.subr.bf16.mxu0 0
    %1880 = vmatpush1.bf16.msra.mxu0 0
    %1881 = vmatprep.subr.bf16.mxu0 0
    %1882 = vmatpush1.bf16.msra.mxu0 0
    %1883 = vmatprep.subr.bf16.mxu0 0
    %1884 = vmatpush1.bf16.msra.mxu0 0
    %1885 = vmatprep.subr.bf16.mxu0 0
    %1886 = vmatpush1.bf16.msra.mxu0 0
    %1887 = vmatprep.subr.bf16.mxu0 0
    %1888 = vmatpush1.bf16.msra.mxu0 0
    %1889 = vmatprep.subr.bf16.mxu0 0
    %1890 = vmatpush1.bf16.msra.mxu0 0
    %1891 = vmatprep.subr.bf16.mxu0 0
    %1892 = vmatpush1.bf16.msra.mxu0 0
    %1893 = vmatprep.subr.bf16.mxu0 0
    %1894 = vmatpush1.bf16.msra.mxu0 0
    %1895 = vmatprep.subr.bf16.mxu0 0
    %1896 = vmatpush1.bf16.msra.mxu0 0
    %1897 = vmatprep.mubr.bf16.mxu0 0
    %1898 = vmatmul.mubr.bf16.gmra.mrb[0].mxu0 %v1860
    %v1899 = vpop.f32.mrb[0].mxu0
    %v1900 = vadd.f32 0.0, %v1899
    %v1901 = vpop.f32.mrb[0].mxu0
    %v1902 = vpop.f32.mrb[0].mxu0
    %v1903 = vpop.f32.mrb[0].mxu0
    %1904 = vdwg.mxu0
    %v1905 = vpack.c.bf16 %v1900, %v1900
    %v1907 = vsel %vm333, %v1905, 0
    %1909 = vmatprep.subr.bf16.mxu0 0
    %1910 = vmatpush1.bf16.msra.mxu0 %v1712
    %1911 = vmatprep.subr.bf16.mxu0 0
    %1912 = vmatpush1.bf16.msra.mxu0 0
    %1913 = vmatprep.subr.bf16.mxu0 0
    %1914 = vmatpush1.bf16.msra.mxu0 0
    %1915 = vmatprep.subr.bf16.mxu0 0
    %1916 = vmatpush1.bf16.msra.mxu0 0
    %1917 = vmatprep.subr.bf16.mxu0 0
    %1918 = vmatpush1.bf16.msra.mxu0 0
    %1919 = vmatprep.subr.bf16.mxu0 0
    %1920 = vmatpush1.bf16.msra.mxu0 0
    %1921 = vmatprep.subr.bf16.mxu0 0
    %1922 = vmatpush1.bf16.msra.mxu0 0
    %1923 = vmatprep.subr.bf16.mxu0 0
    %1924 = vmatpush1.bf16.msra.mxu0 0
    %1925 = vmatprep.subr.bf16.mxu0 0
    %1926 = vmatpush1.bf16.msra.mxu0 0
    %1927 = vmatprep.subr.bf16.mxu0 0
    %1928 = vmatpush1.bf16.msra.mxu0 0
    %1929 = vmatprep.subr.bf16.mxu0 0
    %1930 = vmatpush1.bf16.msra.mxu0 0
    %1931 = vmatprep.subr.bf16.mxu0 0
    %1932 = vmatpush1.bf16.msra.mxu0 0
    %1933 = vmatprep.subr.bf16.mxu0 0
    %1934 = vmatpush1.bf16.msra.mxu0 0
    %1935 = vmatprep.subr.bf16.mxu0 0
    %1936 = vmatpush1.bf16.msra.mxu0 0
    %1937 = vmatprep.subr.bf16.mxu0 0
    %1938 = vmatpush1.bf16.msra.mxu0 0
    %1939 = vmatprep.subr.bf16.mxu0 0
    %1940 = vmatpush1.bf16.msra.mxu0 0
    %1941 = vmatprep.mubr.bf16.mxu0 0
    %1942 = vmatmul.mubr.bf16.gmra.mrb[0].mxu0 %v1907
    %v1943 = vpop.f32.mrb[0].mxu0
    %v1944 = vadd.f32 0.0, %v1943
    %v1945 = vpop.f32.mrb[0].mxu0
    %v1946 = vpop.f32.mrb[0].mxu0
    %v1947 = vpop.f32.mrb[0].mxu0
    %1948 = vdwg.mxu0
    %v1950 = vsel %vm333, %v1855, 0
    %1952 = vmatprep.subr.bf16.mxu0 0
    %1953 = vmatpush1.bf16.msra.mxu0 %v1761
    %1954 = vmatprep.subr.bf16.mxu0 0
    %1955 = vmatpush1.bf16.msra.mxu0 0
    %1956 = vmatprep.subr.bf16.mxu0 0
    %1957 = vmatpush1.bf16.msra.mxu0 0
    %1958 = vmatprep.subr.bf16.mxu0 0
    %1959 = vmatpush1.bf16.msra.mxu0 0
    %1960 = vmatprep.subr.bf16.mxu0 0
    %1961 = vmatpush1.bf16.msra.mxu0 0
    %1962 = vmatprep.subr.bf16.mxu0 0
    %1963 = vmatpush1.bf16.msra.mxu0 0
    %1964 = vmatprep.subr.bf16.mxu0 0
    %1965 = vmatpush1.bf16.msra.mxu0 0
    %1966 = vmatprep.subr.bf16.mxu0 0
    %1967 = vmatpush1.bf16.msra.mxu0 0
    %1968 = vmatprep.subr.bf16.mxu0 0
    %1969 = vmatpush1.bf16.msra.mxu0 0
    %1970 = vmatprep.subr.bf16.mxu0 0
    %1971 = vmatpush1.bf16.msra.mxu0 0
    %1972 = vmatprep.subr.bf16.mxu0 0
    %1973 = vmatpush1.bf16.msra.mxu0 0
    %1974 = vmatprep.subr.bf16.mxu0 0
    %1975 = vmatpush1.bf16.msra.mxu0 0
    %1976 = vmatprep.subr.bf16.mxu0 0
    %1977 = vmatpush1.bf16.msra.mxu0 0
    %1978 = vmatprep.subr.bf16.mxu0 0
    %1979 = vmatpush1.bf16.msra.mxu0 0
    %1980 = vmatprep.subr.bf16.mxu0 0
    %1981 = vmatpush1.bf16.msra.mxu0 0
    %1982 = vmatprep.subr.bf16.mxu0 0
    %1983 = vmatpush1.bf16.msra.mxu0 0
    %1984 = vmatprep.mubr.bf16.mxu0 0
    %1985 = vmatmul.mubr.bf16.gmra.mrb[0].mxu0 %v1950
    %v1986 = vpop.f32.mrb[0].mxu0
    %v1987 = vadd.f32 %v1944, %v1986
    %v1988 = vpop.f32.mrb[0].mxu0
    %v1989 = vpop.f32.mrb[0].mxu0
    %v1990 = vpop.f32.mrb[0].mxu0
    %1991 = vdwg.mxu0
    %s1992 = scalar_lea.vmem %s10, 1
    %v1993 = vld [vmem:[%s1992] sm:$0x1]
    %v1995 = vlaneseq
    %v1996 = vshrl.u32 %v1995, 7
    %v1997 = vsub.s32 0, %v1996
    %v1998 = vrot.slane %v1993, %v1997
    %v2000 = vadd.f32 %v1801, %v1998
    %v2001 = vadd.f32 %v1987, %v1998
    %v2002 = vadd.f32 %v2000, %v1277
    %v2003 = vadd.f32 %v2001, %v1278
    %s2004 = scalar_lea.vmem %s11, 1
    %v2005 = vld [vmem:[%s2004] sm:$0x1]
    %s2006 = scalar_lea.vmem %s12, 1
    %v2007 = vld [vmem:[%s2006] sm:$0x1]
    %v2008 = vsel %vm193, %v2002, 0.0
    %2009 = vadd.xlane.f32.xlu0 %v2008
    %v2010 = vpop.xlane.xlu0 %2009
    %v2011 = vsel %vm193, %v2003, 0.0
    %2012 = vadd.xlane.f32.xlu0 %v2011
    %v2013 = vpop.xlane.xlu0 %2012
    %v2014 = vmul.f32 %v2010, %v200
    %v2015 = vmul.f32 %v2013, %v200
    %v2016 = vmul.f32 %v2002, %v2002
    %v2017 = vmul.f32 %v2003, %v2003
    %v2018 = vsel %vm193, %v2016, 0.0
    %2019 = vadd.xlane.f32.xlu0 %v2018
    %v2020 = vpop.xlane.xlu0 %2019
    %v2021 = vsel %vm193, %v2017, 0.0
    %2022 = vadd.xlane.f32.xlu0 %v2021
    %v2023 = vpop.xlane.xlu0 %2022
    %v2024 = vmul.f32 %v2020, %v200
    %v2025 = vmul.f32 %v2023, %v200
    %v2026 = vmul.f32 %v2014, %v2014
    %v2027 = vmul.f32 %v2015, %v2015
    %v2028 = vsub.f32 %v2024, %v2026
    %v2029 = vsub.f32 %v2025, %v2027
    %v2030 = vmax.f32 %v2028, 0.0
    %v2031 = vmax.f32 %v2029, 0.0
    %v2032 = vsub.f32 %v2002, %v2014
    %v2033 = vsub.f32 %v2003, %v2015
    %v2034 = vadd.f32 %v2030, 1e-12
    %v2035 = vadd.f32 %v2031, 1e-12
    %v2036 = vrsqrt.pop %v2034
    %v2037 = vrsqrt.pop %v2035
    %v2038 = vmul.f32 %v2032, %v2036
    %v2039 = vmul.f32 %v2033, %v2037
    %v2041 = vlaneseq
    %v2042 = vshrl.u32 %v2041, 7
    %v2043 = vsub.s32 0, %v2042
    %v2044 = vrot.slane %v2005, %v2043
    %v2046 = vmul.f32 %v2038, %v2044
    %v2047 = vmul.f32 %v2039, %v2044
    %v2049 = vlaneseq
    %v2050 = vshrl.u32 %v2049, 7
    %v2051 = vsub.s32 0, %v2050
    %v2052 = vrot.slane %v2007, %v2051
    %v2054 = vadd.f32 %v2046, %v2052
    %v2055 = vadd.f32 %v2047, %v2052
    %v2056 = vpack.c.bf16 %v2055, %v2054
    %s2057 = scalar_lea.vmem %s13, 16
    %v2058 = vld [vmem:[%s2057] sm:$0xf]
    %v2059 = vld [vmem:[%s2057 + $0x4] sm:$0xf]
    %v2060 = vld [vmem:[%s2057 + $0x8] sm:$0xf]
    %v2061 = vld [vmem:[%s2057 + $0xc] sm:$0xf]
    %s2062 = scalar_lea.vmem %s14, 1
    %v2063 = vld [vmem:[%s2062] sm:$0x1]
    %v2065 = vlaneseq
    %v2066 = vshrl.u32 %v2065, 7
    %v2067 = vsub.s32 0, %v2066
    %v2068 = vrot.slane %v2063, %v2067
    %v2074 = vunpack.c.l.b16 %v2058
    %v2075 = vunpack.c.l.b16 %v2059
    %v2076 = vunpack.c.l.b16 %v2060
    %v2077 = vunpack.c.l.b16 %v2061
    %v2078 = vpack.c.b16 %v2075, %v2074
    %v2079 = vpack.c.b16 %v2077, %v2076
    %v2083 = vsel %vm193, %v2056, 0
    %2085 = vmatprep.subr.bf16.mxu0 0
    %2086 = vmatpush1.bf16.msra.mxu0 %v2078
    %2087 = vmatprep.subr.bf16.mxu0 0
    %2088 = vmatpush1.bf16.msra.mxu0 %v2079
    %2089 = vmatprep.subr.bf16.mxu0 0
    %2090 = vmatpush1.bf16.msra.mxu0 0
    %2091 = vmatprep.subr.bf16.mxu0 0
    %2092 = vmatpush1.bf16.msra.mxu0 0
    %2093 = vmatprep.subr.bf16.mxu0 0
    %2094 = vmatpush1.bf16.msra.mxu0 0
    %2095 = vmatprep.subr.bf16.mxu0 0
    %2096 = vmatpush1.bf16.msra.mxu0 0
    %2097 = vmatprep.subr.bf16.mxu0 0
    %2098 = vmatpush1.bf16.msra.mxu0 0
    %2099 = vmatprep.subr.bf16.mxu0 0
    %2100 = vmatpush1.bf16.msra.mxu0 0
    %2101 = vmatprep.subr.bf16.mxu0 0
    %2102 = vmatpush1.bf16.msra.mxu0 0
    %2103 = vmatprep.subr.bf16.mxu0 0
    %2104 = vmatpush1.bf16.msra.mxu0 0
    %2105 = vmatprep.subr.bf16.mxu0 0
    %2106 = vmatpush1.bf16.msra.mxu0 0
    %2107 = vmatprep.subr.bf16.mxu0 0
    %2108 = vmatpush1.bf16.msra.mxu0 0
    %2109 = vmatprep.subr.bf16.mxu0 0
    %2110 = vmatpush1.bf16.msra.mxu0 0
    %2111 = vmatprep.subr.bf16.mxu0 0
    %2112 = vmatpush1.bf16.msra.mxu0 0
    %2113 = vmatprep.subr.bf16.mxu0 0
    %2114 = vmatpush1.bf16.msra.mxu0 0
    %2115 = vmatprep.subr.bf16.mxu0 0
    %2116 = vmatpush1.bf16.msra.mxu0 0
    %2117 = vmatprep.mubr.bf16.mxu0 0
    %2118 = vmatmul.mubr.bf16.gmra.mrb[0].mxu0 %v2083
    %v2119 = vpop.f32.mrb[0].mxu0
    %v2120 = vadd.f32 %v2068, %v2119
    %v2121 = vpop.f32.mrb[0].mxu0
    %v2122 = vpop.f32.mrb[0].mxu0
    %v2123 = vadd.f32 %v2068, %v2122
    %v2124 = vpop.f32.mrb[0].mxu0
    %2125 = vdwg.mxu0
    %v2126 = vmul.f32 %v2120, %v2120
    %v2127 = vmul.f32 %v2123, %v2123
    %v2128 = vmul.f32 %v2120, %v2126
    %v2129 = vmul.f32 %v2123, %v2127
    %v2130 = vmul.f32 %v2128, 0.044715
    %v2131 = vmul.f32 %v2129, 0.044715
    %v2132 = vadd.f32 %v2120, %v2130
    %v2133 = vadd.f32 %v2123, %v2131
    %v2134 = vmul.f32 %v2132, 0.7978846
    %v2135 = vmul.f32 %v2133, 0.7978846
    %v2136 = vtanh.pop %v2134
    %v2137 = vtanh.pop %v2135
    %v2138 = vadd.f32 %v2136, 1.0
    %v2139 = vadd.f32 %v2137, 1.0
    %v2140 = vmul.f32 %v2138, 0.5
    %v2141 = vmul.f32 %v2139, 0.5
    %v2142 = vmul.f32 %v2120, %v2140
    %v2143 = vmul.f32 %v2123, %v2141
    %v2144 = vpack.c.bf16 %v2143, %v2142
    %s2145 = scalar_lea.vmem %s15, 64
    %v2146 = vld [vmem:[%s2145] sm:$0xf]
    %v2147 = vld [vmem:[%s2145 + $0x4] sm:$0xf]
    %v2148 = vld [vmem:[%s2145 + $0x8] sm:$0xf]
    %v2149 = vld [vmem:[%s2145 + $0xc] sm:$0xf]
    %v2150 = vld [vmem:[%s2145 + $0x10] sm:$0xf]
    %v2151 = vld [vmem:[%s2145 + $0x14] sm:$0xf]
    %v2152 = vld [vmem:[%s2145 + $0x18] sm:$0xf]
    %v2153 = vld [vmem:[%s2145 + $0x1c] sm:$0xf]
    %v2154 = vld [vmem:[%s2145 + $0x20] sm:$0xf]
    %v2155 = vld [vmem:[%s2145 + $0x24] sm:$0xf]
    %v2156 = vld [vmem:[%s2145 + $0x28] sm:$0xf]
    %v2157 = vld [vmem:[%s2145 + $0x2c] sm:$0xf]
    %v2158 = vld [vmem:[%s2145 + $0x30] sm:$0xf]
    %v2159 = vld [vmem:[%s2145 + $0x34] sm:$0xf]
    %v2160 = vld [vmem:[%s2145 + $0x38] sm:$0xf]
    %v2161 = vld [vmem:[%s2145 + $0x3c] sm:$0xf]
    %s2162 = scalar_lea.vmem %s16, 1
    %v2163 = vld [vmem:[%s2162] sm:$0x1]
    %v2165 = vlaneseq
    %v2166 = vshrl.u32 %v2165, 7
    %v2167 = vsub.s32 0, %v2166
    %v2168 = vrot.slane %v2163, %v2167
    %v2186 = vunpack.c.l.b16 %v2146
    %v2187 = vunpack.c.l.b16 %v2147
    %v2188 = vunpack.c.l.b16 %v2148
    %v2189 = vunpack.c.l.b16 %v2149
    %v2190 = vunpack.c.l.b16 %v2150
    %v2191 = vunpack.c.l.b16 %v2151
    %v2192 = vunpack.c.l.b16 %v2152
    %v2193 = vunpack.c.l.b16 %v2153
    %v2194 = vunpack.c.l.b16 %v2154
    %v2195 = vunpack.c.l.b16 %v2155
    %v2196 = vunpack.c.l.b16 %v2156
    %v2197 = vunpack.c.l.b16 %v2157
    %v2198 = vunpack.c.l.b16 %v2158
    %v2199 = vunpack.c.l.b16 %v2159
    %v2200 = vunpack.c.l.b16 %v2160
    %v2201 = vunpack.c.l.b16 %v2161
    %v2202 = vpack.c.b16 %v2187, %v2186
    %v2203 = vpack.c.b16 %v2189, %v2188
    %v2204 = vpack.c.b16 %v2191, %v2190
    %v2205 = vpack.c.b16 %v2193, %v2192
    %v2206 = vpack.c.b16 %v2195, %v2194
    %v2207 = vpack.c.b16 %v2197, %v2196
    %v2208 = vpack.c.b16 %v2199, %v2198
    %v2209 = vpack.c.b16 %v2201, %v2200
    %2218 = vmatprep.subr.bf16.mxu0 0
    %2219 = vmatpush1.bf16.msra.mxu0 %v2202
    %2220 = vmatprep.subr.bf16.mxu0 0
    %2221 = vmatpush1.bf16.msra.mxu0 %v2203
    %2222 = vmatprep.subr.bf16.mxu0 0
    %2223 = vmatpush1.bf16.msra.mxu0 %v2204
    %2224 = vmatprep.subr.bf16.mxu0 0
    %2225 = vmatpush1.bf16.msra.mxu0 %v2205
    %2226 = vmatprep.subr.bf16.mxu0 0
    %2227 = vmatpush1.bf16.msra.mxu0 %v2206
    %2228 = vmatprep.subr.bf16.mxu0 0
    %2229 = vmatpush1.bf16.msra.mxu0 %v2207
    %2230 = vmatprep.subr.bf16.mxu0 0
    %2231 = vmatpush1.bf16.msra.mxu0 %v2208
    %2232 = vmatprep.subr.bf16.mxu0 0
    %2233 = vmatpush1.bf16.msra.mxu0 %v2209
    %2234 = vmatprep.subr.bf16.mxu0 0
    %2235 = vmatpush1.bf16.msra.mxu0 0
    %2236 = vmatprep.subr.bf16.mxu0 0
    %2237 = vmatpush1.bf16.msra.mxu0 0
    %2238 = vmatprep.subr.bf16.mxu0 0
    %2239 = vmatpush1.bf16.msra.mxu0 0
    %2240 = vmatprep.subr.bf16.mxu0 0
    %2241 = vmatpush1.bf16.msra.mxu0 0
    %2242 = vmatprep.subr.bf16.mxu0 0
    %2243 = vmatpush1.bf16.msra.mxu0 0
    %2244 = vmatprep.subr.bf16.mxu0 0
    %2245 = vmatpush1.bf16.msra.mxu0 0
    %2246 = vmatprep.subr.bf16.mxu0 0
    %2247 = vmatpush1.bf16.msra.mxu0 0
    %2248 = vmatprep.subr.bf16.mxu0 0
    %2249 = vmatpush1.bf16.msra.mxu0 0
    %2250 = vmatprep.mubr.bf16.mxu0 0
    %2251 = vmatmul.mubr.bf16.gmra.mrb[0].mxu0 %v2144
    %v2252 = vpop.f32.mrb[0].mxu0
    %v2253 = vadd.f32 %v2168, %v2252
    %v2254 = vpop.f32.mrb[0].mxu0
    %v2255 = vpop.f32.mrb[0].mxu0
    %v2256 = vadd.f32 %v2168, %v2255
    %v2257 = vpop.f32.mrb[0].mxu0
    %2258 = vdwg.mxu0
    %v2259 = vadd.f32 %v2253, %v2054
    %v2260 = vadd.f32 %v2256, %v2055
    %s2261 = scalar_lea.vmem %s17, 1
    %v2262 = vld [vmem:[%s2261] sm:$0x1]
    %s2263 = scalar_lea.vmem %s18, 1
    %v2264 = vld [vmem:[%s2263] sm:$0x1]
    %v2265 = vsel %vm193, %v2259, 0.0
    %2266 = vadd.xlane.f32.xlu0 %v2265
    %v2267 = vpop.xlane.xlu0 %2266
    %v2268 = vsel %vm193, %v2260, 0.0
    %2269 = vadd.xlane.f32.xlu0 %v2268
    %v2270 = vpop.xlane.xlu0 %2269
    %v2271 = vmul.f32 %v2267, %v200
    %v2272 = vmul.f32 %v2270, %v200
    %v2273 = vmul.f32 %v2259, %v2259
    %v2274 = vmul.f32 %v2260, %v2260
    %v2275 = vsel %vm193, %v2273, 0.0
    %2276 = vadd.xlane.f32.xlu0 %v2275
    %v2277 = vpop.xlane.xlu0 %2276
    %v2278 = vsel %vm193, %v2274, 0.0
    %2279 = vadd.xlane.f32.xlu0 %v2278
    %v2280 = vpop.xlane.xlu0 %2279
    %v2281 = vmul.f32 %v2277, %v200
    %v2282 = vmul.f32 %v2280, %v200
    %v2283 = vmul.f32 %v2271, %v2271
    %v2284 = vmul.f32 %v2272, %v2272
    %v2285 = vsub.f32 %v2281, %v2283
    %v2286 = vsub.f32 %v2282, %v2284
    %v2287 = vmax.f32 %v2285, 0.0
    %v2288 = vmax.f32 %v2286, 0.0
    %v2289 = vsub.f32 %v2259, %v2271
    %v2290 = vsub.f32 %v2260, %v2272
    %v2291 = vadd.f32 %v2287, 1e-12
    %v2292 = vadd.f32 %v2288, 1e-12
    %v2293 = vrsqrt.pop %v2291
    %v2294 = vrsqrt.pop %v2292
    %v2295 = vmul.f32 %v2289, %v2293
    %v2296 = vmul.f32 %v2290, %v2294
    %v2298 = vlaneseq
    %v2299 = vshrl.u32 %v2298, 7
    %v2300 = vsub.s32 0, %v2299
    %v2301 = vrot.slane %v2262, %v2300
    %v2303 = vmul.f32 %v2295, %v2301
    %v2304 = vmul.f32 %v2296, %v2301
    %v2306 = vlaneseq
    %v2307 = vshrl.u32 %v2306, 7
    %v2308 = vsub.s32 0, %v2307
    %v2309 = vrot.slane %v2264, %v2308
    %v2311 = vadd.f32 %v2303, %v2309
    %v2312 = vadd.f32 %v2304, %v2309
    %v2313 = vpack.c.bf16 %v2312, %v2311
    %v2314 = vld [vmem:[%s19] sm:$0xf]
    %v2315 = vld [vmem:[%s19 + $0x4] sm:$0xf]
    %v2316 = vld [vmem:[%s19 + $0x8] sm:$0xf]
    %v2317 = vld [vmem:[%s19 + $0xc] sm:$0xf]
    %v2318 = vld [vmem:[%s20] sm:$0x1]
    %v2320 = vlaneseq
    %v2321 = vshrl.u32 %v2320, 7
    %v2322 = vsub.s32 0, %v2321
    %v2323 = vrot.slane %v2318, %v2322
    %v2329 = vunpack.c.l.b16 %v2314
    %v2330 = vunpack.c.l.b16 %v2315
    %v2331 = vunpack.c.l.b16 %v2316
    %v2332 = vunpack.c.l.b16 %v2317
    %v2333 = vpack.c.b16 %v2330, %v2329
    %v2334 = vpack.c.b16 %v2332, %v2331
    %v2338 = vsel %vm193, %v2313, 0
    %2340 = vmatprep.subr.bf16.mxu0 0
    %2341 = vmatpush1.bf16.msra.mxu0 %v2333
    %2342 = vmatprep.subr.bf16.mxu0 0
    %2343 = vmatpush1.bf16.msra.mxu0 %v2334
    %2344 = vmatprep.subr.bf16.mxu0 0
    %2345 = vmatpush1.bf16.msra.mxu0 0
    %2346 = vmatprep.subr.bf16.mxu0 0
    %2347 = vmatpush1.bf16.msra.mxu0 0
    %2348 = vmatprep.subr.bf16.mxu0 0
    %2349 = vmatpush1.bf16.msra.mxu0 0
    %2350 = vmatprep.subr.bf16.mxu0 0
    %2351 = vmatpush1.bf16.msra.mxu0 0
    %2352 = vmatprep.subr.bf16.mxu0 0
    %2353 = vmatpush1.bf16.msra.mxu0 0
    %2354 = vmatprep.subr.bf16.mxu0 0
    %2355 = vmatpush1.bf16.msra.mxu0 0
    %2356 = vmatprep.subr.bf16.mxu0 0
    %2357 = vmatpush1.bf16.msra.mxu0 0
    %2358 = vmatprep.subr.bf16.mxu0 0
    %2359 = vmatpush1.bf16.msra.mxu0 0
    %2360 = vmatprep.subr.bf16.mxu0 0
    %2361 = vmatpush1.bf16.msra.mxu0 0
    %2362 = vmatprep.subr.bf16.mxu0 0
    %2363 = vmatpush1.bf16.msra.mxu0 0
    %2364 = vmatprep.subr.bf16.mxu0 0
    %2365 = vmatpush1.bf16.msra.mxu0 0
    %2366 = vmatprep.subr.bf16.mxu0 0
    %2367 = vmatpush1.bf16.msra.mxu0 0
    %2368 = vmatprep.subr.bf16.mxu0 0
    %2369 = vmatpush1.bf16.msra.mxu0 0
    %2370 = vmatprep.subr.bf16.mxu0 0
    %2371 = vmatpush1.bf16.msra.mxu0 0
    %2372 = vmatprep.mubr.bf16.mxu0 0
    %2373 = vmatmul.mubr.bf16.gmra.mrb[0].mxu0 %v2338
    %v2374 = vpop.f32.mrb[0].mxu0
    %v2375 = vadd.f32 %v2323, %v2374
    %v2376 = vpop.f32.mrb[0].mxu0
    %v2377 = vpop.f32.mrb[0].mxu0
    %v2378 = vadd.f32 %v2323, %v2377
    %v2379 = vpop.f32.mrb[0].mxu0
    %2380 = vdwg.mxu0
    %2381 = vst [vmem:[%s21] sm:$0xff] %v2375
    %2382 = vst [vmem:[%s21 + $0x8] sm:$0xff] %v2378
    %v2383 = vld [vmem:[%s2] sm:$0xff]
    %v2384 = vld [vmem:[%s2 + $0x8] sm:$0xff]
    %2385 = vset.pattern.permute.xlu0 0
    %2386 = vperm.xlu0 %2385, %v2383
    %v2387 = vpop.permute.xlu0 %2386
    %2388 = vset.pattern.permute.xlu0 0
    %2389 = vperm.xlu0 %2388, %v2384
    %v2390 = vpop.permute.xlu0 %2389
    %vm2391 = vcmp.eq.s32.totalorder %v75, %v2387
    %vm2392 = vcmp.eq.s32.totalorder %v75, %v2390
    %v2393 = vsel %vm2391, 1, 0
    %v2394 = vsel %vm2392, 1, 0
    %v2395 = vcvt.s32.f32 %v2393
    %v2396 = vcvt.s32.f32 %v2394
    %vm2397 = vcmp.ne.s32.totalorder %v2383, 4294967196
    %vm2398 = vcmp.ne.s32.totalorder %v2384, 4294967196
    %v2399 = vsel %vm2397, 1, 0
    %v2400 = vsel %vm2398, 1, 0
    %v2401 = vcvt.s32.f32 %v2399
    %v2402 = vcvt.s32.f32 %v2400
    %2403 = vmax.xlane.f32.xlu0 %v2375
    %v2404 = vpop.xlane.xlu0 %2403
    %2405 = vmax.xlane.f32.xlu0 %v2378
    %v2406 = vpop.xlane.xlu0 %2405
    %v2407 = vsub.f32 %v2375, %v2404
    %v2408 = vsub.f32 %v2378, %v2406
    %v2409 = vmul.f32 %v2407, 1.442695
    %v2410 = vpow.pop %v2409
    %v2411 = vmul.f32 %v2408, 1.442695
    %v2412 = vpow.pop %v2411
    %2413 = vadd.xlane.f32.xlu0 %v2410
    %v2414 = vpop.xlane.xlu0 %2413
    %2415 = vadd.xlane.f32.xlu0 %v2412
    %v2416 = vpop.xlane.xlu0 %2415
    %v2417 = vlog2.pop %v2414
    %v2418 = vmul.f32 %v2417, 0.6931472
    %v2419 = vlog2.pop %v2416
    %v2420 = vmul.f32 %v2419, 0.6931472
    %v2421 = vadd.f32 %v2418, %v2404
    %v2422 = vadd.f32 %v2420, %v2406
    %v2423 = vmul.f32 %v2395, %v2375
    %v2424 = vmul.f32 %v2396, %v2378
    %2425 = vadd.xlane.f32.xlu0 %v2423
    %v2426 = vpop.xlane.xlu0 %2425
    %2427 = vadd.xlane.f32.xlu0 %v2424
    %v2428 = vpop.xlane.xlu0 %2427
    %v2429 = vsub.f32 %v2421, %v2426
    %v2430 = vsub.f32 %v2422, %v2428
    %v2431 = vmul.f32 %v2429, %v2401
    %v2432 = vmul.f32 %v2430, %v2402
    %vm2433 = vcmask 7168
    %v2434 = vsel %vm2433, %v2431, 0.0
    %v2435 = vsel %vm2433, %v2432, 0.0
    %v2436 = vadd.f32 %v2434, %v2435
    %v2437 = vrot.slane %v2436, 4
    %v2438 = vadd.f32 %v2436, %v2437
    %v2439 = vrot.slane %v2438, 2
    %v2440 = vadd.f32 %v2438, %v2439
    %v2441 = vrot.slane %v2440, 1
    %v2442 = vadd.f32 %v2440, %v2441
    %v2443 = vsel %vm2433, %v2401, 0.0
    %v2444 = vsel %vm2433, %v2402, 0.0
    %v2445 = vadd.f32 %v2443, %v2444
    %v2446 = vrot.slane %v2445, 4
    %v2447 = vadd.f32 %v2445, %v2446
    %v2448 = vrot.slane %v2447, 2
    %v2449 = vadd.f32 %v2447, %v2448
    %v2450 = vrot.slane %v2449, 1
    %v2451 = vadd.f32 %v2449, %v2450
    %v2452 = vmax.f32 %v2451, 1.0
    %v2453 = vrcp.pop %v2452
    %v2454 = vmul.f32 %v2442, %v2453
    %vm2455 = vcmask 0
    %2456 = vst.msk [vmem:[#allocation2] sm:$0x1] %vm2455, %v2454
    // Predicated region
    $region86: #{bert_forward.1} parent=1 // pred_check
      _
    $region87: #{bert_forward.1} parent=1 // pred_check_branch
      %2458 = sbr.rel (0) target = $region89
    $region88: #{bert_forward.1} parent=1 // pred_region
      _
    $region89: #{bert_forward.1} parent=1 // pred_fallthru
      _
    // Predicated region
    $region90: #{bert_forward.1} parent=1 // pred_check
      _
    $region91: #{bert_forward.1} parent=1 // pred_check_branch
      %2460 = sbr.rel (0) target = $region93
    $region92: #{bert_forward.1} parent=1 // pred_region
      %s2462 = ssub.s32 16, 16
      %2463 = vsyncadd [#allocation3], %s2462
      %s2465 = sshll.u32 [#allocation2], 4
      %s2466 = int_to_ptr.vmem [resolvable:$true] %s2465
      %2468 = dma.vmem_to_hbm [thread:$0]  %s2466, 16, %s22, [#allocation3]
    $region93: #{bert_forward.1} parent=1 // pred_fallthru
      _
    // Predicated region
    $region94: #{bert_forward.1} parent=1 // pred_check
      _
    $region95: #{bert_forward.1} parent=1 // pred_check_branch
      %2470 = sbr.rel (0) target = $region97
    $region96: #{bert_forward.1} parent=1 // pred_region
      _
    $region97: #{bert_forward.1} parent=1 // pred_fallthru
      _
    // Predicated region
    $region98: #{bert_forward.1} parent=1 // pred_check
      _
    $region99: #{bert_forward.1} parent=1 // pred_check_branch
      %2472 = sbr.rel (0) target = $region101
    $region100: #{bert_forward.1} parent=1 // pred_region
      %2473 = dma.done [#allocation3], 16
    $region101: #{bert_forward.1} parent=1 // pred_fallthru
      _
    %2474 = vsyncpa [#allocation3], 1

</llo_original>
